<compile_context>
chip_gen: v6e
topology: v6e:2x2x1
jax: 0.10.0
libtpu: 0.0.40
codegen_flags: <defaults>
</compile_context>

<pallas_src>
import functools

import jax
import jax.numpy as jnp
from jax import lax
from jax.experimental import pallas as pl
from jax.experimental.pallas import tpu as pltpu


def _upsample_conv_kernel(x_ref, up_ref, w_ref, b_ref, o_ref, *, w_up):
    # x_ref : (nb, C, H*W)     VMEM  original images, spatial flattened (y-major)
    # up_ref: (H*W, H2*W2)     VMEM  0/1 nearest-2x expansion matrix
    # w_ref : (C, 9*C)         VMEM  conv weights, column index = (ky*3+kx)*C + ci
    # b_ref : (C, 1)           VMEM  bias column
    # o_ref : (nb, C, H2*W2)   VMEM  output, spatial flattened (lane-dense)
    nb, cin, hw = x_ref.shape
    cout = o_ref.shape[1]
    hw4 = o_ref.shape[2]
    f32 = jnp.float32

    # --- nearest 2x upsample: one MXU dot into the flat spatial layout -------
    rows = nb * cin
    x2 = x_ref[...].astype(f32).reshape(rows, hw)
    pad = (-rows) % 8
    if pad:  # keep the matmul M-dim a multiple of 8 sublanes
        x2 = jnp.concatenate([x2, jnp.zeros((pad, hw), f32)], axis=0)
    u = jnp.dot(x2, up_ref[...].astype(f32), preferred_element_type=f32)  # (rows_p, hw4)

    # --- x-neighbour taps: lane shifts with zero fill at row edges -----------
    xcol = lax.broadcasted_iota(jnp.int32, (1, hw4), 1) % w_up
    zc = jnp.zeros((u.shape[0], 1), f32)
    u_l = jnp.where(xcol == 0, 0.0,
                    jnp.concatenate([zc, u[:, :-1]], axis=1))   # value at x-1
    u_r = jnp.where(xcol == w_up - 1, 0.0,
                    jnp.concatenate([u[:, 1:], zc], axis=1))    # value at x+1
    srcs = (u_l, u, u_r)                                        # kx = 0, 1, 2

    wmat = w_ref[...].astype(f32)        # (cout, 9*cin)
    bcol = b_ref[...].astype(f32)        # (cout, 1)
    zrow = jnp.zeros((cout, w_up), f32)

    for n in range(nb):
        base = n * cin
        acc = jnp.zeros((cout, hw4), f32)
        for ky in range(3):
            # Row-conv partial sum for this ky; C is tiny so the channel
            # contraction stays on the VPU as scalar-column FMAs.
            r = jnp.zeros((cout, hw4), f32)
            for kx in range(3):
                src = srcs[kx]
                for ci in range(cin):
                    t = (ky * 3 + kx) * cin + ci
                    r = r + wmat[:, t:t + 1] * src[base + ci:base + ci + 1, :]
            # y-neighbour taps: shift the partial sum by +-W2 along the flat
            # axis (the zero fill lands exactly on the boundary row -> no mask).
            if ky == 0:
                acc = acc + jnp.concatenate([zrow, r[:, :-w_up]], axis=1)
            elif ky == 1:
                acc = acc + r
            else:
                acc = acc + jnp.concatenate([r[:, w_up:], zrow], axis=1)
        o_ref[n] = (acc + bcol).astype(o_ref.dtype)


def _multi_tensorcore_chip() -> bool:
    """True on chips with >1 TensorCore (v4/v5p megacore, v7x)."""
    try:
        kind = jax.devices()[0].device_kind.lower()
    except Exception:
        return False
    return any(tag in kind for tag in ("v4", "v5p", "v7"))


@jax.jit
def upsample_forward(x_nchw, w_oihw, bias):
    """Pallas equivalent of UpSample.forward(x, temb); temb is unused by the module."""
    N, C, H, W = x_nchw.shape
    assert w_oihw.shape == (C, C, 3, 3), w_oihw.shape  # module has Cin == Cout
    assert bias.shape == (C,), bias.shape
    H2, W2 = 2 * H, 2 * W
    HW, HW4 = H * W, H2 * W2

    # Flat-spatial views (free: contiguous with NCHW).
    x_flat = x_nchw.reshape(N, C, HW)

    # 0/1 expansion matrix performing the nearest-2x upsample into flat layout:
    # up[k, f] = 1 iff source pixel k == (Y//2, X//2) for flat target f = Y*W2 + X.
    f = jnp.arange(HW4, dtype=jnp.int32)
    src = ((f // W2) // 2) * W + (f % W2) // 2
    up = (jnp.arange(HW, dtype=jnp.int32)[:, None] == src[None, :]).astype(jnp.float32)

    # Weights as a (C_out, 9*C_in) matrix, bias as a column (both VMEM-resident).
    w_mat = jnp.transpose(w_oihw, (0, 2, 3, 1)).reshape(C, 9 * C).astype(jnp.float32)
    b_col = bias.reshape(C, 1).astype(jnp.float32)

    # Single-TC chips: whole batch in one grid step (per-step pipeline overhead
    # dominates at these sizes). Multi-TC chips: one image per parallel step.
    nb = 1 if (_multi_tensorcore_chip() and N >= 2) else N
    grid = (N // nb,)

    kernel = functools.partial(_upsample_conv_kernel, w_up=W2)

    out_flat = pl.pallas_call(
        kernel,
        out_shape=jax.ShapeDtypeStruct((N, C, HW4), x_nchw.dtype),
        grid_spec=pltpu.PrefetchScalarGridSpec(
            num_scalar_prefetch=0,
            grid=grid,
            in_specs=[
                pl.BlockSpec((nb, C, HW), lambda s: (s, 0, 0)),
                pl.BlockSpec((HW, HW4), lambda s: (0, 0)),
                pl.BlockSpec((C, 9 * C), lambda s: (0, 0)),
                pl.BlockSpec((C, 1), lambda s: (0, 0)),
            ],
            out_specs=pl.BlockSpec((nb, C, HW4), lambda s: (s, 0, 0)),
        ),
        compiler_params=pltpu.CompilerParams(
            dimension_semantics=("parallel",),
        ),
    )(x_flat, up, w_mat, b_col)

    return out_flat.reshape(N, C, H2, W2)


def _reference_forward(x_nchw, w_oihw, bias):
    """Pure-JAX reference (F.interpolate nearest x2 + Conv2d pad=1)."""
    x_up = jnp.repeat(jnp.repeat(x_nchw, 2, axis=2), 2, axis=3)
    out = lax.conv_general_dilated(
        x_up, w_oihw,
        window_strides=(1, 1),
        padding=((1, 1), (1, 1)),
        dimension_numbers=("NCHW", "OIHW", "NCHW"),
        precision=lax.Precision.HIGHEST,
    )
    return out + bias[None, :, None, None]


if __name__ == "__main__":
    key = jax.random.PRNGKey(0)
    k_x, k_w, k_b = jax.random.split(key, 3)

    N, C, H, W = 2, 4, 16, 16
    x = jax.random.normal(k_x, (N, C, H, W), dtype=jnp.float32)
    temb = jnp.zeros((N, 32), dtype=jnp.float32)  # unused by UpSample.forward

    # nn.Conv2d(in_ch, in_ch, 3) with xavier_uniform_-style weights; small
    # non-zero bias so the bias path is numerically exercised.
    fan = C * 3 * 3
    bound = (6.0 / (fan + fan)) ** 0.5
    w = jax.random.uniform(k_w, (C, C, 3, 3), dtype=jnp.float32,
                           minval=-bound, maxval=bound)
    b = 0.1 * jax.random.normal(k_b, (C,), dtype=jnp.float32)

    out = upsample_forward(x, w, b)
    out = jax.block_until_ready(out)

    ref = _reference_forward(x, w, b)
    assert out.shape == (N, C, 2 * H, 2 * W), out.shape
    err = float(jnp.max(jnp.abs(out - ref)))
    assert err < 1e-4, err
    print("KERNEL_OK")
</pallas_src>

<mosaic_0001>
module attributes {stable_mosaic.version = 11 : i64} {
  func.func @_upsample_conv_kernel(%arg0: i32, %arg1: memref<2x4x256xf32, #tpu.memory_space<vmem>>, %arg2: memref<256x1024xf32, #tpu.memory_space<vmem>>, %arg3: memref<4x36xf32, #tpu.memory_space<vmem>>, %arg4: memref<4x1xf32, #tpu.memory_space<vmem>>, %arg5: memref<2x4x1024xf32, #tpu.memory_space<vmem>>) attributes {dimension_semantics = [#tpu.dimension_semantics<parallel>], iteration_bounds = array<i64: 1>, scalar_prefetch = 0 : i64, scratch_operands = 0 : i64, tpu.core_type = #tpu.core_type<tc>, window_params = [{transform_indices = @transform_0, window_bounds = array<i64: 2, 4, 256>}, {pipeline_mode = #tpu.pipeline_mode<synchronous>, transform_indices = @transform_1, window_bounds = array<i64: 256, 1024>}, {pipeline_mode = #tpu.pipeline_mode<synchronous>, transform_indices = @transform_2, window_bounds = array<i64: 4, 36>}, {pipeline_mode = #tpu.pipeline_mode<synchronous>, transform_indices = @transform_3, window_bounds = array<i64: 4, 1>}, {transform_indices = @transform_4, window_bounds = array<i64: 2, 4, 1024>}]} {
    %c0 = arith.constant 0 : index
    %c0_0 = arith.constant 0 : index
    %c0_1 = arith.constant 0 : index
    %0 = vector.load %arg1[%c0, %c0_0, %c0_1] : memref<2x4x256xf32, #tpu.memory_space<vmem>>, vector<2x4x256xf32>
    %1 = vector.shape_cast %0 : vector<2x4x256xf32> to vector<8x256xf32>
    %c0_2 = arith.constant 0 : index
    %c0_3 = arith.constant 0 : index
    %2 = vector.load %arg2[%c0_2, %c0_3] : memref<256x1024xf32, #tpu.memory_space<vmem>>, vector<256x1024xf32>
    %cst = arith.constant dense<0.000000e+00> : vector<8x1024xf32>
    %3 = tpu.matmul %1, %2, %cst {dimension_numbers = #tpu.dot_dimension_numbers<[1], [0], [0], [1], [0, 0, 1, 1], [], []>} : vector<8x256xf32>, vector<256x1024xf32>, vector<8x1024xf32> -> vector<8x1024xf32>
    %4 = tpu.iota {dimensions = array<i32: 1>} : vector<1x1024xi32>
    %c32_i32 = arith.constant 32 : i32
    %c0_i32 = arith.constant 0 : i32
    %5 = arith.cmpi eq, %c32_i32, %c0_i32 : i32
    %c1_i32 = arith.constant 1 : i32
    %6 = arith.select %5, %c1_i32, %c32_i32 : i32
    %7 = vector.broadcast %6 : i32 to vector<1x1024xi32>
    %8 = arith.remsi %4, %7 : vector<1x1024xi32>
    %c0_i32_4 = arith.constant 0 : i32
    %9 = vector.broadcast %c0_i32_4 : i32 to vector<1x1024xi32>
    %10 = arith.cmpi ne, %8, %9 : vector<1x1024xi32>
    %c0_i32_5 = arith.constant 0 : i32
    %11 = vector.broadcast %c0_i32_5 : i32 to vector<1x1024xi32>
    %12 = arith.cmpi slt, %8, %11 : vector<1x1024xi32>
    %c0_i32_6 = arith.constant 0 : i32
    %13 = arith.cmpi slt, %6, %c0_i32_6 : i32
    %14 = vector.broadcast %13 : i1 to vector<1x1024xi1>
    %15 = vector.broadcast %14 : vector<1x1024xi1> to vector<1x1024xi1>
    %16 = arith.xori %12, %15 : vector<1x1024xi1>
    %17 = arith.andi %16, %10 : vector<1x1024xi1>
    %18 = vector.broadcast %6 : i32 to vector<1x1024xi32>
    %19 = arith.addi %8, %18 : vector<1x1024xi32>
    %20 = arith.select %17, %19, %8 : vector<1x1024xi1>, vector<1x1024xi32>
    %cst_7 = arith.constant 0.000000e+00 : f32
    %21 = vector.broadcast %cst_7 : f32 to vector<8x1xf32>
    %c0_i32_8 = arith.constant 0 : i32
    %22 = vector.broadcast %c0_i32_8 : i32 to vector<1x1024xi32>
    %23 = arith.cmpi eq, %20, %22 : vector<1x1024xi32>
    %24 = vector.extract_strided_slice %3 {offsets = [0, 0], sizes = [8, 1023], strides = [1, 1]} : vector<8x1024xf32> to vector<8x1023xf32>
    %25 = tpu.concatenate %21, %24 in 1 : vector<8x1xf32>, vector<8x1023xf32> -> vector<8x1024xf32>
    %cst_9 = arith.constant 0.000000e+00 : f32
    %26 = vector.shape_cast %23 : vector<1x1024xi1> to vector<1x1024xi1>
    %27 = vector.broadcast %26 : vector<1x1024xi1> to vector<8x1024xi1>
    %28 = vector.broadcast %cst_9 : f32 to vector<8x1024xf32>
    %29 = arith.select %27, %28, %25 : vector<8x1024xi1>, vector<8x1024xf32>
    %c31_i32 = arith.constant 31 : i32
    %30 = vector.broadcast %c31_i32 : i32 to vector<1x1024xi32>
    %31 = arith.cmpi eq, %20, %30 : vector<1x1024xi32>
    %32 = vector.extract_strided_slice %3 {offsets = [0, 1], sizes = [8, 1023], strides = [1, 1]} : vector<8x1024xf32> to vector<8x1023xf32>
    %33 = tpu.concatenate %32, %21 in 1 : vector<8x1023xf32>, vector<8x1xf32> -> vector<8x1024xf32>
    %cst_10 = arith.constant 0.000000e+00 : f32
    %34 = vector.shape_cast %31 : vector<1x1024xi1> to vector<1x1024xi1>
    %35 = vector.broadcast %34 : vector<1x1024xi1> to vector<8x1024xi1>
    %36 = vector.broadcast %cst_10 : f32 to vector<8x1024xf32>
    %37 = arith.select %35, %36, %33 : vector<8x1024xi1>, vector<8x1024xf32>
    %c0_11 = arith.constant 0 : index
    %c0_12 = arith.constant 0 : index
    %38 = vector.load %arg3[%c0_11, %c0_12] : memref<4x36xf32, #tpu.memory_space<vmem>>, vector<4x36xf32>
    %c0_13 = arith.constant 0 : index
    %c0_14 = arith.constant 0 : index
    %39 = vector.load %arg4[%c0_13, %c0_14] : memref<4x1xf32, #tpu.memory_space<vmem>>, vector<4x1xf32>
    %cst_15 = arith.constant 0.000000e+00 : f32
    %40 = vector.broadcast %cst_15 : f32 to vector<4x32xf32>
    %cst_16 = arith.constant 0.000000e+00 : f32
    %41 = vector.broadcast %cst_16 : f32 to vector<4x1024xf32>
    %cst_17 = arith.constant 0.000000e+00 : f32
    %42 = vector.broadcast %cst_17 : f32 to vector<4x1024xf32>
    %43 = vector.extract_strided_slice %38 {offsets = [0, 0], sizes = [4, 1], strides = [1, 1]} : vector<4x36xf32> to vector<4x1xf32>
    %44 = vector.extract_strided_slice %29 {offsets = [0, 0], sizes = [1, 1024], strides = [1, 1]} : vector<8x1024xf32> to vector<1x1024xf32>
    %45 = vector.broadcast %43 : vector<4x1xf32> to vector<4x1024xf32>
    %46 = vector.broadcast %44 : vector<1x1024xf32> to vector<4x1024xf32>
    %47 = arith.mulf %45, %46 : vector<4x1024xf32>
    %48 = arith.addf %42, %47 : vector<4x1024xf32>
    %49 = vector.extract_strided_slice %38 {offsets = [0, 1], sizes = [4, 1], strides = [1, 1]} : vector<4x36xf32> to vector<4x1xf32>
    %50 = vector.extract_strided_slice %29 {offsets = [1, 0], sizes = [1, 1024], strides = [1, 1]} : vector<8x1024xf32> to vector<1x1024xf32>
    %51 = vector.broadcast %49 : vector<4x1xf32> to vector<4x1024xf32>
    %52 = vector.broadcast %50 : vector<1x1024xf32> to vector<4x1024xf32>
    %53 = arith.mulf %51, %52 : vector<4x1024xf32>
    %54 = arith.addf %48, %53 : vector<4x1024xf32>
    %55 = vector.extract_strided_slice %38 {offsets = [0, 2], sizes = [4, 1], strides = [1, 1]} : vector<4x36xf32> to vector<4x1xf32>
    %56 = vector.extract_strided_slice %29 {offsets = [2, 0], sizes = [1, 1024], strides = [1, 1]} : vector<8x1024xf32> to vector<1x1024xf32>
    %57 = vector.broadcast %55 : vector<4x1xf32> to vector<4x1024xf32>
    %58 = vector.broadcast %56 : vector<1x1024xf32> to vector<4x1024xf32>
    %59 = arith.mulf %57, %58 : vector<4x1024xf32>
    %60 = arith.addf %54, %59 : vector<4x1024xf32>
    %61 = vector.extract_strided_slice %38 {offsets = [0, 3], sizes = [4, 1], strides = [1, 1]} : vector<4x36xf32> to vector<4x1xf32>
    %62 = vector.extract_strided_slice %29 {offsets = [3, 0], sizes = [1, 1024], strides = [1, 1]} : vector<8x1024xf32> to vector<1x1024xf32>
    %63 = vector.broadcast %61 : vector<4x1xf32> to vector<4x1024xf32>
    %64 = vector.broadcast %62 : vector<1x1024xf32> to vector<4x1024xf32>
    %65 = arith.mulf %63, %64 : vector<4x1024xf32>
    %66 = arith.addf %60, %65 : vector<4x1024xf32>
    %67 = vector.extract_strided_slice %38 {offsets = [0, 4], sizes = [4, 1], strides = [1, 1]} : vector<4x36xf32> to vector<4x1xf32>
    %68 = vector.extract_strided_slice %3 {offsets = [0, 0], sizes = [1, 1024], strides = [1, 1]} : vector<8x1024xf32> to vector<1x1024xf32>
    %69 = vector.broadcast %67 : vector<4x1xf32> to vector<4x1024xf32>
    %70 = vector.broadcast %68 : vector<1x1024xf32> to vector<4x1024xf32>
    %71 = arith.mulf %69, %70 : vector<4x1024xf32>
    %72 = arith.addf %66, %71 : vector<4x1024xf32>
    %73 = vector.extract_strided_slice %38 {offsets = [0, 5], sizes = [4, 1], strides = [1, 1]} : vector<4x36xf32> to vector<4x1xf32>
    %74 = vector.extract_strided_slice %3 {offsets = [1, 0], sizes = [1, 1024], strides = [1, 1]} : vector<8x1024xf32> to vector<1x1024xf32>
    %75 = vector.broadcast %73 : vector<4x1xf32> to vector<4x1024xf32>
    %76 = vector.broadcast %74 : vector<1x1024xf32> to vector<4x1024xf32>
    %77 = arith.mulf %75, %76 : vector<4x1024xf32>
    %78 = arith.addf %72, %77 : vector<4x1024xf32>
    %79 = vector.extract_strided_slice %38 {offsets = [0, 6], sizes = [4, 1], strides = [1, 1]} : vector<4x36xf32> to vector<4x1xf32>
    %80 = vector.extract_strided_slice %3 {offsets = [2, 0], sizes = [1, 1024], strides = [1, 1]} : vector<8x1024xf32> to vector<1x1024xf32>
    %81 = vector.broadcast %79 : vector<4x1xf32> to vector<4x1024xf32>
    %82 = vector.broadcast %80 : vector<1x1024xf32> to vector<4x1024xf32>
    %83 = arith.mulf %81, %82 : vector<4x1024xf32>
    %84 = arith.addf %78, %83 : vector<4x1024xf32>
    %85 = vector.extract_strided_slice %38 {offsets = [0, 7], sizes = [4, 1], strides = [1, 1]} : vector<4x36xf32> to vector<4x1xf32>
    %86 = vector.extract_strided_slice %3 {offsets = [3, 0], sizes = [1, 1024], strides = [1, 1]} : vector<8x1024xf32> to vector<1x1024xf32>
    %87 = vector.broadcast %85 : vector<4x1xf32> to vector<4x1024xf32>
    %88 = vector.broadcast %86 : vector<1x1024xf32> to vector<4x1024xf32>
    %89 = arith.mulf %87, %88 : vector<4x1024xf32>
    %90 = arith.addf %84, %89 : vector<4x1024xf32>
    %91 = vector.extract_strided_slice %38 {offsets = [0, 8], sizes = [4, 1], strides = [1, 1]} : vector<4x36xf32> to vector<4x1xf32>
    %92 = vector.extract_strided_slice %37 {offsets = [0, 0], sizes = [1, 1024], strides = [1, 1]} : vector<8x1024xf32> to vector<1x1024xf32>
    %93 = vector.broadcast %91 : vector<4x1xf32> to vector<4x1024xf32>
    %94 = vector.broadcast %92 : vector<1x1024xf32> to vector<4x1024xf32>
    %95 = arith.mulf %93, %94 : vector<4x1024xf32>
    %96 = arith.addf %90, %95 : vector<4x1024xf32>
    %97 = vector.extract_strided_slice %38 {offsets = [0, 9], sizes = [4, 1], strides = [1, 1]} : vector<4x36xf32> to vector<4x1xf32>
    %98 = vector.extract_strided_slice %37 {offsets = [1, 0], sizes = [1, 1024], strides = [1, 1]} : vector<8x1024xf32> to vector<1x1024xf32>
    %99 = vector.broadcast %97 : vector<4x1xf32> to vector<4x1024xf32>
    %100 = vector.broadcast %98 : vector<1x1024xf32> to vector<4x1024xf32>
    %101 = arith.mulf %99, %100 : vector<4x1024xf32>
    %102 = arith.addf %96, %101 : vector<4x1024xf32>
    %103 = vector.extract_strided_slice %38 {offsets = [0, 10], sizes = [4, 1], strides = [1, 1]} : vector<4x36xf32> to vector<4x1xf32>
    %104 = vector.extract_strided_slice %37 {offsets = [2, 0], sizes = [1, 1024], strides = [1, 1]} : vector<8x1024xf32> to vector<1x1024xf32>
    %105 = vector.broadcast %103 : vector<4x1xf32> to vector<4x1024xf32>
    %106 = vector.broadcast %104 : vector<1x1024xf32> to vector<4x1024xf32>
    %107 = arith.mulf %105, %106 : vector<4x1024xf32>
    %108 = arith.addf %102, %107 : vector<4x1024xf32>
    %109 = vector.extract_strided_slice %38 {offsets = [0, 11], sizes = [4, 1], strides = [1, 1]} : vector<4x36xf32> to vector<4x1xf32>
    %110 = vector.extract_strided_slice %37 {offsets = [3, 0], sizes = [1, 1024], strides = [1, 1]} : vector<8x1024xf32> to vector<1x1024xf32>
    %111 = vector.broadcast %109 : vector<4x1xf32> to vector<4x1024xf32>
    %112 = vector.broadcast %110 : vector<1x1024xf32> to vector<4x1024xf32>
    %113 = arith.mulf %111, %112 : vector<4x1024xf32>
    %114 = arith.addf %108, %113 : vector<4x1024xf32>
    %115 = vector.extract_strided_slice %114 {offsets = [0, 0], sizes = [4, 992], strides = [1, 1]} : vector<4x1024xf32> to vector<4x992xf32>
    %116 = tpu.concatenate %40, %115 in 1 : vector<4x32xf32>, vector<4x992xf32> -> vector<4x1024xf32>
    %117 = arith.addf %41, %116 : vector<4x1024xf32>
    %cst_18 = arith.constant 0.000000e+00 : f32
    %118 = vector.broadcast %cst_18 : f32 to vector<4x1024xf32>
    %119 = vector.extract_strided_slice %38 {offsets = [0, 12], sizes = [4, 1], strides = [1, 1]} : vector<4x36xf32> to vector<4x1xf32>
    %120 = vector.extract_strided_slice %29 {offsets = [0, 0], sizes = [1, 1024], strides = [1, 1]} : vector<8x1024xf32> to vector<1x1024xf32>
    %121 = vector.broadcast %119 : vector<4x1xf32> to vector<4x1024xf32>
    %122 = vector.broadcast %120 : vector<1x1024xf32> to vector<4x1024xf32>
    %123 = arith.mulf %121, %122 : vector<4x1024xf32>
    %124 = arith.addf %118, %123 : vector<4x1024xf32>
    %125 = vector.extract_strided_slice %38 {offsets = [0, 13], sizes = [4, 1], strides = [1, 1]} : vector<4x36xf32> to vector<4x1xf32>
    %126 = vector.extract_strided_slice %29 {offsets = [1, 0], sizes = [1, 1024], strides = [1, 1]} : vector<8x1024xf32> to vector<1x1024xf32>
    %127 = vector.broadcast %125 : vector<4x1xf32> to vector<4x1024xf32>
    %128 = vector.broadcast %126 : vector<1x1024xf32> to vector<4x1024xf32>
    %129 = arith.mulf %127, %128 : vector<4x1024xf32>
    %130 = arith.addf %124, %129 : vector<4x1024xf32>
    %131 = vector.extract_strided_slice %38 {offsets = [0, 14], sizes = [4, 1], strides = [1, 1]} : vector<4x36xf32> to vector<4x1xf32>
    %132 = vector.extract_strided_slice %29 {offsets = [2, 0], sizes = [1, 1024], strides = [1, 1]} : vector<8x1024xf32> to vector<1x1024xf32>
    %133 = vector.broadcast %131 : vector<4x1xf32> to vector<4x1024xf32>
    %134 = vector.broadcast %132 : vector<1x1024xf32> to vector<4x1024xf32>
    %135 = arith.mulf %133, %134 : vector<4x1024xf32>
    %136 = arith.addf %130, %135 : vector<4x1024xf32>
    %137 = vector.extract_strided_slice %38 {offsets = [0, 15], sizes = [4, 1], strides = [1, 1]} : vector<4x36xf32> to vector<4x1xf32>
    %138 = vector.extract_strided_slice %29 {offsets = [3, 0], sizes = [1, 1024], strides = [1, 1]} : vector<8x1024xf32> to vector<1x1024xf32>
    %139 = vector.broadcast %137 : vector<4x1xf32> to vector<4x1024xf32>
    %140 = vector.broadcast %138 : vector<1x1024xf32> to vector<4x1024xf32>
    %141 = arith.mulf %139, %140 : vector<4x1024xf32>
    %142 = arith.addf %136, %141 : vector<4x1024xf32>
    %143 = vector.extract_strided_slice %38 {offsets = [0, 16], sizes = [4, 1], strides = [1, 1]} : vector<4x36xf32> to vector<4x1xf32>
    %144 = vector.extract_strided_slice %3 {offsets = [0, 0], sizes = [1, 1024], strides = [1, 1]} : vector<8x1024xf32> to vector<1x1024xf32>
    %145 = vector.broadcast %143 : vector<4x1xf32> to vector<4x1024xf32>
    %146 = vector.broadcast %144 : vector<1x1024xf32> to vector<4x1024xf32>
    %147 = arith.mulf %145, %146 : vector<4x1024xf32>
    %148 = arith.addf %142, %147 : vector<4x1024xf32>
    %149 = vector.extract_strided_slice %38 {offsets = [0, 17], sizes = [4, 1], strides = [1, 1]} : vector<4x36xf32> to vector<4x1xf32>
    %150 = vector.extract_strided_slice %3 {offsets = [1, 0], sizes = [1, 1024], strides = [1, 1]} : vector<8x1024xf32> to vector<1x1024xf32>
    %151 = vector.broadcast %149 : vector<4x1xf32> to vector<4x1024xf32>
    %152 = vector.broadcast %150 : vector<1x1024xf32> to vector<4x1024xf32>
    %153 = arith.mulf %151, %152 : vector<4x1024xf32>
    %154 = arith.addf %148, %153 : vector<4x1024xf32>
    %155 = vector.extract_strided_slice %38 {offsets = [0, 18], sizes = [4, 1], strides = [1, 1]} : vector<4x36xf32> to vector<4x1xf32>
    %156 = vector.extract_strided_slice %3 {offsets = [2, 0], sizes = [1, 1024], strides = [1, 1]} : vector<8x1024xf32> to vector<1x1024xf32>
    %157 = vector.broadcast %155 : vector<4x1xf32> to vector<4x1024xf32>
    %158 = vector.broadcast %156 : vector<1x1024xf32> to vector<4x1024xf32>
    %159 = arith.mulf %157, %158 : vector<4x1024xf32>
    %160 = arith.addf %154, %159 : vector<4x1024xf32>
    %161 = vector.extract_strided_slice %38 {offsets = [0, 19], sizes = [4, 1], strides = [1, 1]} : vector<4x36xf32> to vector<4x1xf32>
    %162 = vector.extract_strided_slice %3 {offsets = [3, 0], sizes = [1, 1024], strides = [1, 1]} : vector<8x1024xf32> to vector<1x1024xf32>
    %163 = vector.broadcast %161 : vector<4x1xf32> to vector<4x1024xf32>
    %164 = vector.broadcast %162 : vector<1x1024xf32> to vector<4x1024xf32>
    %165 = arith.mulf %163, %164 : vector<4x1024xf32>
    %166 = arith.addf %160, %165 : vector<4x1024xf32>
    %167 = vector.extract_strided_slice %38 {offsets = [0, 20], sizes = [4, 1], strides = [1, 1]} : vector<4x36xf32> to vector<4x1xf32>
    %168 = vector.extract_strided_slice %37 {offsets = [0, 0], sizes = [1, 1024], strides = [1, 1]} : vector<8x1024xf32> to vector<1x1024xf32>
    %169 = vector.broadcast %167 : vector<4x1xf32> to vector<4x1024xf32>
    %170 = vector.broadcast %168 : vector<1x1024xf32> to vector<4x1024xf32>
    %171 = arith.mulf %169, %170 : vector<4x1024xf32>
    %172 = arith.addf %166, %171 : vector<4x1024xf32>
    %173 = vector.extract_strided_slice %38 {offsets = [0, 21], sizes = [4, 1], strides = [1, 1]} : vector<4x36xf32> to vector<4x1xf32>
    %174 = vector.extract_strided_slice %37 {offsets = [1, 0], sizes = [1, 1024], strides = [1, 1]} : vector<8x1024xf32> to vector<1x1024xf32>
    %175 = vector.broadcast %173 : vector<4x1xf32> to vector<4x1024xf32>
    %176 = vector.broadcast %174 : vector<1x1024xf32> to vector<4x1024xf32>
    %177 = arith.mulf %175, %176 : vector<4x1024xf32>
    %178 = arith.addf %172, %177 : vector<4x1024xf32>
    %179 = vector.extract_strided_slice %38 {offsets = [0, 22], sizes = [4, 1], strides = [1, 1]} : vector<4x36xf32> to vector<4x1xf32>
    %180 = vector.extract_strided_slice %37 {offsets = [2, 0], sizes = [1, 1024], strides = [1, 1]} : vector<8x1024xf32> to vector<1x1024xf32>
    %181 = vector.broadcast %179 : vector<4x1xf32> to vector<4x1024xf32>
    %182 = vector.broadcast %180 : vector<1x1024xf32> to vector<4x1024xf32>
    %183 = arith.mulf %181, %182 : vector<4x1024xf32>
    %184 = arith.addf %178, %183 : vector<4x1024xf32>
    %185 = vector.extract_strided_slice %38 {offsets = [0, 23], sizes = [4, 1], strides = [1, 1]} : vector<4x36xf32> to vector<4x1xf32>
    %186 = vector.extract_strided_slice %37 {offsets = [3, 0], sizes = [1, 1024], strides = [1, 1]} : vector<8x1024xf32> to vector<1x1024xf32>
    %187 = vector.broadcast %185 : vector<4x1xf32> to vector<4x1024xf32>
    %188 = vector.broadcast %186 : vector<1x1024xf32> to vector<4x1024xf32>
    %189 = arith.mulf %187, %188 : vector<4x1024xf32>
    %190 = arith.addf %184, %189 : vector<4x1024xf32>
    %191 = arith.addf %117, %190 : vector<4x1024xf32>
    %cst_19 = arith.constant 0.000000e+00 : f32
    %192 = vector.broadcast %cst_19 : f32 to vector<4x1024xf32>
    %193 = vector.extract_strided_slice %38 {offsets = [0, 24], sizes = [4, 1], strides = [1, 1]} : vector<4x36xf32> to vector<4x1xf32>
    %194 = vector.extract_strided_slice %29 {offsets = [0, 0], sizes = [1, 1024], strides = [1, 1]} : vector<8x1024xf32> to vector<1x1024xf32>
    %195 = vector.broadcast %193 : vector<4x1xf32> to vector<4x1024xf32>
    %196 = vector.broadcast %194 : vector<1x1024xf32> to vector<4x1024xf32>
    %197 = arith.mulf %195, %196 : vector<4x1024xf32>
    %198 = arith.addf %192, %197 : vector<4x1024xf32>
    %199 = vector.extract_strided_slice %38 {offsets = [0, 25], sizes = [4, 1], strides = [1, 1]} : vector<4x36xf32> to vector<4x1xf32>
    %200 = vector.extract_strided_slice %29 {offsets = [1, 0], sizes = [1, 1024], strides = [1, 1]} : vector<8x1024xf32> to vector<1x1024xf32>
    %201 = vector.broadcast %199 : vector<4x1xf32> to vector<4x1024xf32>
    %202 = vector.broadcast %200 : vector<1x1024xf32> to vector<4x1024xf32>
    %203 = arith.mulf %201, %202 : vector<4x1024xf32>
    %204 = arith.addf %198, %203 : vector<4x1024xf32>
    %205 = vector.extract_strided_slice %38 {offsets = [0, 26], sizes = [4, 1], strides = [1, 1]} : vector<4x36xf32> to vector<4x1xf32>
    %206 = vector.extract_strided_slice %29 {offsets = [2, 0], sizes = [1, 1024], strides = [1, 1]} : vector<8x1024xf32> to vector<1x1024xf32>
    %207 = vector.broadcast %205 : vector<4x1xf32> to vector<4x1024xf32>
    %208 = vector.broadcast %206 : vector<1x1024xf32> to vector<4x1024xf32>
    %209 = arith.mulf %207, %208 : vector<4x1024xf32>
    %210 = arith.addf %204, %209 : vector<4x1024xf32>
    %211 = vector.extract_strided_slice %38 {offsets = [0, 27], sizes = [4, 1], strides = [1, 1]} : vector<4x36xf32> to vector<4x1xf32>
    %212 = vector.extract_strided_slice %29 {offsets = [3, 0], sizes = [1, 1024], strides = [1, 1]} : vector<8x1024xf32> to vector<1x1024xf32>
    %213 = vector.broadcast %211 : vector<4x1xf32> to vector<4x1024xf32>
    %214 = vector.broadcast %212 : vector<1x1024xf32> to vector<4x1024xf32>
    %215 = arith.mulf %213, %214 : vector<4x1024xf32>
    %216 = arith.addf %210, %215 : vector<4x1024xf32>
    %217 = vector.extract_strided_slice %38 {offsets = [0, 28], sizes = [4, 1], strides = [1, 1]} : vector<4x36xf32> to vector<4x1xf32>
    %218 = vector.extract_strided_slice %3 {offsets = [0, 0], sizes = [1, 1024], strides = [1, 1]} : vector<8x1024xf32> to vector<1x1024xf32>
    %219 = vector.broadcast %217 : vector<4x1xf32> to vector<4x1024xf32>
    %220 = vector.broadcast %218 : vector<1x1024xf32> to vector<4x1024xf32>
    %221 = arith.mulf %219, %220 : vector<4x1024xf32>
    %222 = arith.addf %216, %221 : vector<4x1024xf32>
    %223 = vector.extract_strided_slice %38 {offsets = [0, 29], sizes = [4, 1], strides = [1, 1]} : vector<4x36xf32> to vector<4x1xf32>
    %224 = vector.extract_strided_slice %3 {offsets = [1, 0], sizes = [1, 1024], strides = [1, 1]} : vector<8x1024xf32> to vector<1x1024xf32>
    %225 = vector.broadcast %223 : vector<4x1xf32> to vector<4x1024xf32>
    %226 = vector.broadcast %224 : vector<1x1024xf32> to vector<4x1024xf32>
    %227 = arith.mulf %225, %226 : vector<4x1024xf32>
    %228 = arith.addf %222, %227 : vector<4x1024xf32>
    %229 = vector.extract_strided_slice %38 {offsets = [0, 30], sizes = [4, 1], strides = [1, 1]} : vector<4x36xf32> to vector<4x1xf32>
    %230 = vector.extract_strided_slice %3 {offsets = [2, 0], sizes = [1, 1024], strides = [1, 1]} : vector<8x1024xf32> to vector<1x1024xf32>
    %231 = vector.broadcast %229 : vector<4x1xf32> to vector<4x1024xf32>
    %232 = vector.broadcast %230 : vector<1x1024xf32> to vector<4x1024xf32>
    %233 = arith.mulf %231, %232 : vector<4x1024xf32>
    %234 = arith.addf %228, %233 : vector<4x1024xf32>
    %235 = vector.extract_strided_slice %38 {offsets = [0, 31], sizes = [4, 1], strides = [1, 1]} : vector<4x36xf32> to vector<4x1xf32>
    %236 = vector.extract_strided_slice %3 {offsets = [3, 0], sizes = [1, 1024], strides = [1, 1]} : vector<8x1024xf32> to vector<1x1024xf32>
    %237 = vector.broadcast %235 : vector<4x1xf32> to vector<4x1024xf32>
    %238 = vector.broadcast %236 : vector<1x1024xf32> to vector<4x1024xf32>
    %239 = arith.mulf %237, %238 : vector<4x1024xf32>
    %240 = arith.addf %234, %239 : vector<4x1024xf32>
    %241 = vector.extract_strided_slice %38 {offsets = [0, 32], sizes = [4, 1], strides = [1, 1]} : vector<4x36xf32> to vector<4x1xf32>
    %242 = vector.extract_strided_slice %37 {offsets = [0, 0], sizes = [1, 1024], strides = [1, 1]} : vector<8x1024xf32> to vector<1x1024xf32>
    %243 = vector.broadcast %241 : vector<4x1xf32> to vector<4x1024xf32>
    %244 = vector.broadcast %242 : vector<1x1024xf32> to vector<4x1024xf32>
    %245 = arith.mulf %243, %244 : vector<4x1024xf32>
    %246 = arith.addf %240, %245 : vector<4x1024xf32>
    %247 = vector.extract_strided_slice %38 {offsets = [0, 33], sizes = [4, 1], strides = [1, 1]} : vector<4x36xf32> to vector<4x1xf32>
    %248 = vector.extract_strided_slice %37 {offsets = [1, 0], sizes = [1, 1024], strides = [1, 1]} : vector<8x1024xf32> to vector<1x1024xf32>
    %249 = vector.broadcast %247 : vector<4x1xf32> to vector<4x1024xf32>
    %250 = vector.broadcast %248 : vector<1x1024xf32> to vector<4x1024xf32>
    %251 = arith.mulf %249, %250 : vector<4x1024xf32>
    %252 = arith.addf %246, %251 : vector<4x1024xf32>
    %253 = vector.extract_strided_slice %38 {offsets = [0, 34], sizes = [4, 1], strides = [1, 1]} : vector<4x36xf32> to vector<4x1xf32>
    %254 = vector.extract_strided_slice %37 {offsets = [2, 0], sizes = [1, 1024], strides = [1, 1]} : vector<8x1024xf32> to vector<1x1024xf32>
    %255 = vector.broadcast %253 : vector<4x1xf32> to vector<4x1024xf32>
    %256 = vector.broadcast %254 : vector<1x1024xf32> to vector<4x1024xf32>
    %257 = arith.mulf %255, %256 : vector<4x1024xf32>
    %258 = arith.addf %252, %257 : vector<4x1024xf32>
    %259 = vector.extract_strided_slice %38 {offsets = [0, 35], sizes = [4, 1], strides = [1, 1]} : vector<4x36xf32> to vector<4x1xf32>
    %260 = vector.extract_strided_slice %37 {offsets = [3, 0], sizes = [1, 1024], strides = [1, 1]} : vector<8x1024xf32> to vector<1x1024xf32>
    %261 = vector.broadcast %259 : vector<4x1xf32> to vector<4x1024xf32>
    %262 = vector.broadcast %260 : vector<1x1024xf32> to vector<4x1024xf32>
    %263 = arith.mulf %261, %262 : vector<4x1024xf32>
    %264 = arith.addf %258, %263 : vector<4x1024xf32>
    %265 = vector.extract_strided_slice %264 {offsets = [0, 32], sizes = [4, 992], strides = [1, 1]} : vector<4x1024xf32> to vector<4x992xf32>
    %266 = tpu.concatenate %265, %40 in 1 : vector<4x992xf32>, vector<4x32xf32> -> vector<4x1024xf32>
    %267 = arith.addf %191, %266 : vector<4x1024xf32>
    %268 = vector.broadcast %39 : vector<4x1xf32> to vector<4x1024xf32>
    %269 = arith.addf %267, %268 : vector<4x1024xf32>
    %c0_20 = arith.constant 0 : index
    %c0_21 = arith.constant 0 : index
    %c0_22 = arith.constant 0 : index
    %270 = vector.load %arg5[%c0_20, %c0_21, %c0_22] : memref<2x4x1024xf32, #tpu.memory_space<vmem>>, vector<1x4x1024xf32>
    %271 = vector.shape_cast %270 : vector<1x4x1024xf32> to vector<4x1024xf32>
    %272 = vector.shape_cast %269 : vector<4x1024xf32> to vector<1x4x1024xf32>
    tpu.vector_store %arg5[%c0_20, %c0_21, %c0_22], %272 {strides = array<i32>} : memref<2x4x1024xf32, #tpu.memory_space<vmem>>, vector<1x4x1024xf32>,
    %cst_23 = arith.constant 0.000000e+00 : f32
    %273 = vector.broadcast %cst_23 : f32 to vector<4x1024xf32>
    %cst_24 = arith.constant 0.000000e+00 : f32
    %274 = vector.broadcast %cst_24 : f32 to vector<4x1024xf32>
    %275 = vector.extract_strided_slice %38 {offsets = [0, 0], sizes = [4, 1], strides = [1, 1]} : vector<4x36xf32> to vector<4x1xf32>
    %276 = vector.extract_strided_slice %29 {offsets = [4, 0], sizes = [1, 1024], strides = [1, 1]} : vector<8x1024xf32> to vector<1x1024xf32>
    %277 = vector.broadcast %275 : vector<4x1xf32> to vector<4x1024xf32>
    %278 = vector.broadcast %276 : vector<1x1024xf32> to vector<4x1024xf32>
    %279 = arith.mulf %277, %278 : vector<4x1024xf32>
    %280 = arith.addf %274, %279 : vector<4x1024xf32>
    %281 = vector.extract_strided_slice %38 {offsets = [0, 1], sizes = [4, 1], strides = [1, 1]} : vector<4x36xf32> to vector<4x1xf32>
    %282 = vector.extract_strided_slice %29 {offsets = [5, 0], sizes = [1, 1024], strides = [1, 1]} : vector<8x1024xf32> to vector<1x1024xf32>
    %283 = vector.broadcast %281 : vector<4x1xf32> to vector<4x1024xf32>
    %284 = vector.broadcast %282 : vector<1x1024xf32> to vector<4x1024xf32>
    %285 = arith.mulf %283, %284 : vector<4x1024xf32>
    %286 = arith.addf %280, %285 : vector<4x1024xf32>
    %287 = vector.extract_strided_slice %38 {offsets = [0, 2], sizes = [4, 1], strides = [1, 1]} : vector<4x36xf32> to vector<4x1xf32>
    %288 = vector.extract_strided_slice %29 {offsets = [6, 0], sizes = [1, 1024], strides = [1, 1]} : vector<8x1024xf32> to vector<1x1024xf32>
    %289 = vector.broadcast %287 : vector<4x1xf32> to vector<4x1024xf32>
    %290 = vector.broadcast %288 : vector<1x1024xf32> to vector<4x1024xf32>
    %291 = arith.mulf %289, %290 : vector<4x1024xf32>
    %292 = arith.addf %286, %291 : vector<4x1024xf32>
    %293 = vector.extract_strided_slice %38 {offsets = [0, 3], sizes = [4, 1], strides = [1, 1]} : vector<4x36xf32> to vector<4x1xf32>
    %294 = vector.extract_strided_slice %29 {offsets = [7, 0], sizes = [1, 1024], strides = [1, 1]} : vector<8x1024xf32> to vector<1x1024xf32>
    %295 = vector.broadcast %293 : vector<4x1xf32> to vector<4x1024xf32>
    %296 = vector.broadcast %294 : vector<1x1024xf32> to vector<4x1024xf32>
    %297 = arith.mulf %295, %296 : vector<4x1024xf32>
    %298 = arith.addf %292, %297 : vector<4x1024xf32>
    %299 = vector.extract_strided_slice %38 {offsets = [0, 4], sizes = [4, 1], strides = [1, 1]} : vector<4x36xf32> to vector<4x1xf32>
    %300 = vector.extract_strided_slice %3 {offsets = [4, 0], sizes = [1, 1024], strides = [1, 1]} : vector<8x1024xf32> to vector<1x1024xf32>
    %301 = vector.broadcast %299 : vector<4x1xf32> to vector<4x1024xf32>
    %302 = vector.broadcast %300 : vector<1x1024xf32> to vector<4x1024xf32>
    %303 = arith.mulf %301, %302 : vector<4x1024xf32>
    %304 = arith.addf %298, %303 : vector<4x1024xf32>
    %305 = vector.extract_strided_slice %38 {offsets = [0, 5], sizes = [4, 1], strides = [1, 1]} : vector<4x36xf32> to vector<4x1xf32>
    %306 = vector.extract_strided_slice %3 {offsets = [5, 0], sizes = [1, 1024], strides = [1, 1]} : vector<8x1024xf32> to vector<1x1024xf32>
    %307 = vector.broadcast %305 : vector<4x1xf32> to vector<4x1024xf32>
    %308 = vector.broadcast %306 : vector<1x1024xf32> to vector<4x1024xf32>
    %309 = arith.mulf %307, %308 : vector<4x1024xf32>
    %310 = arith.addf %304, %309 : vector<4x1024xf32>
    %311 = vector.extract_strided_slice %38 {offsets = [0, 6], sizes = [4, 1], strides = [1, 1]} : vector<4x36xf32> to vector<4x1xf32>
    %312 = vector.extract_strided_slice %3 {offsets = [6, 0], sizes = [1, 1024], strides = [1, 1]} : vector<8x1024xf32> to vector<1x1024xf32>
    %313 = vector.broadcast %311 : vector<4x1xf32> to vector<4x1024xf32>
    %314 = vector.broadcast %312 : vector<1x1024xf32> to vector<4x1024xf32>
    %315 = arith.mulf %313, %314 : vector<4x1024xf32>
    %316 = arith.addf %310, %315 : vector<4x1024xf32>
    %317 = vector.extract_strided_slice %38 {offsets = [0, 7], sizes = [4, 1], strides = [1, 1]} : vector<4x36xf32> to vector<4x1xf32>
    %318 = vector.extract_strided_slice %3 {offsets = [7, 0], sizes = [1, 1024], strides = [1, 1]} : vector<8x1024xf32> to vector<1x1024xf32>
    %319 = vector.broadcast %317 : vector<4x1xf32> to vector<4x1024xf32>
    %320 = vector.broadcast %318 : vector<1x1024xf32> to vector<4x1024xf32>
    %321 = arith.mulf %319, %320 : vector<4x1024xf32>
    %322 = arith.addf %316, %321 : vector<4x1024xf32>
    %323 = vector.extract_strided_slice %38 {offsets = [0, 8], sizes = [4, 1], strides = [1, 1]} : vector<4x36xf32> to vector<4x1xf32>
    %324 = vector.extract_strided_slice %37 {offsets = [4, 0], sizes = [1, 1024], strides = [1, 1]} : vector<8x1024xf32> to vector<1x1024xf32>
    %325 = vector.broadcast %323 : vector<4x1xf32> to vector<4x1024xf32>
    %326 = vector.broadcast %324 : vector<1x1024xf32> to vector<4x1024xf32>
    %327 = arith.mulf %325, %326 : vector<4x1024xf32>
    %328 = arith.addf %322, %327 : vector<4x1024xf32>
    %329 = vector.extract_strided_slice %38 {offsets = [0, 9], sizes = [4, 1], strides = [1, 1]} : vector<4x36xf32> to vector<4x1xf32>
    %330 = vector.extract_strided_slice %37 {offsets = [5, 0], sizes = [1, 1024], strides = [1, 1]} : vector<8x1024xf32> to vector<1x1024xf32>
    %331 = vector.broadcast %329 : vector<4x1xf32> to vector<4x1024xf32>
    %332 = vector.broadcast %330 : vector<1x1024xf32> to vector<4x1024xf32>
    %333 = arith.mulf %331, %332 : vector<4x1024xf32>
    %334 = arith.addf %328, %333 : vector<4x1024xf32>
    %335 = vector.extract_strided_slice %38 {offsets = [0, 10], sizes = [4, 1], strides = [1, 1]} : vector<4x36xf32> to vector<4x1xf32>
    %336 = vector.extract_strided_slice %37 {offsets = [6, 0], sizes = [1, 1024], strides = [1, 1]} : vector<8x1024xf32> to vector<1x1024xf32>
    %337 = vector.broadcast %335 : vector<4x1xf32> to vector<4x1024xf32>
    %338 = vector.broadcast %336 : vector<1x1024xf32> to vector<4x1024xf32>
    %339 = arith.mulf %337, %338 : vector<4x1024xf32>
    %340 = arith.addf %334, %339 : vector<4x1024xf32>
    %341 = vector.extract_strided_slice %38 {offsets = [0, 11], sizes = [4, 1], strides = [1, 1]} : vector<4x36xf32> to vector<4x1xf32>
    %342 = vector.extract_strided_slice %37 {offsets = [7, 0], sizes = [1, 1024], strides = [1, 1]} : vector<8x1024xf32> to vector<1x1024xf32>
    %343 = vector.broadcast %341 : vector<4x1xf32> to vector<4x1024xf32>
    %344 = vector.broadcast %342 : vector<1x1024xf32> to vector<4x1024xf32>
    %345 = arith.mulf %343, %344 : vector<4x1024xf32>
    %346 = arith.addf %340, %345 : vector<4x1024xf32>
    %347 = vector.extract_strided_slice %346 {offsets = [0, 0], sizes = [4, 992], strides = [1, 1]} : vector<4x1024xf32> to vector<4x992xf32>
    %348 = tpu.concatenate %40, %347 in 1 : vector<4x32xf32>, vector<4x992xf32> -> vector<4x1024xf32>
    %349 = arith.addf %273, %348 : vector<4x1024xf32>
    %cst_25 = arith.constant 0.000000e+00 : f32
    %350 = vector.broadcast %cst_25 : f32 to vector<4x1024xf32>
    %351 = vector.extract_strided_slice %38 {offsets = [0, 12], sizes = [4, 1], strides = [1, 1]} : vector<4x36xf32> to vector<4x1xf32>
    %352 = vector.extract_strided_slice %29 {offsets = [4, 0], sizes = [1, 1024], strides = [1, 1]} : vector<8x1024xf32> to vector<1x1024xf32>
    %353 = vector.broadcast %351 : vector<4x1xf32> to vector<4x1024xf32>
    %354 = vector.broadcast %352 : vector<1x1024xf32> to vector<4x1024xf32>
    %355 = arith.mulf %353, %354 : vector<4x1024xf32>
    %356 = arith.addf %350, %355 : vector<4x1024xf32>
    %357 = vector.extract_strided_slice %38 {offsets = [0, 13], sizes = [4, 1], strides = [1, 1]} : vector<4x36xf32> to vector<4x1xf32>
    %358 = vector.extract_strided_slice %29 {offsets = [5, 0], sizes = [1, 1024], strides = [1, 1]} : vector<8x1024xf32> to vector<1x1024xf32>
    %359 = vector.broadcast %357 : vector<4x1xf32> to vector<4x1024xf32>
    %360 = vector.broadcast %358 : vector<1x1024xf32> to vector<4x1024xf32>
    %361 = arith.mulf %359, %360 : vector<4x1024xf32>
    %362 = arith.addf %356, %361 : vector<4x1024xf32>
    %363 = vector.extract_strided_slice %38 {offsets = [0, 14], sizes = [4, 1], strides = [1, 1]} : vector<4x36xf32> to vector<4x1xf32>
    %364 = vector.extract_strided_slice %29 {offsets = [6, 0], sizes = [1, 1024], strides = [1, 1]} : vector<8x1024xf32> to vector<1x1024xf32>
    %365 = vector.broadcast %363 : vector<4x1xf32> to vector<4x1024xf32>
    %366 = vector.broadcast %364 : vector<1x1024xf32> to vector<4x1024xf32>
    %367 = arith.mulf %365, %366 : vector<4x1024xf32>
    %368 = arith.addf %362, %367 : vector<4x1024xf32>
    %369 = vector.extract_strided_slice %38 {offsets = [0, 15], sizes = [4, 1], strides = [1, 1]} : vector<4x36xf32> to vector<4x1xf32>
    %370 = vector.extract_strided_slice %29 {offsets = [7, 0], sizes = [1, 1024], strides = [1, 1]} : vector<8x1024xf32> to vector<1x1024xf32>
    %371 = vector.broadcast %369 : vector<4x1xf32> to vector<4x1024xf32>
    %372 = vector.broadcast %370 : vector<1x1024xf32> to vector<4x1024xf32>
    %373 = arith.mulf %371, %372 : vector<4x1024xf32>
    %374 = arith.addf %368, %373 : vector<4x1024xf32>
    %375 = vector.extract_strided_slice %38 {offsets = [0, 16], sizes = [4, 1], strides = [1, 1]} : vector<4x36xf32> to vector<4x1xf32>
    %376 = vector.extract_strided_slice %3 {offsets = [4, 0], sizes = [1, 1024], strides = [1, 1]} : vector<8x1024xf32> to vector<1x1024xf32>
    %377 = vector.broadcast %375 : vector<4x1xf32> to vector<4x1024xf32>
    %378 = vector.broadcast %376 : vector<1x1024xf32> to vector<4x1024xf32>
    %379 = arith.mulf %377, %378 : vector<4x1024xf32>
    %380 = arith.addf %374, %379 : vector<4x1024xf32>
    %381 = vector.extract_strided_slice %38 {offsets = [0, 17], sizes = [4, 1], strides = [1, 1]} : vector<4x36xf32> to vector<4x1xf32>
    %382 = vector.extract_strided_slice %3 {offsets = [5, 0], sizes = [1, 1024], strides = [1, 1]} : vector<8x1024xf32> to vector<1x1024xf32>
    %383 = vector.broadcast %381 : vector<4x1xf32> to vector<4x1024xf32>
    %384 = vector.broadcast %382 : vector<1x1024xf32> to vector<4x1024xf32>
    %385 = arith.mulf %383, %384 : vector<4x1024xf32>
    %386 = arith.addf %380, %385 : vector<4x1024xf32>
    %387 = vector.extract_strided_slice %38 {offsets = [0, 18], sizes = [4, 1], strides = [1, 1]} : vector<4x36xf32> to vector<4x1xf32>
    %388 = vector.extract_strided_slice %3 {offsets = [6, 0], sizes = [1, 1024], strides = [1, 1]} : vector<8x1024xf32> to vector<1x1024xf32>
    %389 = vector.broadcast %387 : vector<4x1xf32> to vector<4x1024xf32>
    %390 = vector.broadcast %388 : vector<1x1024xf32> to vector<4x1024xf32>
    %391 = arith.mulf %389, %390 : vector<4x1024xf32>
    %392 = arith.addf %386, %391 : vector<4x1024xf32>
    %393 = vector.extract_strided_slice %38 {offsets = [0, 19], sizes = [4, 1], strides = [1, 1]} : vector<4x36xf32> to vector<4x1xf32>
    %394 = vector.extract_strided_slice %3 {offsets = [7, 0], sizes = [1, 1024], strides = [1, 1]} : vector<8x1024xf32> to vector<1x1024xf32>
    %395 = vector.broadcast %393 : vector<4x1xf32> to vector<4x1024xf32>
    %396 = vector.broadcast %394 : vector<1x1024xf32> to vector<4x1024xf32>
    %397 = arith.mulf %395, %396 : vector<4x1024xf32>
    %398 = arith.addf %392, %397 : vector<4x1024xf32>
    %399 = vector.extract_strided_slice %38 {offsets = [0, 20], sizes = [4, 1], strides = [1, 1]} : vector<4x36xf32> to vector<4x1xf32>
    %400 = vector.extract_strided_slice %37 {offsets = [4, 0], sizes = [1, 1024], strides = [1, 1]} : vector<8x1024xf32> to vector<1x1024xf32>
    %401 = vector.broadcast %399 : vector<4x1xf32> to vector<4x1024xf32>
    %402 = vector.broadcast %400 : vector<1x1024xf32> to vector<4x1024xf32>
    %403 = arith.mulf %401, %402 : vector<4x1024xf32>
    %404 = arith.addf %398, %403 : vector<4x1024xf32>
    %405 = vector.extract_strided_slice %38 {offsets = [0, 21], sizes = [4, 1], strides = [1, 1]} : vector<4x36xf32> to vector<4x1xf32>
    %406 = vector.extract_strided_slice %37 {offsets = [5, 0], sizes = [1, 1024], strides = [1, 1]} : vector<8x1024xf32> to vector<1x1024xf32>
    %407 = vector.broadcast %405 : vector<4x1xf32> to vector<4x1024xf32>
    %408 = vector.broadcast %406 : vector<1x1024xf32> to vector<4x1024xf32>
    %409 = arith.mulf %407, %408 : vector<4x1024xf32>
    %410 = arith.addf %404, %409 : vector<4x1024xf32>
    %411 = vector.extract_strided_slice %38 {offsets = [0, 22], sizes = [4, 1], strides = [1, 1]} : vector<4x36xf32> to vector<4x1xf32>
    %412 = vector.extract_strided_slice %37 {offsets = [6, 0], sizes = [1, 1024], strides = [1, 1]} : vector<8x1024xf32> to vector<1x1024xf32>
    %413 = vector.broadcast %411 : vector<4x1xf32> to vector<4x1024xf32>
    %414 = vector.broadcast %412 : vector<1x1024xf32> to vector<4x1024xf32>
    %415 = arith.mulf %413, %414 : vector<4x1024xf32>
    %416 = arith.addf %410, %415 : vector<4x1024xf32>
    %417 = vector.extract_strided_slice %38 {offsets = [0, 23], sizes = [4, 1], strides = [1, 1]} : vector<4x36xf32> to vector<4x1xf32>
    %418 = vector.extract_strided_slice %37 {offsets = [7, 0], sizes = [1, 1024], strides = [1, 1]} : vector<8x1024xf32> to vector<1x1024xf32>
    %419 = vector.broadcast %417 : vector<4x1xf32> to vector<4x1024xf32>
    %420 = vector.broadcast %418 : vector<1x1024xf32> to vector<4x1024xf32>
    %421 = arith.mulf %419, %420 : vector<4x1024xf32>
    %422 = arith.addf %416, %421 : vector<4x1024xf32>
    %423 = arith.addf %349, %422 : vector<4x1024xf32>
    %cst_26 = arith.constant 0.000000e+00 : f32
    %424 = vector.broadcast %cst_26 : f32 to vector<4x1024xf32>
    %425 = vector.extract_strided_slice %38 {offsets = [0, 24], sizes = [4, 1], strides = [1, 1]} : vector<4x36xf32> to vector<4x1xf32>
    %426 = vector.extract_strided_slice %29 {offsets = [4, 0], sizes = [1, 1024], strides = [1, 1]} : vector<8x1024xf32> to vector<1x1024xf32>
    %427 = vector.broadcast %425 : vector<4x1xf32> to vector<4x1024xf32>
    %428 = vector.broadcast %426 : vector<1x1024xf32> to vector<4x1024xf32>
    %429 = arith.mulf %427, %428 : vector<4x1024xf32>
    %430 = arith.addf %424, %429 : vector<4x1024xf32>
    %431 = vector.extract_strided_slice %38 {offsets = [0, 25], sizes = [4, 1], strides = [1, 1]} : vector<4x36xf32> to vector<4x1xf32>
    %432 = vector.extract_strided_slice %29 {offsets = [5, 0], sizes = [1, 1024], strides = [1, 1]} : vector<8x1024xf32> to vector<1x1024xf32>
    %433 = vector.broadcast %431 : vector<4x1xf32> to vector<4x1024xf32>
    %434 = vector.broadcast %432 : vector<1x1024xf32> to vector<4x1024xf32>
    %435 = arith.mulf %433, %434 : vector<4x1024xf32>
    %436 = arith.addf %430, %435 : vector<4x1024xf32>
    %437 = vector.extract_strided_slice %38 {offsets = [0, 26], sizes = [4, 1], strides = [1, 1]} : vector<4x36xf32> to vector<4x1xf32>
    %438 = vector.extract_strided_slice %29 {offsets = [6, 0], sizes = [1, 1024], strides = [1, 1]} : vector<8x1024xf32> to vector<1x1024xf32>
    %439 = vector.broadcast %437 : vector<4x1xf32> to vector<4x1024xf32>
    %440 = vector.broadcast %438 : vector<1x1024xf32> to vector<4x1024xf32>
    %441 = arith.mulf %439, %440 : vector<4x1024xf32>
    %442 = arith.addf %436, %441 : vector<4x1024xf32>
    %443 = vector.extract_strided_slice %38 {offsets = [0, 27], sizes = [4, 1], strides = [1, 1]} : vector<4x36xf32> to vector<4x1xf32>
    %444 = vector.extract_strided_slice %29 {offsets = [7, 0], sizes = [1, 1024], strides = [1, 1]} : vector<8x1024xf32> to vector<1x1024xf32>
    %445 = vector.broadcast %443 : vector<4x1xf32> to vector<4x1024xf32>
    %446 = vector.broadcast %444 : vector<1x1024xf32> to vector<4x1024xf32>
    %447 = arith.mulf %445, %446 : vector<4x1024xf32>
    %448 = arith.addf %442, %447 : vector<4x1024xf32>
    %449 = vector.extract_strided_slice %38 {offsets = [0, 28], sizes = [4, 1], strides = [1, 1]} : vector<4x36xf32> to vector<4x1xf32>
    %450 = vector.extract_strided_slice %3 {offsets = [4, 0], sizes = [1, 1024], strides = [1, 1]} : vector<8x1024xf32> to vector<1x1024xf32>
    %451 = vector.broadcast %449 : vector<4x1xf32> to vector<4x1024xf32>
    %452 = vector.broadcast %450 : vector<1x1024xf32> to vector<4x1024xf32>
    %453 = arith.mulf %451, %452 : vector<4x1024xf32>
    %454 = arith.addf %448, %453 : vector<4x1024xf32>
    %455 = vector.extract_strided_slice %38 {offsets = [0, 29], sizes = [4, 1], strides = [1, 1]} : vector<4x36xf32> to vector<4x1xf32>
    %456 = vector.extract_strided_slice %3 {offsets = [5, 0], sizes = [1, 1024], strides = [1, 1]} : vector<8x1024xf32> to vector<1x1024xf32>
    %457 = vector.broadcast %455 : vector<4x1xf32> to vector<4x1024xf32>
    %458 = vector.broadcast %456 : vector<1x1024xf32> to vector<4x1024xf32>
    %459 = arith.mulf %457, %458 : vector<4x1024xf32>
    %460 = arith.addf %454, %459 : vector<4x1024xf32>
    %461 = vector.extract_strided_slice %38 {offsets = [0, 30], sizes = [4, 1], strides = [1, 1]} : vector<4x36xf32> to vector<4x1xf32>
    %462 = vector.extract_strided_slice %3 {offsets = [6, 0], sizes = [1, 1024], strides = [1, 1]} : vector<8x1024xf32> to vector<1x1024xf32>
    %463 = vector.broadcast %461 : vector<4x1xf32> to vector<4x1024xf32>
    %464 = vector.broadcast %462 : vector<1x1024xf32> to vector<4x1024xf32>
    %465 = arith.mulf %463, %464 : vector<4x1024xf32>
    %466 = arith.addf %460, %465 : vector<4x1024xf32>
    %467 = vector.extract_strided_slice %38 {offsets = [0, 31], sizes = [4, 1], strides = [1, 1]} : vector<4x36xf32> to vector<4x1xf32>
    %468 = vector.extract_strided_slice %3 {offsets = [7, 0], sizes = [1, 1024], strides = [1, 1]} : vector<8x1024xf32> to vector<1x1024xf32>
    %469 = vector.broadcast %467 : vector<4x1xf32> to vector<4x1024xf32>
    %470 = vector.broadcast %468 : vector<1x1024xf32> to vector<4x1024xf32>
    %471 = arith.mulf %469, %470 : vector<4x1024xf32>
    %472 = arith.addf %466, %471 : vector<4x1024xf32>
    %473 = vector.extract_strided_slice %38 {offsets = [0, 32], sizes = [4, 1], strides = [1, 1]} : vector<4x36xf32> to vector<4x1xf32>
    %474 = vector.extract_strided_slice %37 {offsets = [4, 0], sizes = [1, 1024], strides = [1, 1]} : vector<8x1024xf32> to vector<1x1024xf32>
    %475 = vector.broadcast %473 : vector<4x1xf32> to vector<4x1024xf32>
    %476 = vector.broadcast %474 : vector<1x1024xf32> to vector<4x1024xf32>
    %477 = arith.mulf %475, %476 : vector<4x1024xf32>
    %478 = arith.addf %472, %477 : vector<4x1024xf32>
    %479 = vector.extract_strided_slice %38 {offsets = [0, 33], sizes = [4, 1], strides = [1, 1]} : vector<4x36xf32> to vector<4x1xf32>
    %480 = vector.extract_strided_slice %37 {offsets = [5, 0], sizes = [1, 1024], strides = [1, 1]} : vector<8x1024xf32> to vector<1x1024xf32>
    %481 = vector.broadcast %479 : vector<4x1xf32> to vector<4x1024xf32>
    %482 = vector.broadcast %480 : vector<1x1024xf32> to vector<4x1024xf32>
    %483 = arith.mulf %481, %482 : vector<4x1024xf32>
    %484 = arith.addf %478, %483 : vector<4x1024xf32>
    %485 = vector.extract_strided_slice %38 {offsets = [0, 34], sizes = [4, 1], strides = [1, 1]} : vector<4x36xf32> to vector<4x1xf32>
    %486 = vector.extract_strided_slice %37 {offsets = [6, 0], sizes = [1, 1024], strides = [1, 1]} : vector<8x1024xf32> to vector<1x1024xf32>
    %487 = vector.broadcast %485 : vector<4x1xf32> to vector<4x1024xf32>
    %488 = vector.broadcast %486 : vector<1x1024xf32> to vector<4x1024xf32>
    %489 = arith.mulf %487, %488 : vector<4x1024xf32>
    %490 = arith.addf %484, %489 : vector<4x1024xf32>
    %491 = vector.extract_strided_slice %38 {offsets = [0, 35], sizes = [4, 1], strides = [1, 1]} : vector<4x36xf32> to vector<4x1xf32>
    %492 = vector.extract_strided_slice %37 {offsets = [7, 0], sizes = [1, 1024], strides = [1, 1]} : vector<8x1024xf32> to vector<1x1024xf32>
    %493 = vector.broadcast %491 : vector<4x1xf32> to vector<4x1024xf32>
    %494 = vector.broadcast %492 : vector<1x1024xf32> to vector<4x1024xf32>
    %495 = arith.mulf %493, %494 : vector<4x1024xf32>
    %496 = arith.addf %490, %495 : vector<4x1024xf32>
    %497 = vector.extract_strided_slice %496 {offsets = [0, 32], sizes = [4, 992], strides = [1, 1]} : vector<4x1024xf32> to vector<4x992xf32>
    %498 = tpu.concatenate %497, %40 in 1 : vector<4x992xf32>, vector<4x32xf32> -> vector<4x1024xf32>
    %499 = arith.addf %423, %498 : vector<4x1024xf32>
    %500 = vector.broadcast %39 : vector<4x1xf32> to vector<4x1024xf32>
    %501 = arith.addf %499, %500 : vector<4x1024xf32>
    %c1 = arith.constant 1 : index
    %c0_27 = arith.constant 0 : index
    %c0_28 = arith.constant 0 : index
    %502 = vector.load %arg5[%c1, %c0_27, %c0_28] : memref<2x4x1024xf32, #tpu.memory_space<vmem>>, vector<1x4x1024xf32>
    %503 = vector.shape_cast %502 : vector<1x4x1024xf32> to vector<4x1024xf32>
    %504 = vector.shape_cast %501 : vector<4x1024xf32> to vector<1x4x1024xf32>
    tpu.vector_store %arg5[%c1, %c0_27, %c0_28], %504 {strides = array<i32>} : memref<2x4x1024xf32, #tpu.memory_space<vmem>>, vector<1x4x1024xf32>,
    return
  }
  func.func @transform_0(%arg0: i32) -> (i32, i32, i32) {
    %c0_i32 = arith.constant 0 : i32
    %c0_i32_0 = arith.constant 0 : i32
    %c0_i32_1 = arith.constant 0 : i32
    return %arg0, %c0_i32, %c0_i32_0 : i32, i32, i32
  }
  func.func @transform_1(%arg0: i32) -> (i32, i32) {
    %c0_i32 = arith.constant 0 : i32
    %c0_i32_0 = arith.constant 0 : i32
    %c0_i32_1 = arith.constant 0 : i32
    return %c0_i32, %c0_i32_0 : i32, i32
  }
  func.func @transform_2(%arg0: i32) -> (i32, i32) {
    %c0_i32 = arith.constant 0 : i32
    %c0_i32_0 = arith.constant 0 : i32
    %c0_i32_1 = arith.constant 0 : i32
    return %c0_i32, %c0_i32_0 : i32, i32
  }
  func.func @transform_3(%arg0: i32) -> (i32, i32) {
    %c0_i32 = arith.constant 0 : i32
    %c0_i32_0 = arith.constant 0 : i32
    %c0_i32_1 = arith.constant 0 : i32
    return %c0_i32, %c0_i32_0 : i32, i32
  }
  func.func @transform_4(%arg0: i32) -> (i32, i32, i32) {
    %c0_i32 = arith.constant 0 : i32
    %c0_i32_0 = arith.constant 0 : i32
    %c0_i32_1 = arith.constant 0 : i32
    return %arg0, %c0_i32, %c0_i32_0 : i32, i32, i32
  }
}

</mosaic_0001>

<llo_original>
// kernel: upsample_forward.1
$region0: #{upsample_forward.1}
  #allocation0 [shape = 'u32[]', space=smem, size = 0x4, offset = 0x4, fixed_abs, tag = 'smem constant byte address 0x4 - core index']
  #allocation1 [shape = 'u32[144,128]{1,0:T(1,128)}', space=vmem, size = 0x12000, scoped, tag = 'internal scratch']
  %s0 = inlined_call_operand.vmem [shape: f32[2,4,256], index: 0, kind: input, shape index: {}]
  %s1 = inlined_call_operand.vmem [shape: f32[256,1024], index: 1, kind: input, shape index: {}]
  %s2 = inlined_call_operand.vmem [shape: f32[4,36], index: 2, kind: input, shape index: {}]
  %s3 = inlined_call_operand.vmem [shape: f32[4,1], index: 3, kind: input, shape index: {}]
  %s4 = inlined_call_operand.vmem [shape: f32[2,4,1024], index: 4, kind: output, shape index: {}]
  %s5 = sld [smem:[#allocation0]]
  $region26: #{upsample_forward.1} parent=0
    _
  %s7 = ssub.s32 1, %s5
  %s8 = scalar_select 0, %s7, %s5
  // Predicated region
  $region2: #{upsample_forward.1} parent=0 // pred_check
    _
  $region3: #{upsample_forward.1} parent=0 // pred_check_branch
    %10 = sbr.rel (0) target = $region5
  $region4: #{upsample_forward.1} parent=0 // pred_region
    _
  $region5: #{upsample_forward.1} parent=0 // pred_fallthru
    _
  // Predicated region
  $region6: #{upsample_forward.1} parent=0 // pred_check
    _
  $region7: #{upsample_forward.1} parent=0 // pred_check_branch
    %12 = sbr.rel (0) target = $region9
  $region8: #{upsample_forward.1} parent=0 // pred_region
    _
  $region9: #{upsample_forward.1} parent=0 // pred_fallthru
    _
  // Predicated region
  $region10: #{upsample_forward.1} parent=0 // pred_check
    _
  $region11: #{upsample_forward.1} parent=0 // pred_check_branch
    %14 = sbr.rel (0) target = $region13
  $region12: #{upsample_forward.1} parent=0 // pred_region
    _
  $region13: #{upsample_forward.1} parent=0 // pred_fallthru
    _
  // Predicated region
  $region14: #{upsample_forward.1} parent=0 // pred_check
    _
  $region15: #{upsample_forward.1} parent=0 // pred_check_branch
    %16 = sbr.rel (0) target = $region17
  $region16: #{upsample_forward.1} parent=0 // pred_region
    _
  $region17: #{upsample_forward.1} parent=0 // pred_fallthru
    _
  %v17 = vld [vmem:[%s0] sm:$0xff]
  %v18 = vld [vmem:[%s0 + $0x8] sm:$0xff]
  %v19 = vld [vmem:[%s1] sm:$0xff]
  %v20 = vld [vmem:[%s1 + $0x8] sm:$0xff]
  %v21 = vld [vmem:[%s1 + $0x10] sm:$0xff]
  %v22 = vld [vmem:[%s1 + $0x18] sm:$0xff]
  %v23 = vld [vmem:[%s1 + $0x20] sm:$0xff]
  %v24 = vld [vmem:[%s1 + $0x28] sm:$0xff]
  %v25 = vld [vmem:[%s1 + $0x30] sm:$0xff]
  %v26 = vld [vmem:[%s1 + $0x38] sm:$0xff]
  %v27 = vld [vmem:[%s1 + $0x40] sm:$0xff]
  %v28 = vld [vmem:[%s1 + $0x48] sm:$0xff]
  %v29 = vld [vmem:[%s1 + $0x50] sm:$0xff]
  %v30 = vld [vmem:[%s1 + $0x58] sm:$0xff]
  %v31 = vld [vmem:[%s1 + $0x60] sm:$0xff]
  %v32 = vld [vmem:[%s1 + $0x68] sm:$0xff]
  %v33 = vld [vmem:[%s1 + $0x70] sm:$0xff]
  %v34 = vld [vmem:[%s1 + $0x78] sm:$0xff]
  %v35 = vld [vmem:[%s1 + $0x80] sm:$0xff]
  %v36 = vld [vmem:[%s1 + $0x88] sm:$0xff]
  %v37 = vld [vmem:[%s1 + $0x90] sm:$0xff]
  %v38 = vld [vmem:[%s1 + $0x98] sm:$0xff]
  %v39 = vld [vmem:[%s1 + $0xa0] sm:$0xff]
  %v40 = vld [vmem:[%s1 + $0xa8] sm:$0xff]
  %v41 = vld [vmem:[%s1 + $0xb0] sm:$0xff]
  %v42 = vld [vmem:[%s1 + $0xb8] sm:$0xff]
  %v43 = vld [vmem:[%s1 + $0xc0] sm:$0xff]
  %v44 = vld [vmem:[%s1 + $0xc8] sm:$0xff]
  %v45 = vld [vmem:[%s1 + $0xd0] sm:$0xff]
  %v46 = vld [vmem:[%s1 + $0xd8] sm:$0xff]
  %v47 = vld [vmem:[%s1 + $0xe0] sm:$0xff]
  %v48 = vld [vmem:[%s1 + $0xe8] sm:$0xff]
  %v49 = vld [vmem:[%s1 + $0xf0] sm:$0xff]
  %v50 = vld [vmem:[%s1 + $0xf8] sm:$0xff]
  %v51 = vld [vmem:[%s1 + $0x100] sm:$0xff]
  %v52 = vld [vmem:[%s1 + $0x108] sm:$0xff]
  %v53 = vld [vmem:[%s1 + $0x110] sm:$0xff]
  %v54 = vld [vmem:[%s1 + $0x118] sm:$0xff]
  %v55 = vld [vmem:[%s1 + $0x120] sm:$0xff]
  %v56 = vld [vmem:[%s1 + $0x128] sm:$0xff]
  %v57 = vld [vmem:[%s1 + $0x130] sm:$0xff]
  %v58 = vld [vmem:[%s1 + $0x138] sm:$0xff]
  %v59 = vld [vmem:[%s1 + $0x140] sm:$0xff]
  %v60 = vld [vmem:[%s1 + $0x148] sm:$0xff]
  %v61 = vld [vmem:[%s1 + $0x150] sm:$0xff]
  %v62 = vld [vmem:[%s1 + $0x158] sm:$0xff]
  %v63 = vld [vmem:[%s1 + $0x160] sm:$0xff]
  %v64 = vld [vmem:[%s1 + $0x168] sm:$0xff]
  %v65 = vld [vmem:[%s1 + $0x170] sm:$0xff]
  %v66 = vld [vmem:[%s1 + $0x178] sm:$0xff]
  %v67 = vld [vmem:[%s1 + $0x180] sm:$0xff]
  %v68 = vld [vmem:[%s1 + $0x188] sm:$0xff]
  %v69 = vld [vmem:[%s1 + $0x190] sm:$0xff]
  %v70 = vld [vmem:[%s1 + $0x198] sm:$0xff]
  %v71 = vld [vmem:[%s1 + $0x1a0] sm:$0xff]
  %v72 = vld [vmem:[%s1 + $0x1a8] sm:$0xff]
  %v73 = vld [vmem:[%s1 + $0x1b0] sm:$0xff]
  %v74 = vld [vmem:[%s1 + $0x1b8] sm:$0xff]
  %v75 = vld [vmem:[%s1 + $0x1c0] sm:$0xff]
  %v76 = vld [vmem:[%s1 + $0x1c8] sm:$0xff]
  %v77 = vld [vmem:[%s1 + $0x1d0] sm:$0xff]
  %v78 = vld [vmem:[%s1 + $0x1d8] sm:$0xff]
  %v79 = vld [vmem:[%s1 + $0x1e0] sm:$0xff]
  %v80 = vld [vmem:[%s1 + $0x1e8] sm:$0xff]
  %v81 = vld [vmem:[%s1 + $0x1f0] sm:$0xff]
  %v82 = vld [vmem:[%s1 + $0x1f8] sm:$0xff]
  %v83 = vld [vmem:[%s1 + $0x200] sm:$0xff]
  %v84 = vld [vmem:[%s1 + $0x208] sm:$0xff]
  %v85 = vld [vmem:[%s1 + $0x210] sm:$0xff]
  %v86 = vld [vmem:[%s1 + $0x218] sm:$0xff]
  %v87 = vld [vmem:[%s1 + $0x220] sm:$0xff]
  %v88 = vld [vmem:[%s1 + $0x228] sm:$0xff]
  %v89 = vld [vmem:[%s1 + $0x230] sm:$0xff]
  %v90 = vld [vmem:[%s1 + $0x238] sm:$0xff]
  %v91 = vld [vmem:[%s1 + $0x240] sm:$0xff]
  %v92 = vld [vmem:[%s1 + $0x248] sm:$0xff]
  %v93 = vld [vmem:[%s1 + $0x250] sm:$0xff]
  %v94 = vld [vmem:[%s1 + $0x258] sm:$0xff]
  %v95 = vld [vmem:[%s1 + $0x260] sm:$0xff]
  %v96 = vld [vmem:[%s1 + $0x268] sm:$0xff]
  %v97 = vld [vmem:[%s1 + $0x270] sm:$0xff]
  %v98 = vld [vmem:[%s1 + $0x278] sm:$0xff]
  %v99 = vld [vmem:[%s1 + $0x280] sm:$0xff]
  %v100 = vld [vmem:[%s1 + $0x288] sm:$0xff]
  %v101 = vld [vmem:[%s1 + $0x290] sm:$0xff]
  %v102 = vld [vmem:[%s1 + $0x298] sm:$0xff]
  %v103 = vld [vmem:[%s1 + $0x2a0] sm:$0xff]
  %v104 = vld [vmem:[%s1 + $0x2a8] sm:$0xff]
  %v105 = vld [vmem:[%s1 + $0x2b0] sm:$0xff]
  %v106 = vld [vmem:[%s1 + $0x2b8] sm:$0xff]
  %v107 = vld [vmem:[%s1 + $0x2c0] sm:$0xff]
  %v108 = vld [vmem:[%s1 + $0x2c8] sm:$0xff]
  %v109 = vld [vmem:[%s1 + $0x2d0] sm:$0xff]
  %v110 = vld [vmem:[%s1 + $0x2d8] sm:$0xff]
  %v111 = vld [vmem:[%s1 + $0x2e0] sm:$0xff]
  %v112 = vld [vmem:[%s1 + $0x2e8] sm:$0xff]
  %v113 = vld [vmem:[%s1 + $0x2f0] sm:$0xff]
  %v114 = vld [vmem:[%s1 + $0x2f8] sm:$0xff]
  %v115 = vld [vmem:[%s1 + $0x300] sm:$0xff]
  %v116 = vld [vmem:[%s1 + $0x308] sm:$0xff]
  %v117 = vld [vmem:[%s1 + $0x310] sm:$0xff]
  %v118 = vld [vmem:[%s1 + $0x318] sm:$0xff]
  %v119 = vld [vmem:[%s1 + $0x320] sm:$0xff]
  %v120 = vld [vmem:[%s1 + $0x328] sm:$0xff]
  %v121 = vld [vmem:[%s1 + $0x330] sm:$0xff]
  %v122 = vld [vmem:[%s1 + $0x338] sm:$0xff]
  %v123 = vld [vmem:[%s1 + $0x340] sm:$0xff]
  %v124 = vld [vmem:[%s1 + $0x348] sm:$0xff]
  %v125 = vld [vmem:[%s1 + $0x350] sm:$0xff]
  %v126 = vld [vmem:[%s1 + $0x358] sm:$0xff]
  %v127 = vld [vmem:[%s1 + $0x360] sm:$0xff]
  %v128 = vld [vmem:[%s1 + $0x368] sm:$0xff]
  %v129 = vld [vmem:[%s1 + $0x370] sm:$0xff]
  %v130 = vld [vmem:[%s1 + $0x378] sm:$0xff]
  %v131 = vld [vmem:[%s1 + $0x380] sm:$0xff]
  %v132 = vld [vmem:[%s1 + $0x388] sm:$0xff]
  %v133 = vld [vmem:[%s1 + $0x390] sm:$0xff]
  %v134 = vld [vmem:[%s1 + $0x398] sm:$0xff]
  %v135 = vld [vmem:[%s1 + $0x3a0] sm:$0xff]
  %v136 = vld [vmem:[%s1 + $0x3a8] sm:$0xff]
  %v137 = vld [vmem:[%s1 + $0x3b0] sm:$0xff]
  %v138 = vld [vmem:[%s1 + $0x3b8] sm:$0xff]
  %v139 = vld [vmem:[%s1 + $0x3c0] sm:$0xff]
  %v140 = vld [vmem:[%s1 + $0x3c8] sm:$0xff]
  %v141 = vld [vmem:[%s1 + $0x3d0] sm:$0xff]
  %v142 = vld [vmem:[%s1 + $0x3d8] sm:$0xff]
  %v143 = vld [vmem:[%s1 + $0x3e0] sm:$0xff]
  %v144 = vld [vmem:[%s1 + $0x3e8] sm:$0xff]
  %v145 = vld [vmem:[%s1 + $0x3f0] sm:$0xff]
  %v146 = vld [vmem:[%s1 + $0x3f8] sm:$0xff]
  %v147 = vld [vmem:[%s1 + $0x400] sm:$0xff]
  %v148 = vld [vmem:[%s1 + $0x408] sm:$0xff]
  %v149 = vld [vmem:[%s1 + $0x410] sm:$0xff]
  %v150 = vld [vmem:[%s1 + $0x418] sm:$0xff]
  %v151 = vld [vmem:[%s1 + $0x420] sm:$0xff]
  %v152 = vld [vmem:[%s1 + $0x428] sm:$0xff]
  %v153 = vld [vmem:[%s1 + $0x430] sm:$0xff]
  %v154 = vld [vmem:[%s1 + $0x438] sm:$0xff]
  %v155 = vld [vmem:[%s1 + $0x440] sm:$0xff]
  %v156 = vld [vmem:[%s1 + $0x448] sm:$0xff]
  %v157 = vld [vmem:[%s1 + $0x450] sm:$0xff]
  %v158 = vld [vmem:[%s1 + $0x458] sm:$0xff]
  %v159 = vld [vmem:[%s1 + $0x460] sm:$0xff]
  %v160 = vld [vmem:[%s1 + $0x468] sm:$0xff]
  %v161 = vld [vmem:[%s1 + $0x470] sm:$0xff]
  %v162 = vld [vmem:[%s1 + $0x478] sm:$0xff]
  %v163 = vld [vmem:[%s1 + $0x480] sm:$0xff]
  %v164 = vld [vmem:[%s1 + $0x488] sm:$0xff]
  %v165 = vld [vmem:[%s1 + $0x490] sm:$0xff]
  %v166 = vld [vmem:[%s1 + $0x498] sm:$0xff]
  %v167 = vld [vmem:[%s1 + $0x4a0] sm:$0xff]
  %v168 = vld [vmem:[%s1 + $0x4a8] sm:$0xff]
  %v169 = vld [vmem:[%s1 + $0x4b0] sm:$0xff]
  %v170 = vld [vmem:[%s1 + $0x4b8] sm:$0xff]
  %v171 = vld [vmem:[%s1 + $0x4c0] sm:$0xff]
  %v172 = vld [vmem:[%s1 + $0x4c8] sm:$0xff]
  %v173 = vld [vmem:[%s1 + $0x4d0] sm:$0xff]
  %v174 = vld [vmem:[%s1 + $0x4d8] sm:$0xff]
  %v175 = vld [vmem:[%s1 + $0x4e0] sm:$0xff]
  %v176 = vld [vmem:[%s1 + $0x4e8] sm:$0xff]
  %v177 = vld [vmem:[%s1 + $0x4f0] sm:$0xff]
  %v178 = vld [vmem:[%s1 + $0x4f8] sm:$0xff]
  %v179 = vld [vmem:[%s1 + $0x500] sm:$0xff]
  %v180 = vld [vmem:[%s1 + $0x508] sm:$0xff]
  %v181 = vld [vmem:[%s1 + $0x510] sm:$0xff]
  %v182 = vld [vmem:[%s1 + $0x518] sm:$0xff]
  %v183 = vld [vmem:[%s1 + $0x520] sm:$0xff]
  %v184 = vld [vmem:[%s1 + $0x528] sm:$0xff]
  %v185 = vld [vmem:[%s1 + $0x530] sm:$0xff]
  %v186 = vld [vmem:[%s1 + $0x538] sm:$0xff]
  %v187 = vld [vmem:[%s1 + $0x540] sm:$0xff]
  %v188 = vld [vmem:[%s1 + $0x548] sm:$0xff]
  %v189 = vld [vmem:[%s1 + $0x550] sm:$0xff]
  %v190 = vld [vmem:[%s1 + $0x558] sm:$0xff]
  %v191 = vld [vmem:[%s1 + $0x560] sm:$0xff]
  %v192 = vld [vmem:[%s1 + $0x568] sm:$0xff]
  %v193 = vld [vmem:[%s1 + $0x570] sm:$0xff]
  %v194 = vld [vmem:[%s1 + $0x578] sm:$0xff]
  %v195 = vld [vmem:[%s1 + $0x580] sm:$0xff]
  %v196 = vld [vmem:[%s1 + $0x588] sm:$0xff]
  %v197 = vld [vmem:[%s1 + $0x590] sm:$0xff]
  %v198 = vld [vmem:[%s1 + $0x598] sm:$0xff]
  %v199 = vld [vmem:[%s1 + $0x5a0] sm:$0xff]
  %v200 = vld [vmem:[%s1 + $0x5a8] sm:$0xff]
  %v201 = vld [vmem:[%s1 + $0x5b0] sm:$0xff]
  %v202 = vld [vmem:[%s1 + $0x5b8] sm:$0xff]
  %v203 = vld [vmem:[%s1 + $0x5c0] sm:$0xff]
  %v204 = vld [vmem:[%s1 + $0x5c8] sm:$0xff]
  %v205 = vld [vmem:[%s1 + $0x5d0] sm:$0xff]
  %v206 = vld [vmem:[%s1 + $0x5d8] sm:$0xff]
  %v207 = vld [vmem:[%s1 + $0x5e0] sm:$0xff]
  %v208 = vld [vmem:[%s1 + $0x5e8] sm:$0xff]
  %v209 = vld [vmem:[%s1 + $0x5f0] sm:$0xff]
  %v210 = vld [vmem:[%s1 + $0x5f8] sm:$0xff]
  %v211 = vld [vmem:[%s1 + $0x600] sm:$0xff]
  %v212 = vld [vmem:[%s1 + $0x608] sm:$0xff]
  %v213 = vld [vmem:[%s1 + $0x610] sm:$0xff]
  %v214 = vld [vmem:[%s1 + $0x618] sm:$0xff]
  %v215 = vld [vmem:[%s1 + $0x620] sm:$0xff]
  %v216 = vld [vmem:[%s1 + $0x628] sm:$0xff]
  %v217 = vld [vmem:[%s1 + $0x630] sm:$0xff]
  %v218 = vld [vmem:[%s1 + $0x638] sm:$0xff]
  %v219 = vld [vmem:[%s1 + $0x640] sm:$0xff]
  %v220 = vld [vmem:[%s1 + $0x648] sm:$0xff]
  %v221 = vld [vmem:[%s1 + $0x650] sm:$0xff]
  %v222 = vld [vmem:[%s1 + $0x658] sm:$0xff]
  %v223 = vld [vmem:[%s1 + $0x660] sm:$0xff]
  %v224 = vld [vmem:[%s1 + $0x668] sm:$0xff]
  %v225 = vld [vmem:[%s1 + $0x670] sm:$0xff]
  %v226 = vld [vmem:[%s1 + $0x678] sm:$0xff]
  %v227 = vld [vmem:[%s1 + $0x680] sm:$0xff]
  %v228 = vld [vmem:[%s1 + $0x688] sm:$0xff]
  %v229 = vld [vmem:[%s1 + $0x690] sm:$0xff]
  %v230 = vld [vmem:[%s1 + $0x698] sm:$0xff]
  %v231 = vld [vmem:[%s1 + $0x6a0] sm:$0xff]
  %v232 = vld [vmem:[%s1 + $0x6a8] sm:$0xff]
  %v233 = vld [vmem:[%s1 + $0x6b0] sm:$0xff]
  %v234 = vld [vmem:[%s1 + $0x6b8] sm:$0xff]
  %v235 = vld [vmem:[%s1 + $0x6c0] sm:$0xff]
  %v236 = vld [vmem:[%s1 + $0x6c8] sm:$0xff]
  %v237 = vld [vmem:[%s1 + $0x6d0] sm:$0xff]
  %v238 = vld [vmem:[%s1 + $0x6d8] sm:$0xff]
  %v239 = vld [vmem:[%s1 + $0x6e0] sm:$0xff]
  %v240 = vld [vmem:[%s1 + $0x6e8] sm:$0xff]
  %v241 = vld [vmem:[%s1 + $0x6f0] sm:$0xff]
  %v242 = vld [vmem:[%s1 + $0x6f8] sm:$0xff]
  %v243 = vld [vmem:[%s1 + $0x700] sm:$0xff]
  %v244 = vld [vmem:[%s1 + $0x708] sm:$0xff]
  %v245 = vld [vmem:[%s1 + $0x710] sm:$0xff]
  %v246 = vld [vmem:[%s1 + $0x718] sm:$0xff]
  %v247 = vld [vmem:[%s1 + $0x720] sm:$0xff]
  %v248 = vld [vmem:[%s1 + $0x728] sm:$0xff]
  %v249 = vld [vmem:[%s1 + $0x730] sm:$0xff]
  %v250 = vld [vmem:[%s1 + $0x738] sm:$0xff]
  %v251 = vld [vmem:[%s1 + $0x740] sm:$0xff]
  %v252 = vld [vmem:[%s1 + $0x748] sm:$0xff]
  %v253 = vld [vmem:[%s1 + $0x750] sm:$0xff]
  %v254 = vld [vmem:[%s1 + $0x758] sm:$0xff]
  %v255 = vld [vmem:[%s1 + $0x760] sm:$0xff]
  %v256 = vld [vmem:[%s1 + $0x768] sm:$0xff]
  %v257 = vld [vmem:[%s1 + $0x770] sm:$0xff]
  %v258 = vld [vmem:[%s1 + $0x778] sm:$0xff]
  %v259 = vld [vmem:[%s1 + $0x780] sm:$0xff]
  %v260 = vld [vmem:[%s1 + $0x788] sm:$0xff]
  %v261 = vld [vmem:[%s1 + $0x790] sm:$0xff]
  %v262 = vld [vmem:[%s1 + $0x798] sm:$0xff]
  %v263 = vld [vmem:[%s1 + $0x7a0] sm:$0xff]
  %v264 = vld [vmem:[%s1 + $0x7a8] sm:$0xff]
  %v265 = vld [vmem:[%s1 + $0x7b0] sm:$0xff]
  %v266 = vld [vmem:[%s1 + $0x7b8] sm:$0xff]
  %v267 = vld [vmem:[%s1 + $0x7c0] sm:$0xff]
  %v268 = vld [vmem:[%s1 + $0x7c8] sm:$0xff]
  %v269 = vld [vmem:[%s1 + $0x7d0] sm:$0xff]
  %v270 = vld [vmem:[%s1 + $0x7d8] sm:$0xff]
  %v271 = vld [vmem:[%s1 + $0x7e0] sm:$0xff]
  %v272 = vld [vmem:[%s1 + $0x7e8] sm:$0xff]
  %v273 = vld [vmem:[%s1 + $0x7f0] sm:$0xff]
  %v274 = vld [vmem:[%s1 + $0x7f8] sm:$0xff]
  %v277 = vcombine.low %v17, %v18
  %v278 = vcombine.high %v17, %v18
  %281 = vmatprep.subr.mxu0 %v140
  %282 = vmatpush1.msra.mxu0 %v139
  %283 = vmatprep.subr.mxu0 %v132
  %284 = vmatpush1.msra.mxu0 %v131
  %285 = vmatprep.subr.mxu0 %v124
  %286 = vmatpush1.msra.mxu0 %v123
  %287 = vmatprep.subr.mxu0 %v116
  %288 = vmatpush1.msra.mxu0 %v115
  %289 = vmatprep.subr.mxu0 %v108
  %290 = vmatpush1.msra.mxu0 %v107
  %291 = vmatprep.subr.mxu0 %v100
  %292 = vmatpush1.msra.mxu0 %v99
  %293 = vmatprep.subr.mxu0 %v92
  %294 = vmatpush1.msra.mxu0 %v91
  %295 = vmatprep.subr.mxu0 %v84
  %296 = vmatpush1.msra.mxu0 %v83
  %297 = vmatprep.subr.mxu0 %v76
  %298 = vmatpush1.msra.mxu0 %v75
  %299 = vmatprep.subr.mxu0 %v68
  %300 = vmatpush1.msra.mxu0 %v67
  %301 = vmatprep.subr.mxu0 %v60
  %302 = vmatpush1.msra.mxu0 %v59
  %303 = vmatprep.subr.mxu0 %v52
  %304 = vmatpush1.msra.mxu0 %v51
  %305 = vmatprep.subr.mxu0 %v44
  %306 = vmatpush1.msra.mxu0 %v43
  %307 = vmatprep.subr.mxu0 %v36
  %308 = vmatpush1.msra.mxu0 %v35
  %309 = vmatprep.subr.mxu0 %v28
  %310 = vmatpush1.msra.mxu0 %v27
  %311 = vmatprep.subr.mxu0 %v20
  %312 = vmatpush1.msra.mxu0 %v19
  %313 = vmatprep.subr.mxu0 %v268
  %314 = vmatpush2.msra.mxu0 %v267
  %315 = vmatprep.subr.mxu0 %v260
  %316 = vmatpush2.msra.mxu0 %v259
  %317 = vmatprep.subr.mxu0 %v252
  %318 = vmatpush2.msra.mxu0 %v251
  %319 = vmatprep.subr.mxu0 %v244
  %320 = vmatpush2.msra.mxu0 %v243
  %321 = vmatprep.subr.mxu0 %v236
  %322 = vmatpush2.msra.mxu0 %v235
  %323 = vmatprep.subr.mxu0 %v228
  %324 = vmatpush2.msra.mxu0 %v227
  %325 = vmatprep.subr.mxu0 %v220
  %326 = vmatpush2.msra.mxu0 %v219
  %327 = vmatprep.subr.mxu0 %v212
  %328 = vmatpush2.msra.mxu0 %v211
  %329 = vmatprep.subr.mxu0 %v204
  %330 = vmatpush2.msra.mxu0 %v203
  %331 = vmatprep.subr.mxu0 %v196
  %332 = vmatpush2.msra.mxu0 %v195
  %333 = vmatprep.subr.mxu0 %v188
  %334 = vmatpush2.msra.mxu0 %v187
  %335 = vmatprep.subr.mxu0 %v180
  %336 = vmatpush2.msra.mxu0 %v179
  %337 = vmatprep.subr.mxu0 %v172
  %338 = vmatpush2.msra.mxu0 %v171
  %339 = vmatprep.subr.mxu0 %v164
  %340 = vmatpush2.msra.mxu0 %v163
  %341 = vmatprep.subr.mxu0 %v156
  %342 = vmatpush2.msra.mxu0 %v155
  %343 = vmatprep.subr.mxu0 %v148
  %344 = vmatpush2.msra.mxu0 %v147
  %345 = vmatprep.mubr.f32.mxu0 %v278
  %346 = vmatmul.mubr.f32.gmra.mxu0 %v277
  %v347 = vpop.f32.mrf.mxu0
  %v348 = vadd.f32 0.0, %v347
  %v349 = vpop.f32.mrf.mxu0
  %v350 = vadd.f32 0.0, %v349
  %351 = vdwg.mxu0
  %352 = vmatprep.subr.mxu0 %v142
  %353 = vmatpush1.msra.mxu0 %v141
  %354 = vmatprep.subr.mxu0 %v134
  %355 = vmatpush1.msra.mxu0 %v133
  %356 = vmatprep.subr.mxu0 %v126
  %357 = vmatpush1.msra.mxu0 %v125
  %358 = vmatprep.subr.mxu0 %v118
  %359 = vmatpush1.msra.mxu0 %v117
  %360 = vmatprep.subr.mxu0 %v110
  %361 = vmatpush1.msra.mxu0 %v109
  %362 = vmatprep.subr.mxu0 %v102
  %363 = vmatpush1.msra.mxu0 %v101
  %364 = vmatprep.subr.mxu0 %v94
  %365 = vmatpush1.msra.mxu0 %v93
  %366 = vmatprep.subr.mxu0 %v86
  %367 = vmatpush1.msra.mxu0 %v85
  %368 = vmatprep.subr.mxu0 %v78
  %369 = vmatpush1.msra.mxu0 %v77
  %370 = vmatprep.subr.mxu0 %v70
  %371 = vmatpush1.msra.mxu0 %v69
  %372 = vmatprep.subr.mxu0 %v62
  %373 = vmatpush1.msra.mxu0 %v61
  %374 = vmatprep.subr.mxu0 %v54
  %375 = vmatpush1.msra.mxu0 %v53
  %376 = vmatprep.subr.mxu0 %v46
  %377 = vmatpush1.msra.mxu0 %v45
  %378 = vmatprep.subr.mxu0 %v38
  %379 = vmatpush1.msra.mxu0 %v37
  %380 = vmatprep.subr.mxu0 %v30
  %381 = vmatpush1.msra.mxu0 %v29
  %382 = vmatprep.subr.mxu0 %v22
  %383 = vmatpush1.msra.mxu0 %v21
  %384 = vmatprep.subr.mxu0 %v270
  %385 = vmatpush2.msra.mxu0 %v269
  %386 = vmatprep.subr.mxu0 %v262
  %387 = vmatpush2.msra.mxu0 %v261
  %388 = vmatprep.subr.mxu0 %v254
  %389 = vmatpush2.msra.mxu0 %v253
  %390 = vmatprep.subr.mxu0 %v246
  %391 = vmatpush2.msra.mxu0 %v245
  %392 = vmatprep.subr.mxu0 %v238
  %393 = vmatpush2.msra.mxu0 %v237
  %394 = vmatprep.subr.mxu0 %v230
  %395 = vmatpush2.msra.mxu0 %v229
  %396 = vmatprep.subr.mxu0 %v222
  %397 = vmatpush2.msra.mxu0 %v221
  %398 = vmatprep.subr.mxu0 %v214
  %399 = vmatpush2.msra.mxu0 %v213
  %400 = vmatprep.subr.mxu0 %v206
  %401 = vmatpush2.msra.mxu0 %v205
  %402 = vmatprep.subr.mxu0 %v198
  %403 = vmatpush2.msra.mxu0 %v197
  %404 = vmatprep.subr.mxu0 %v190
  %405 = vmatpush2.msra.mxu0 %v189
  %406 = vmatprep.subr.mxu0 %v182
  %407 = vmatpush2.msra.mxu0 %v181
  %408 = vmatprep.subr.mxu0 %v174
  %409 = vmatpush2.msra.mxu0 %v173
  %410 = vmatprep.subr.mxu0 %v166
  %411 = vmatpush2.msra.mxu0 %v165
  %412 = vmatprep.subr.mxu0 %v158
  %413 = vmatpush2.msra.mxu0 %v157
  %414 = vmatprep.subr.mxu0 %v150
  %415 = vmatpush2.msra.mxu0 %v149
  %416 = vmatprep.mubr.f32.mxu0 %v278
  %417 = vmatmul.mubr.f32.gmra.mxu0 %v277
  %v418 = vpop.f32.mrf.mxu0
  %v419 = vadd.f32 0.0, %v418
  %v420 = vpop.f32.mrf.mxu0
  %v421 = vadd.f32 0.0, %v420
  %422 = vdwg.mxu0
  %423 = vmatprep.subr.mxu0 %v144
  %424 = vmatpush1.msra.mxu0 %v143
  %425 = vmatprep.subr.mxu0 %v136
  %426 = vmatpush1.msra.mxu0 %v135
  %427 = vmatprep.subr.mxu0 %v128
  %428 = vmatpush1.msra.mxu0 %v127
  %429 = vmatprep.subr.mxu0 %v120
  %430 = vmatpush1.msra.mxu0 %v119
  %431 = vmatprep.subr.mxu0 %v112
  %432 = vmatpush1.msra.mxu0 %v111
  %433 = vmatprep.subr.mxu0 %v104
  %434 = vmatpush1.msra.mxu0 %v103
  %435 = vmatprep.subr.mxu0 %v96
  %436 = vmatpush1.msra.mxu0 %v95
  %437 = vmatprep.subr.mxu0 %v88
  %438 = vmatpush1.msra.mxu0 %v87
  %439 = vmatprep.subr.mxu0 %v80
  %440 = vmatpush1.msra.mxu0 %v79
  %441 = vmatprep.subr.mxu0 %v72
  %442 = vmatpush1.msra.mxu0 %v71
  %443 = vmatprep.subr.mxu0 %v64
  %444 = vmatpush1.msra.mxu0 %v63
  %445 = vmatprep.subr.mxu0 %v56
  %446 = vmatpush1.msra.mxu0 %v55
  %447 = vmatprep.subr.mxu0 %v48
  %448 = vmatpush1.msra.mxu0 %v47
  %449 = vmatprep.subr.mxu0 %v40
  %450 = vmatpush1.msra.mxu0 %v39
  %451 = vmatprep.subr.mxu0 %v32
  %452 = vmatpush1.msra.mxu0 %v31
  %453 = vmatprep.subr.mxu0 %v24
  %454 = vmatpush1.msra.mxu0 %v23
  %455 = vmatprep.subr.mxu0 %v272
  %456 = vmatpush2.msra.mxu0 %v271
  %457 = vmatprep.subr.mxu0 %v264
  %458 = vmatpush2.msra.mxu0 %v263
  %459 = vmatprep.subr.mxu0 %v256
  %460 = vmatpush2.msra.mxu0 %v255
  %461 = vmatprep.subr.mxu0 %v248
  %462 = vmatpush2.msra.mxu0 %v247
  %463 = vmatprep.subr.mxu0 %v240
  %464 = vmatpush2.msra.mxu0 %v239
  %465 = vmatprep.subr.mxu0 %v232
  %466 = vmatpush2.msra.mxu0 %v231
  %467 = vmatprep.subr.mxu0 %v224
  %468 = vmatpush2.msra.mxu0 %v223
  %469 = vmatprep.subr.mxu0 %v216
  %470 = vmatpush2.msra.mxu0 %v215
  %471 = vmatprep.subr.mxu0 %v208
  %472 = vmatpush2.msra.mxu0 %v207
  %473 = vmatprep.subr.mxu0 %v200
  %474 = vmatpush2.msra.mxu0 %v199
  %475 = vmatprep.subr.mxu0 %v192
  %476 = vmatpush2.msra.mxu0 %v191
  %477 = vmatprep.subr.mxu0 %v184
  %478 = vmatpush2.msra.mxu0 %v183
  %479 = vmatprep.subr.mxu0 %v176
  %480 = vmatpush2.msra.mxu0 %v175
  %481 = vmatprep.subr.mxu0 %v168
  %482 = vmatpush2.msra.mxu0 %v167
  %483 = vmatprep.subr.mxu0 %v160
  %484 = vmatpush2.msra.mxu0 %v159
  %485 = vmatprep.subr.mxu0 %v152
  %486 = vmatpush2.msra.mxu0 %v151
  %487 = vmatprep.mubr.f32.mxu0 %v278
  %488 = vmatmul.mubr.f32.gmra.mxu0 %v277
  %v489 = vpop.f32.mrf.mxu0
  %v490 = vadd.f32 0.0, %v489
  %v491 = vpop.f32.mrf.mxu0
  %v492 = vadd.f32 0.0, %v491
  %493 = vdwg.mxu0
  %494 = vmatprep.subr.mxu0 %v146
  %495 = vmatpush1.msra.mxu0 %v145
  %496 = vmatprep.subr.mxu0 %v138
  %497 = vmatpush1.msra.mxu0 %v137
  %498 = vmatprep.subr.mxu0 %v130
  %499 = vmatpush1.msra.mxu0 %v129
  %500 = vmatprep.subr.mxu0 %v122
  %501 = vmatpush1.msra.mxu0 %v121
  %502 = vmatprep.subr.mxu0 %v114
  %503 = vmatpush1.msra.mxu0 %v113
  %504 = vmatprep.subr.mxu0 %v106
  %505 = vmatpush1.msra.mxu0 %v105
  %506 = vmatprep.subr.mxu0 %v98
  %507 = vmatpush1.msra.mxu0 %v97
  %508 = vmatprep.subr.mxu0 %v90
  %509 = vmatpush1.msra.mxu0 %v89
  %510 = vmatprep.subr.mxu0 %v82
  %511 = vmatpush1.msra.mxu0 %v81
  %512 = vmatprep.subr.mxu0 %v74
  %513 = vmatpush1.msra.mxu0 %v73
  %514 = vmatprep.subr.mxu0 %v66
  %515 = vmatpush1.msra.mxu0 %v65
  %516 = vmatprep.subr.mxu0 %v58
  %517 = vmatpush1.msra.mxu0 %v57
  %518 = vmatprep.subr.mxu0 %v50
  %519 = vmatpush1.msra.mxu0 %v49
  %520 = vmatprep.subr.mxu0 %v42
  %521 = vmatpush1.msra.mxu0 %v41
  %522 = vmatprep.subr.mxu0 %v34
  %523 = vmatpush1.msra.mxu0 %v33
  %524 = vmatprep.subr.mxu0 %v26
  %525 = vmatpush1.msra.mxu0 %v25
  %526 = vmatprep.subr.mxu0 %v274
  %527 = vmatpush2.msra.mxu0 %v273
  %528 = vmatprep.subr.mxu0 %v266
  %529 = vmatpush2.msra.mxu0 %v265
  %530 = vmatprep.subr.mxu0 %v258
  %531 = vmatpush2.msra.mxu0 %v257
  %532 = vmatprep.subr.mxu0 %v250
  %533 = vmatpush2.msra.mxu0 %v249
  %534 = vmatprep.subr.mxu0 %v242
  %535 = vmatpush2.msra.mxu0 %v241
  %536 = vmatprep.subr.mxu0 %v234
  %537 = vmatpush2.msra.mxu0 %v233
  %538 = vmatprep.subr.mxu0 %v226
  %539 = vmatpush2.msra.mxu0 %v225
  %540 = vmatprep.subr.mxu0 %v218
  %541 = vmatpush2.msra.mxu0 %v217
  %542 = vmatprep.subr.mxu0 %v210
  %543 = vmatpush2.msra.mxu0 %v209
  %544 = vmatprep.subr.mxu0 %v202
  %545 = vmatpush2.msra.mxu0 %v201
  %546 = vmatprep.subr.mxu0 %v194
  %547 = vmatpush2.msra.mxu0 %v193
  %548 = vmatprep.subr.mxu0 %v186
  %549 = vmatpush2.msra.mxu0 %v185
  %550 = vmatprep.subr.mxu0 %v178
  %551 = vmatpush2.msra.mxu0 %v177
  %552 = vmatprep.subr.mxu0 %v170
  %553 = vmatpush2.msra.mxu0 %v169
  %554 = vmatprep.subr.mxu0 %v162
  %555 = vmatpush2.msra.mxu0 %v161
  %556 = vmatprep.subr.mxu0 %v154
  %557 = vmatpush2.msra.mxu0 %v153
  %558 = vmatprep.mubr.f32.mxu0 %v278
  %559 = vmatmul.mubr.f32.gmra.mxu0 %v277
  %v560 = vpop.f32.mrf.mxu0
  %v561 = vadd.f32 0.0, %v560
  %v562 = vpop.f32.mrf.mxu0
  %v563 = vadd.f32 0.0, %v562
  %564 = vdwg.mxu0
  %v565 = vlaneseq
  %v566 = vand.u32 %v565, 127
  %v567 = vadd.s32 %v566, 128
  %v568 = vadd.s32 %v566, 256
  %v569 = vadd.s32 %v566, 384
  %v570 = vadd.s32 %v566, 512
  %v571 = vadd.s32 %v566, 640
  %v572 = vadd.s32 %v566, 768
  %v573 = vadd.s32 %v566, 896
  %vm574 = vcmp.lt.s32.totalorder %v566, 0
  %v575 = vsub.s32 0, %v566
  %v576 = vsel %vm574, %v575, %v566
  %v577 = vshrl.u32 %v576, 5
  %v578 = vand.u32 %v576, 31
  %v579 = vsub.s32 0, %v578
  %v580 = vsel %vm574, %v579, %v578
  %vm581 = vcmp.lt.s32.totalorder %v567, 0
  %v582 = vsub.s32 0, %v567
  %v583 = vsel %vm581, %v582, %v567
  %v584 = vshrl.u32 %v583, 5
  %v585 = vand.u32 %v583, 31
  %v586 = vsub.s32 0, %v585
  %v587 = vsel %vm581, %v586, %v585
  %vm588 = vcmp.lt.s32.totalorder %v568, 0
  %v589 = vsub.s32 0, %v568
  %v590 = vsel %vm588, %v589, %v568
  %v591 = vshrl.u32 %v590, 5
  %v592 = vand.u32 %v590, 31
  %v593 = vsub.s32 0, %v592
  %v594 = vsel %vm588, %v593, %v592
  %vm595 = vcmp.lt.s32.totalorder %v569, 0
  %v596 = vsub.s32 0, %v569
  %v597 = vsel %vm595, %v596, %v569
  %v598 = vshrl.u32 %v597, 5
  %v599 = vand.u32 %v597, 31
  %v600 = vsub.s32 0, %v599
  %v601 = vsel %vm595, %v600, %v599
  %vm602 = vcmp.lt.s32.totalorder %v570, 0
  %v603 = vsub.s32 0, %v570
  %v604 = vsel %vm602, %v603, %v570
  %v605 = vshrl.u32 %v604, 5
  %v606 = vand.u32 %v604, 31
  %v607 = vsub.s32 0, %v606
  %v608 = vsel %vm602, %v607, %v606
  %vm609 = vcmp.lt.s32.totalorder %v571, 0
  %v610 = vsub.s32 0, %v571
  %v611 = vsel %vm609, %v610, %v571
  %v612 = vshrl.u32 %v611, 5
  %v613 = vand.u32 %v611, 31
  %v614 = vsub.s32 0, %v613
  %v615 = vsel %vm609, %v614, %v613
  %vm616 = vcmp.lt.s32.totalorder %v572, 0
  %v617 = vsub.s32 0, %v572
  %v618 = vsel %vm616, %v617, %v572
  %v619 = vshrl.u32 %v618, 5
  %v620 = vand.u32 %v618, 31
  %v621 = vsub.s32 0, %v620
  %v622 = vsel %vm616, %v621, %v620
  %vm623 = vcmp.lt.s32.totalorder %v573, 0
  %v624 = vsub.s32 0, %v573
  %v625 = vsel %vm623, %v624, %v573
  %v626 = vshrl.u32 %v625, 5
  %v627 = vand.u32 %v625, 31
  %v628 = vsub.s32 0, %v627
  %v629 = vsel %vm623, %v628, %v627
  %vm630 = vcmp.ne.s32.totalorder %v580, 0
  %vm631 = vcmp.ne.s32.totalorder %v587, 0
  %vm632 = vcmp.ne.s32.totalorder %v594, 0
  %vm633 = vcmp.ne.s32.totalorder %v601, 0
  %vm634 = vcmp.ne.s32.totalorder %v608, 0
  %vm635 = vcmp.ne.s32.totalorder %v615, 0
  %vm636 = vcmp.ne.s32.totalorder %v622, 0
  %vm637 = vcmp.ne.s32.totalorder %v629, 0
  %vm638 = vcmp.lt.s32.totalorder %v580, 0
  %vm639 = vcmp.lt.s32.totalorder %v587, 0
  %vm640 = vcmp.lt.s32.totalorder %v594, 0
  %vm641 = vcmp.lt.s32.totalorder %v601, 0
  %vm642 = vcmp.lt.s32.totalorder %v608, 0
  %vm643 = vcmp.lt.s32.totalorder %v615, 0
  %vm644 = vcmp.lt.s32.totalorder %v622, 0
  %vm645 = vcmp.lt.s32.totalorder %v629, 0
  %vm646 = vmand %vm638, %vm630
  %vm647 = vmand %vm639, %vm631
  %vm648 = vmand %vm640, %vm632
  %vm649 = vmand %vm641, %vm633
  %vm650 = vmand %vm642, %vm634
  %vm651 = vmand %vm643, %vm635
  %vm652 = vmand %vm644, %vm636
  %vm653 = vmand %vm645, %vm637
  %v654 = vadd.s32 %v580, 32
  %v655 = vadd.s32 %v587, 32
  %v656 = vadd.s32 %v594, 32
  %v657 = vadd.s32 %v601, 32
  %v658 = vadd.s32 %v608, 32
  %v659 = vadd.s32 %v615, 32
  %v660 = vadd.s32 %v622, 32
  %v661 = vadd.s32 %v629, 32
  %v662 = vsel %vm646, %v654, %v580
  %v663 = vsel %vm647, %v655, %v587
  %v664 = vsel %vm648, %v656, %v594
  %v665 = vsel %vm649, %v657, %v601
  %v666 = vsel %vm650, %v658, %v608
  %v667 = vsel %vm651, %v659, %v615
  %v668 = vsel %vm652, %v660, %v622
  %v669 = vsel %vm653, %v661, %v629
  %vm670 = vcmp.eq.s32.totalorder %v662, 0
  %vm671 = vcmp.eq.s32.totalorder %v663, 0
  %vm672 = vcmp.eq.s32.totalorder %v664, 0
  %vm673 = vcmp.eq.s32.totalorder %v665, 0
  %vm674 = vcmp.eq.s32.totalorder %v666, 0
  %vm675 = vcmp.eq.s32.totalorder %v667, 0
  %vm676 = vcmp.eq.s32.totalorder %v668, 0
  %vm677 = vcmp.eq.s32.totalorder %v669, 0
  %686 = vrot.lane.b32.xlu0 %v348, 1
  %v687 = vpop.permute.xlu0 %686
  %688 = vrot.lane.b32.xlu0 %v350, 1
  %v689 = vpop.permute.xlu0 %688
  %690 = vrot.lane.b32.xlu0 %v419, 1
  %v691 = vpop.permute.xlu0 %690
  %692 = vrot.lane.b32.xlu0 %v421, 1
  %v693 = vpop.permute.xlu0 %692
  %694 = vrot.lane.b32.xlu0 %v490, 1
  %v695 = vpop.permute.xlu0 %694
  %696 = vrot.lane.b32.xlu0 %v492, 1
  %v697 = vpop.permute.xlu0 %696
  %698 = vrot.lane.b32.xlu0 %v561, 1
  %v699 = vpop.permute.xlu0 %698
  %700 = vrot.lane.b32.xlu0 %v563, 1
  %v701 = vpop.permute.xlu0 %700
  %vm702 = vcmask 7168
  %v703 = vsel %vm702, %v687, %v689
  %v704 = vsel %vm702, %v689, %v691
  %v705 = vsel %vm702, %v691, %v693
  %v706 = vsel %vm702, %v693, %v695
  %v707 = vsel %vm702, %v695, %v697
  %v708 = vsel %vm702, %v697, %v699
  %v709 = vsel %vm702, %v699, %v701
  %v718 = vsel %vm702, 0.0, %v687
  %v719 = vsel %vm670, 1, 0
  %v720 = vsel %vm671, 1, 0
  %v721 = vsel %vm672, 1, 0
  %v722 = vsel %vm673, 1, 0
  %v723 = vsel %vm674, 1, 0
  %v724 = vsel %vm675, 1, 0
  %v725 = vsel %vm676, 1, 0
  %v726 = vsel %vm677, 1, 0
  %vm727 = vcmp.eq.s32.totalorder %v719, 1
  %vm728 = vcmp.eq.s32.totalorder %v720, 1
  %vm729 = vcmp.eq.s32.totalorder %v721, 1
  %vm730 = vcmp.eq.s32.totalorder %v722, 1
  %vm731 = vcmp.eq.s32.totalorder %v723, 1
  %vm732 = vcmp.eq.s32.totalorder %v724, 1
  %vm733 = vcmp.eq.s32.totalorder %v725, 1
  %vm734 = vcmp.eq.s32.totalorder %v726, 1
  %v735 = vsel %vm727, 0.0, %v718
  %v736 = vsel %vm728, 0.0, %v703
  %v737 = vsel %vm729, 0.0, %v704
  %v738 = vsel %vm730, 0.0, %v705
  %v739 = vsel %vm731, 0.0, %v706
  %v740 = vsel %vm732, 0.0, %v707
  %v741 = vsel %vm733, 0.0, %v708
  %v742 = vsel %vm734, 0.0, %v709
  %vm743 = vcmp.eq.s32.totalorder %v662, 31
  %vm744 = vcmp.eq.s32.totalorder %v663, 31
  %vm745 = vcmp.eq.s32.totalorder %v664, 31
  %vm746 = vcmp.eq.s32.totalorder %v665, 31
  %vm747 = vcmp.eq.s32.totalorder %v666, 31
  %vm748 = vcmp.eq.s32.totalorder %v667, 31
  %vm749 = vcmp.eq.s32.totalorder %v668, 31
  %vm750 = vcmp.eq.s32.totalorder %v669, 31
  %751 = vrot.lane.b32.xlu0 %v348, 127
  %v752 = vpop.permute.xlu0 %751
  %753 = vrot.lane.b32.xlu0 %v350, 127
  %v754 = vpop.permute.xlu0 %753
  %755 = vrot.lane.b32.xlu0 %v419, 127
  %v756 = vpop.permute.xlu0 %755
  %757 = vrot.lane.b32.xlu0 %v421, 127
  %v758 = vpop.permute.xlu0 %757
  %759 = vrot.lane.b32.xlu0 %v490, 127
  %v760 = vpop.permute.xlu0 %759
  %761 = vrot.lane.b32.xlu0 %v492, 127
  %v762 = vpop.permute.xlu0 %761
  %763 = vrot.lane.b32.xlu0 %v561, 127
  %v764 = vpop.permute.xlu0 %763
  %765 = vrot.lane.b32.xlu0 %v563, 127
  %v766 = vpop.permute.xlu0 %765
  %vm767 = vcmask 1039360
  %v768 = vsel %vm767, %v752, %v754
  %v769 = vsel %vm767, %v754, %v756
  %v770 = vsel %vm767, %v756, %v758
  %v771 = vsel %vm767, %v758, %v760
  %v772 = vsel %vm767, %v760, %v762
  %v773 = vsel %vm767, %v762, %v764
  %v774 = vsel %vm767, %v764, %v766
  %v783 = vsel %vm767, %v766, 0.0
  %v784 = vsel %vm743, 1, 0
  %v785 = vsel %vm744, 1, 0
  %v786 = vsel %vm745, 1, 0
  %v787 = vsel %vm746, 1, 0
  %v788 = vsel %vm747, 1, 0
  %v789 = vsel %vm748, 1, 0
  %v790 = vsel %vm749, 1, 0
  %v791 = vsel %vm750, 1, 0
  %vm792 = vcmp.eq.s32.totalorder %v784, 1
  %vm793 = vcmp.eq.s32.totalorder %v785, 1
  %vm794 = vcmp.eq.s32.totalorder %v786, 1
  %vm795 = vcmp.eq.s32.totalorder %v787, 1
  %vm796 = vcmp.eq.s32.totalorder %v788, 1
  %vm797 = vcmp.eq.s32.totalorder %v789, 1
  %vm798 = vcmp.eq.s32.totalorder %v790, 1
  %vm799 = vcmp.eq.s32.totalorder %v791, 1
  %v800 = vsel %vm792, 0.0, %v768
  %v801 = vsel %vm793, 0.0, %v769
  %v802 = vsel %vm794, 0.0, %v770
  %v803 = vsel %vm795, 0.0, %v771
  %v804 = vsel %vm796, 0.0, %v772
  %v805 = vsel %vm797, 0.0, %v773
  %v806 = vsel %vm798, 0.0, %v774
  %v807 = vsel %vm799, 0.0, %v783
  %v808 = vld [vmem:[%s2] sm:$0xf]
  %v809 = vld [vmem:[%s3] sm:$0xf]
  %811 = vset.pattern.permute.xlu0 0
  %812 = vperm.xlu0 %811, %v808
  %v813 = vpop.permute.xlu0 %812
  %v815 = vlaneseq
  %v816 = vshrl.u32 %v815, 7
  %v817 = vsub.s32 0, %v816
  %v818 = vrot.slane %v735, %v817
  %v819 = vlaneseq
  %v820 = vshrl.u32 %v819, 7
  %v821 = vsub.s32 0, %v820
  %v822 = vrot.slane %v736, %v821
  %v823 = vlaneseq
  %v824 = vshrl.u32 %v823, 7
  %v825 = vsub.s32 0, %v824
  %v826 = vrot.slane %v737, %v825
  %v827 = vlaneseq
  %v828 = vshrl.u32 %v827, 7
  %v829 = vsub.s32 0, %v828
  %v830 = vrot.slane %v738, %v829
  %v831 = vlaneseq
  %v832 = vshrl.u32 %v831, 7
  %v833 = vsub.s32 0, %v832
  %v834 = vrot.slane %v739, %v833
  %v835 = vlaneseq
  %v836 = vshrl.u32 %v835, 7
  %v837 = vsub.s32 0, %v836
  %v838 = vrot.slane %v740, %v837
  %v839 = vlaneseq
  %v840 = vshrl.u32 %v839, 7
  %v841 = vsub.s32 0, %v840
  %v842 = vrot.slane %v741, %v841
  %v843 = vlaneseq
  %v844 = vshrl.u32 %v843, 7
  %v845 = vsub.s32 0, %v844
  %v846 = vrot.slane %v742, %v845
  %v847 = vmul.f32 %v813, %v818
  %v848 = vmul.f32 %v813, %v822
  %v849 = vmul.f32 %v813, %v826
  %v850 = vmul.f32 %v813, %v830
  %v851 = vmul.f32 %v813, %v834
  %v852 = vmul.f32 %v813, %v838
  %v853 = vmul.f32 %v813, %v842
  %v854 = vmul.f32 %v813, %v846
  %v855 = vadd.f32 %v847, 0.0
  %v856 = vadd.f32 %v848, 0.0
  %v857 = vadd.f32 %v849, 0.0
  %v858 = vadd.f32 %v850, 0.0
  %v859 = vadd.f32 %v851, 0.0
  %v860 = vadd.f32 %v852, 0.0
  %v861 = vadd.f32 %v853, 0.0
  %v862 = vadd.f32 %v854, 0.0
  %863 = vset.pattern.permute.xlu0 1
  %864 = vperm.xlu0 %863, %v808
  %v865 = vpop.permute.xlu0 %864
  %v867 = vlaneseq
  %v868 = vshrl.u32 %v867, 7
  %v869 = vsub.s32 1, %v868
  %v870 = vrot.slane %v735, %v869
  %v871 = vlaneseq
  %v872 = vshrl.u32 %v871, 7
  %v873 = vsub.s32 1, %v872
  %v874 = vrot.slane %v736, %v873
  %v875 = vlaneseq
  %v876 = vshrl.u32 %v875, 7
  %v877 = vsub.s32 1, %v876
  %v878 = vrot.slane %v737, %v877
  %v879 = vlaneseq
  %v880 = vshrl.u32 %v879, 7
  %v881 = vsub.s32 1, %v880
  %v882 = vrot.slane %v738, %v881
  %v883 = vlaneseq
  %v884 = vshrl.u32 %v883, 7
  %v885 = vsub.s32 1, %v884
  %v886 = vrot.slane %v739, %v885
  %v887 = vlaneseq
  %v888 = vshrl.u32 %v887, 7
  %v889 = vsub.s32 1, %v888
  %v890 = vrot.slane %v740, %v889
  %v891 = vlaneseq
  %v892 = vshrl.u32 %v891, 7
  %v893 = vsub.s32 1, %v892
  %v894 = vrot.slane %v741, %v893
  %v895 = vlaneseq
  %v896 = vshrl.u32 %v895, 7
  %v897 = vsub.s32 1, %v896
  %v898 = vrot.slane %v742, %v897
  %v899 = vmul.f32 %v865, %v870
  %v900 = vmul.f32 %v865, %v874
  %v901 = vmul.f32 %v865, %v878
  %v902 = vmul.f32 %v865, %v882
  %v903 = vmul.f32 %v865, %v886
  %v904 = vmul.f32 %v865, %v890
  %v905 = vmul.f32 %v865, %v894
  %v906 = vmul.f32 %v865, %v898
  %v907 = vadd.f32 %v855, %v899
  %v908 = vadd.f32 %v856, %v900
  %v909 = vadd.f32 %v857, %v901
  %v910 = vadd.f32 %v858, %v902
  %v911 = vadd.f32 %v859, %v903
  %v912 = vadd.f32 %v860, %v904
  %v913 = vadd.f32 %v861, %v905
  %v914 = vadd.f32 %v862, %v906
  %915 = vset.pattern.permute.xlu0 2
  %916 = vperm.xlu0 %915, %v808
  %v917 = vpop.permute.xlu0 %916
  %v919 = vlaneseq
  %v920 = vshrl.u32 %v919, 7
  %v921 = vsub.s32 2, %v920
  %v922 = vrot.slane %v735, %v921
  %v923 = vlaneseq
  %v924 = vshrl.u32 %v923, 7
  %v925 = vsub.s32 2, %v924
  %v926 = vrot.slane %v736, %v925
  %v927 = vlaneseq
  %v928 = vshrl.u32 %v927, 7
  %v929 = vsub.s32 2, %v928
  %v930 = vrot.slane %v737, %v929
  %v931 = vlaneseq
  %v932 = vshrl.u32 %v931, 7
  %v933 = vsub.s32 2, %v932
  %v934 = vrot.slane %v738, %v933
  %v935 = vlaneseq
  %v936 = vshrl.u32 %v935, 7
  %v937 = vsub.s32 2, %v936
  %v938 = vrot.slane %v739, %v937
  %v939 = vlaneseq
  %v940 = vshrl.u32 %v939, 7
  %v941 = vsub.s32 2, %v940
  %v942 = vrot.slane %v740, %v941
  %v943 = vlaneseq
  %v944 = vshrl.u32 %v943, 7
  %v945 = vsub.s32 2, %v944
  %v946 = vrot.slane %v741, %v945
  %v947 = vlaneseq
  %v948 = vshrl.u32 %v947, 7
  %v949 = vsub.s32 2, %v948
  %v950 = vrot.slane %v742, %v949
  %v951 = vmul.f32 %v917, %v922
  %v952 = vmul.f32 %v917, %v926
  %v953 = vmul.f32 %v917, %v930
  %v954 = vmul.f32 %v917, %v934
  %v955 = vmul.f32 %v917, %v938
  %v956 = vmul.f32 %v917, %v942
  %v957 = vmul.f32 %v917, %v946
  %v958 = vmul.f32 %v917, %v950
  %v959 = vadd.f32 %v907, %v951
  %v960 = vadd.f32 %v908, %v952
  %v961 = vadd.f32 %v909, %v953
  %v962 = vadd.f32 %v910, %v954
  %v963 = vadd.f32 %v911, %v955
  %v964 = vadd.f32 %v912, %v956
  %v965 = vadd.f32 %v913, %v957
  %v966 = vadd.f32 %v914, %v958
  %967 = vset.pattern.permute.xlu0 3
  %968 = vperm.xlu0 %967, %v808
  %v969 = vpop.permute.xlu0 %968
  %v971 = vlaneseq
  %v972 = vshrl.u32 %v971, 7
  %v973 = vsub.s32 3, %v972
  %v974 = vrot.slane %v735, %v973
  %v975 = vlaneseq
  %v976 = vshrl.u32 %v975, 7
  %v977 = vsub.s32 3, %v976
  %v978 = vrot.slane %v736, %v977
  %v979 = vlaneseq
  %v980 = vshrl.u32 %v979, 7
  %v981 = vsub.s32 3, %v980
  %v982 = vrot.slane %v737, %v981
  %v983 = vlaneseq
  %v984 = vshrl.u32 %v983, 7
  %v985 = vsub.s32 3, %v984
  %v986 = vrot.slane %v738, %v985
  %v987 = vlaneseq
  %v988 = vshrl.u32 %v987, 7
  %v989 = vsub.s32 3, %v988
  %v990 = vrot.slane %v739, %v989
  %v991 = vlaneseq
  %v992 = vshrl.u32 %v991, 7
  %v993 = vsub.s32 3, %v992
  %v994 = vrot.slane %v740, %v993
  %v995 = vlaneseq
  %v996 = vshrl.u32 %v995, 7
  %v997 = vsub.s32 3, %v996
  %v998 = vrot.slane %v741, %v997
  %v999 = vlaneseq
  %v1000 = vshrl.u32 %v999, 7
  %v1001 = vsub.s32 3, %v1000
  %v1002 = vrot.slane %v742, %v1001
  %v1003 = vmul.f32 %v969, %v974
  %v1004 = vmul.f32 %v969, %v978
  %v1005 = vmul.f32 %v969, %v982
  %v1006 = vmul.f32 %v969, %v986
  %v1007 = vmul.f32 %v969, %v990
  %v1008 = vmul.f32 %v969, %v994
  %v1009 = vmul.f32 %v969, %v998
  %v1010 = vmul.f32 %v969, %v1002
  %v1011 = vadd.f32 %v959, %v1003
  %v1012 = vadd.f32 %v960, %v1004
  %v1013 = vadd.f32 %v961, %v1005
  %v1014 = vadd.f32 %v962, %v1006
  %v1015 = vadd.f32 %v963, %v1007
  %v1016 = vadd.f32 %v964, %v1008
  %v1017 = vadd.f32 %v965, %v1009
  %v1018 = vadd.f32 %v966, %v1010
  %1019 = vset.pattern.permute.xlu0 4
  %1020 = vperm.xlu0 %1019, %v808
  %v1021 = vpop.permute.xlu0 %1020
  %v1023 = vlaneseq
  %v1024 = vshrl.u32 %v1023, 7
  %v1025 = vsub.s32 0, %v1024
  %v1026 = vrot.slane %v348, %v1025
  %v1027 = vlaneseq
  %v1028 = vshrl.u32 %v1027, 7
  %v1029 = vsub.s32 0, %v1028
  %v1030 = vrot.slane %v350, %v1029
  %v1031 = vlaneseq
  %v1032 = vshrl.u32 %v1031, 7
  %v1033 = vsub.s32 0, %v1032
  %v1034 = vrot.slane %v419, %v1033
  %v1035 = vlaneseq
  %v1036 = vshrl.u32 %v1035, 7
  %v1037 = vsub.s32 0, %v1036
  %v1038 = vrot.slane %v421, %v1037
  %v1039 = vlaneseq
  %v1040 = vshrl.u32 %v1039, 7
  %v1041 = vsub.s32 0, %v1040
  %v1042 = vrot.slane %v490, %v1041
  %v1043 = vlaneseq
  %v1044 = vshrl.u32 %v1043, 7
  %v1045 = vsub.s32 0, %v1044
  %v1046 = vrot.slane %v492, %v1045
  %v1047 = vlaneseq
  %v1048 = vshrl.u32 %v1047, 7
  %v1049 = vsub.s32 0, %v1048
  %v1050 = vrot.slane %v561, %v1049
  %v1051 = vlaneseq
  %v1052 = vshrl.u32 %v1051, 7
  %v1053 = vsub.s32 0, %v1052
  %v1054 = vrot.slane %v563, %v1053
  %v1055 = vmul.f32 %v1021, %v1026
  %v1056 = vmul.f32 %v1021, %v1030
  %v1057 = vmul.f32 %v1021, %v1034
  %v1058 = vmul.f32 %v1021, %v1038
  %v1059 = vmul.f32 %v1021, %v1042
  %v1060 = vmul.f32 %v1021, %v1046
  %v1061 = vmul.f32 %v1021, %v1050
  %v1062 = vmul.f32 %v1021, %v1054
  %v1063 = vadd.f32 %v1011, %v1055
  %v1064 = vadd.f32 %v1012, %v1056
  %v1065 = vadd.f32 %v1013, %v1057
  %v1066 = vadd.f32 %v1014, %v1058
  %v1067 = vadd.f32 %v1015, %v1059
  %v1068 = vadd.f32 %v1016, %v1060
  %v1069 = vadd.f32 %v1017, %v1061
  %v1070 = vadd.f32 %v1018, %v1062
  %1071 = vset.pattern.permute.xlu0 5
  %1072 = vperm.xlu0 %1071, %v808
  %v1073 = vpop.permute.xlu0 %1072
  %v1075 = vlaneseq
  %v1076 = vshrl.u32 %v1075, 7
  %v1077 = vsub.s32 1, %v1076
  %v1078 = vrot.slane %v348, %v1077
  %v1079 = vlaneseq
  %v1080 = vshrl.u32 %v1079, 7
  %v1081 = vsub.s32 1, %v1080
  %v1082 = vrot.slane %v350, %v1081
  %v1083 = vlaneseq
  %v1084 = vshrl.u32 %v1083, 7
  %v1085 = vsub.s32 1, %v1084
  %v1086 = vrot.slane %v419, %v1085
  %v1087 = vlaneseq
  %v1088 = vshrl.u32 %v1087, 7
  %v1089 = vsub.s32 1, %v1088
  %v1090 = vrot.slane %v421, %v1089
  %v1091 = vlaneseq
  %v1092 = vshrl.u32 %v1091, 7
  %v1093 = vsub.s32 1, %v1092
  %v1094 = vrot.slane %v490, %v1093
  %v1095 = vlaneseq
  %v1096 = vshrl.u32 %v1095, 7
  %v1097 = vsub.s32 1, %v1096
  %v1098 = vrot.slane %v492, %v1097
  %v1099 = vlaneseq
  %v1100 = vshrl.u32 %v1099, 7
  %v1101 = vsub.s32 1, %v1100
  %v1102 = vrot.slane %v561, %v1101
  %v1103 = vlaneseq
  %v1104 = vshrl.u32 %v1103, 7
  %v1105 = vsub.s32 1, %v1104
  %v1106 = vrot.slane %v563, %v1105
  %v1107 = vmul.f32 %v1073, %v1078
  %v1108 = vmul.f32 %v1073, %v1082
  %v1109 = vmul.f32 %v1073, %v1086
  %v1110 = vmul.f32 %v1073, %v1090
  %v1111 = vmul.f32 %v1073, %v1094
  %v1112 = vmul.f32 %v1073, %v1098
  %v1113 = vmul.f32 %v1073, %v1102
  %v1114 = vmul.f32 %v1073, %v1106
  %v1115 = vadd.f32 %v1063, %v1107
  %v1116 = vadd.f32 %v1064, %v1108
  %v1117 = vadd.f32 %v1065, %v1109
  %v1118 = vadd.f32 %v1066, %v1110
  %v1119 = vadd.f32 %v1067, %v1111
  %v1120 = vadd.f32 %v1068, %v1112
  %v1121 = vadd.f32 %v1069, %v1113
  %v1122 = vadd.f32 %v1070, %v1114
  %1123 = vset.pattern.permute.xlu0 6
  %1124 = vperm.xlu0 %1123, %v808
  %v1125 = vpop.permute.xlu0 %1124
  %v1127 = vlaneseq
  %v1128 = vshrl.u32 %v1127, 7
  %v1129 = vsub.s32 2, %v1128
  %v1130 = vrot.slane %v348, %v1129
  %v1131 = vlaneseq
  %v1132 = vshrl.u32 %v1131, 7
  %v1133 = vsub.s32 2, %v1132
  %v1134 = vrot.slane %v350, %v1133
  %v1135 = vlaneseq
  %v1136 = vshrl.u32 %v1135, 7
  %v1137 = vsub.s32 2, %v1136
  %v1138 = vrot.slane %v419, %v1137
  %v1139 = vlaneseq
  %v1140 = vshrl.u32 %v1139, 7
  %v1141 = vsub.s32 2, %v1140
  %v1142 = vrot.slane %v421, %v1141
  %v1143 = vlaneseq
  %v1144 = vshrl.u32 %v1143, 7
  %v1145 = vsub.s32 2, %v1144
  %v1146 = vrot.slane %v490, %v1145
  %v1147 = vlaneseq
  %v1148 = vshrl.u32 %v1147, 7
  %v1149 = vsub.s32 2, %v1148
  %v1150 = vrot.slane %v492, %v1149
  %v1151 = vlaneseq
  %v1152 = vshrl.u32 %v1151, 7
  %v1153 = vsub.s32 2, %v1152
  %v1154 = vrot.slane %v561, %v1153
  %v1155 = vlaneseq
  %v1156 = vshrl.u32 %v1155, 7
  %v1157 = vsub.s32 2, %v1156
  %v1158 = vrot.slane %v563, %v1157
  %v1159 = vmul.f32 %v1125, %v1130
  %v1160 = vmul.f32 %v1125, %v1134
  %v1161 = vmul.f32 %v1125, %v1138
  %v1162 = vmul.f32 %v1125, %v1142
  %v1163 = vmul.f32 %v1125, %v1146
  %v1164 = vmul.f32 %v1125, %v1150
  %v1165 = vmul.f32 %v1125, %v1154
  %v1166 = vmul.f32 %v1125, %v1158
  %v1167 = vadd.f32 %v1115, %v1159
  %v1168 = vadd.f32 %v1116, %v1160
  %v1169 = vadd.f32 %v1117, %v1161
  %v1170 = vadd.f32 %v1118, %v1162
  %v1171 = vadd.f32 %v1119, %v1163
  %v1172 = vadd.f32 %v1120, %v1164
  %v1173 = vadd.f32 %v1121, %v1165
  %v1174 = vadd.f32 %v1122, %v1166
  %1175 = vset.pattern.permute.xlu0 7
  %1176 = vperm.xlu0 %1175, %v808
  %v1177 = vpop.permute.xlu0 %1176
  %v1179 = vlaneseq
  %v1180 = vshrl.u32 %v1179, 7
  %v1181 = vsub.s32 3, %v1180
  %v1182 = vrot.slane %v348, %v1181
  %v1183 = vlaneseq
  %v1184 = vshrl.u32 %v1183, 7
  %v1185 = vsub.s32 3, %v1184
  %v1186 = vrot.slane %v350, %v1185
  %v1187 = vlaneseq
  %v1188 = vshrl.u32 %v1187, 7
  %v1189 = vsub.s32 3, %v1188
  %v1190 = vrot.slane %v419, %v1189
  %v1191 = vlaneseq
  %v1192 = vshrl.u32 %v1191, 7
  %v1193 = vsub.s32 3, %v1192
  %v1194 = vrot.slane %v421, %v1193
  %v1195 = vlaneseq
  %v1196 = vshrl.u32 %v1195, 7
  %v1197 = vsub.s32 3, %v1196
  %v1198 = vrot.slane %v490, %v1197
  %v1199 = vlaneseq
  %v1200 = vshrl.u32 %v1199, 7
  %v1201 = vsub.s32 3, %v1200
  %v1202 = vrot.slane %v492, %v1201
  %v1203 = vlaneseq
  %v1204 = vshrl.u32 %v1203, 7
  %v1205 = vsub.s32 3, %v1204
  %v1206 = vrot.slane %v561, %v1205
  %v1207 = vlaneseq
  %v1208 = vshrl.u32 %v1207, 7
  %v1209 = vsub.s32 3, %v1208
  %v1210 = vrot.slane %v563, %v1209
  %v1211 = vmul.f32 %v1177, %v1182
  %v1212 = vmul.f32 %v1177, %v1186
  %v1213 = vmul.f32 %v1177, %v1190
  %v1214 = vmul.f32 %v1177, %v1194
  %v1215 = vmul.f32 %v1177, %v1198
  %v1216 = vmul.f32 %v1177, %v1202
  %v1217 = vmul.f32 %v1177, %v1206
  %v1218 = vmul.f32 %v1177, %v1210
  %v1219 = vadd.f32 %v1167, %v1211
  %v1220 = vadd.f32 %v1168, %v1212
  %v1221 = vadd.f32 %v1169, %v1213
  %v1222 = vadd.f32 %v1170, %v1214
  %v1223 = vadd.f32 %v1171, %v1215
  %v1224 = vadd.f32 %v1172, %v1216
  %v1225 = vadd.f32 %v1173, %v1217
  %v1226 = vadd.f32 %v1174, %v1218
  %1227 = vset.pattern.permute.xlu0 8
  %1228 = vperm.xlu0 %1227, %v808
  %v1229 = vpop.permute.xlu0 %1228
  %v1231 = vlaneseq
  %v1232 = vshrl.u32 %v1231, 7
  %v1233 = vsub.s32 0, %v1232
  %v1234 = vrot.slane %v800, %v1233
  %v1235 = vlaneseq
  %v1236 = vshrl.u32 %v1235, 7
  %v1237 = vsub.s32 0, %v1236
  %v1238 = vrot.slane %v801, %v1237
  %v1239 = vlaneseq
  %v1240 = vshrl.u32 %v1239, 7
  %v1241 = vsub.s32 0, %v1240
  %v1242 = vrot.slane %v802, %v1241
  %v1243 = vlaneseq
  %v1244 = vshrl.u32 %v1243, 7
  %v1245 = vsub.s32 0, %v1244
  %v1246 = vrot.slane %v803, %v1245
  %v1247 = vlaneseq
  %v1248 = vshrl.u32 %v1247, 7
  %v1249 = vsub.s32 0, %v1248
  %v1250 = vrot.slane %v804, %v1249
  %v1251 = vlaneseq
  %v1252 = vshrl.u32 %v1251, 7
  %v1253 = vsub.s32 0, %v1252
  %v1254 = vrot.slane %v805, %v1253
  %v1255 = vlaneseq
  %v1256 = vshrl.u32 %v1255, 7
  %v1257 = vsub.s32 0, %v1256
  %v1258 = vrot.slane %v806, %v1257
  %v1259 = vlaneseq
  %v1260 = vshrl.u32 %v1259, 7
  %v1261 = vsub.s32 0, %v1260
  %v1262 = vrot.slane %v807, %v1261
  %v1263 = vmul.f32 %v1229, %v1234
  %v1264 = vmul.f32 %v1229, %v1238
  %v1265 = vmul.f32 %v1229, %v1242
  %v1266 = vmul.f32 %v1229, %v1246
  %v1267 = vmul.f32 %v1229, %v1250
  %v1268 = vmul.f32 %v1229, %v1254
  %v1269 = vmul.f32 %v1229, %v1258
  %v1270 = vmul.f32 %v1229, %v1262
  %v1271 = vadd.f32 %v1219, %v1263
  %v1272 = vadd.f32 %v1220, %v1264
  %v1273 = vadd.f32 %v1221, %v1265
  %v1274 = vadd.f32 %v1222, %v1266
  %v1275 = vadd.f32 %v1223, %v1267
  %v1276 = vadd.f32 %v1224, %v1268
  %v1277 = vadd.f32 %v1225, %v1269
  %v1278 = vadd.f32 %v1226, %v1270
  %1279 = vset.pattern.permute.xlu0 9
  %1280 = vperm.xlu0 %1279, %v808
  %v1281 = vpop.permute.xlu0 %1280
  %v1283 = vlaneseq
  %v1284 = vshrl.u32 %v1283, 7
  %v1285 = vsub.s32 1, %v1284
  %v1286 = vrot.slane %v800, %v1285
  %v1287 = vlaneseq
  %v1288 = vshrl.u32 %v1287, 7
  %v1289 = vsub.s32 1, %v1288
  %v1290 = vrot.slane %v801, %v1289
  %v1291 = vlaneseq
  %v1292 = vshrl.u32 %v1291, 7
  %v1293 = vsub.s32 1, %v1292
  %v1294 = vrot.slane %v802, %v1293
  %v1295 = vlaneseq
  %v1296 = vshrl.u32 %v1295, 7
  %v1297 = vsub.s32 1, %v1296
  %v1298 = vrot.slane %v803, %v1297
  %v1299 = vlaneseq
  %v1300 = vshrl.u32 %v1299, 7
  %v1301 = vsub.s32 1, %v1300
  %v1302 = vrot.slane %v804, %v1301
  %v1303 = vlaneseq
  %v1304 = vshrl.u32 %v1303, 7
  %v1305 = vsub.s32 1, %v1304
  %v1306 = vrot.slane %v805, %v1305
  %v1307 = vlaneseq
  %v1308 = vshrl.u32 %v1307, 7
  %v1309 = vsub.s32 1, %v1308
  %v1310 = vrot.slane %v806, %v1309
  %v1311 = vlaneseq
  %v1312 = vshrl.u32 %v1311, 7
  %v1313 = vsub.s32 1, %v1312
  %v1314 = vrot.slane %v807, %v1313
  %v1315 = vmul.f32 %v1281, %v1286
  %v1316 = vmul.f32 %v1281, %v1290
  %v1317 = vmul.f32 %v1281, %v1294
  %v1318 = vmul.f32 %v1281, %v1298
  %v1319 = vmul.f32 %v1281, %v1302
  %v1320 = vmul.f32 %v1281, %v1306
  %v1321 = vmul.f32 %v1281, %v1310
  %v1322 = vmul.f32 %v1281, %v1314
  %v1323 = vadd.f32 %v1271, %v1315
  %v1324 = vadd.f32 %v1272, %v1316
  %v1325 = vadd.f32 %v1273, %v1317
  %v1326 = vadd.f32 %v1274, %v1318
  %v1327 = vadd.f32 %v1275, %v1319
  %v1328 = vadd.f32 %v1276, %v1320
  %v1329 = vadd.f32 %v1277, %v1321
  %v1330 = vadd.f32 %v1278, %v1322
  %1331 = vset.pattern.permute.xlu0 10
  %1332 = vperm.xlu0 %1331, %v808
  %v1333 = vpop.permute.xlu0 %1332
  %v1335 = vlaneseq
  %v1336 = vshrl.u32 %v1335, 7
  %v1337 = vsub.s32 2, %v1336
  %v1338 = vrot.slane %v800, %v1337
  %v1339 = vlaneseq
  %v1340 = vshrl.u32 %v1339, 7
  %v1341 = vsub.s32 2, %v1340
  %v1342 = vrot.slane %v801, %v1341
  %v1343 = vlaneseq
  %v1344 = vshrl.u32 %v1343, 7
  %v1345 = vsub.s32 2, %v1344
  %v1346 = vrot.slane %v802, %v1345
  %v1347 = vlaneseq
  %v1348 = vshrl.u32 %v1347, 7
  %v1349 = vsub.s32 2, %v1348
  %v1350 = vrot.slane %v803, %v1349
  %v1351 = vlaneseq
  %v1352 = vshrl.u32 %v1351, 7
  %v1353 = vsub.s32 2, %v1352
  %v1354 = vrot.slane %v804, %v1353
  %v1355 = vlaneseq
  %v1356 = vshrl.u32 %v1355, 7
  %v1357 = vsub.s32 2, %v1356
  %v1358 = vrot.slane %v805, %v1357
  %v1359 = vlaneseq
  %v1360 = vshrl.u32 %v1359, 7
  %v1361 = vsub.s32 2, %v1360
  %v1362 = vrot.slane %v806, %v1361
  %v1363 = vlaneseq
  %v1364 = vshrl.u32 %v1363, 7
  %v1365 = vsub.s32 2, %v1364
  %v1366 = vrot.slane %v807, %v1365
  %v1367 = vmul.f32 %v1333, %v1338
  %v1368 = vmul.f32 %v1333, %v1342
  %v1369 = vmul.f32 %v1333, %v1346
  %v1370 = vmul.f32 %v1333, %v1350
  %v1371 = vmul.f32 %v1333, %v1354
  %v1372 = vmul.f32 %v1333, %v1358
  %v1373 = vmul.f32 %v1333, %v1362
  %v1374 = vmul.f32 %v1333, %v1366
  %v1375 = vadd.f32 %v1323, %v1367
  %v1376 = vadd.f32 %v1324, %v1368
  %v1377 = vadd.f32 %v1325, %v1369
  %v1378 = vadd.f32 %v1326, %v1370
  %v1379 = vadd.f32 %v1327, %v1371
  %v1380 = vadd.f32 %v1328, %v1372
  %v1381 = vadd.f32 %v1329, %v1373
  %v1382 = vadd.f32 %v1330, %v1374
  %1383 = vset.pattern.permute.xlu0 11
  %1384 = vperm.xlu0 %1383, %v808
  %v1385 = vpop.permute.xlu0 %1384
  %v1387 = vlaneseq
  %v1388 = vshrl.u32 %v1387, 7
  %v1389 = vsub.s32 3, %v1388
  %v1390 = vrot.slane %v800, %v1389
  %v1391 = vlaneseq
  %v1392 = vshrl.u32 %v1391, 7
  %v1393 = vsub.s32 3, %v1392
  %v1394 = vrot.slane %v801, %v1393
  %v1395 = vlaneseq
  %v1396 = vshrl.u32 %v1395, 7
  %v1397 = vsub.s32 3, %v1396
  %v1398 = vrot.slane %v802, %v1397
  %v1399 = vlaneseq
  %v1400 = vshrl.u32 %v1399, 7
  %v1401 = vsub.s32 3, %v1400
  %v1402 = vrot.slane %v803, %v1401
  %v1403 = vlaneseq
  %v1404 = vshrl.u32 %v1403, 7
  %v1405 = vsub.s32 3, %v1404
  %v1406 = vrot.slane %v804, %v1405
  %v1407 = vlaneseq
  %v1408 = vshrl.u32 %v1407, 7
  %v1409 = vsub.s32 3, %v1408
  %v1410 = vrot.slane %v805, %v1409
  %v1411 = vlaneseq
  %v1412 = vshrl.u32 %v1411, 7
  %v1413 = vsub.s32 3, %v1412
  %v1414 = vrot.slane %v806, %v1413
  %v1415 = vlaneseq
  %v1416 = vshrl.u32 %v1415, 7
  %v1417 = vsub.s32 3, %v1416
  %v1418 = vrot.slane %v807, %v1417
  %v1419 = vmul.f32 %v1385, %v1390
  %v1420 = vmul.f32 %v1385, %v1394
  %v1421 = vmul.f32 %v1385, %v1398
  %v1422 = vmul.f32 %v1385, %v1402
  %v1423 = vmul.f32 %v1385, %v1406
  %v1424 = vmul.f32 %v1385, %v1410
  %v1425 = vmul.f32 %v1385, %v1414
  %v1426 = vmul.f32 %v1385, %v1418
  %v1427 = vadd.f32 %v1375, %v1419
  %v1428 = vadd.f32 %v1376, %v1420
  %v1429 = vadd.f32 %v1377, %v1421
  %v1430 = vadd.f32 %v1378, %v1422
  %v1431 = vadd.f32 %v1379, %v1423
  %v1432 = vadd.f32 %v1380, %v1424
  %v1433 = vadd.f32 %v1381, %v1425
  %v1434 = vadd.f32 %v1382, %v1426
  %1443 = vrot.lane.b32.xlu0 %v1427, 32
  %v1444 = vpop.permute.xlu0 %1443
  %1445 = vrot.lane.b32.xlu0 %v1428, 32
  %v1446 = vpop.permute.xlu0 %1445
  %1447 = vrot.lane.b32.xlu0 %v1429, 32
  %v1448 = vpop.permute.xlu0 %1447
  %1449 = vrot.lane.b32.xlu0 %v1430, 32
  %v1450 = vpop.permute.xlu0 %1449
  %1451 = vrot.lane.b32.xlu0 %v1431, 32
  %v1452 = vpop.permute.xlu0 %1451
  %1453 = vrot.lane.b32.xlu0 %v1432, 32
  %v1454 = vpop.permute.xlu0 %1453
  %1455 = vrot.lane.b32.xlu0 %v1433, 32
  %v1456 = vpop.permute.xlu0 %1455
  %1457 = vrot.lane.b32.xlu0 %v1434, 32
  %v1458 = vpop.permute.xlu0 %1457
  %vm1459 = vcmask 261120
  %v1460 = vsel %vm1459, %v1444, %v1446
  %v1461 = vsel %vm1459, %v1446, %v1448
  %v1462 = vsel %vm1459, %v1448, %v1450
  %v1463 = vsel %vm1459, %v1450, %v1452
  %v1464 = vsel %vm1459, %v1452, %v1454
  %v1465 = vsel %vm1459, %v1454, %v1456
  %v1466 = vsel %vm1459, %v1456, %v1458
  %v1475 = vsel %vm1459, 0.0, %v1444
  %v1476 = vadd.f32 %v1475, 0.0
  %v1477 = vadd.f32 %v1460, 0.0
  %v1478 = vadd.f32 %v1461, 0.0
  %v1479 = vadd.f32 %v1462, 0.0
  %v1480 = vadd.f32 %v1463, 0.0
  %v1481 = vadd.f32 %v1464, 0.0
  %v1482 = vadd.f32 %v1465, 0.0
  %v1483 = vadd.f32 %v1466, 0.0
  %1484 = vset.pattern.permute.xlu0 12
  %1485 = vperm.xlu0 %1484, %v808
  %v1486 = vpop.permute.xlu0 %1485
  %v1488 = vmul.f32 %v1486, %v818
  %v1489 = vmul.f32 %v1486, %v822
  %v1490 = vmul.f32 %v1486, %v826
  %v1491 = vmul.f32 %v1486, %v830
  %v1492 = vmul.f32 %v1486, %v834
  %v1493 = vmul.f32 %v1486, %v838
  %v1494 = vmul.f32 %v1486, %v842
  %v1495 = vmul.f32 %v1486, %v846
  %v1496 = vadd.f32 %v1488, 0.0
  %v1497 = vadd.f32 %v1489, 0.0
  %v1498 = vadd.f32 %v1490, 0.0
  %v1499 = vadd.f32 %v1491, 0.0
  %v1500 = vadd.f32 %v1492, 0.0
  %v1501 = vadd.f32 %v1493, 0.0
  %v1502 = vadd.f32 %v1494, 0.0
  %v1503 = vadd.f32 %v1495, 0.0
  %1504 = vset.pattern.permute.xlu0 13
  %1505 = vperm.xlu0 %1504, %v808
  %v1506 = vpop.permute.xlu0 %1505
  %v1508 = vmul.f32 %v1506, %v870
  %v1509 = vmul.f32 %v1506, %v874
  %v1510 = vmul.f32 %v1506, %v878
  %v1511 = vmul.f32 %v1506, %v882
  %v1512 = vmul.f32 %v1506, %v886
  %v1513 = vmul.f32 %v1506, %v890
  %v1514 = vmul.f32 %v1506, %v894
  %v1515 = vmul.f32 %v1506, %v898
  %v1516 = vadd.f32 %v1496, %v1508
  %v1517 = vadd.f32 %v1497, %v1509
  %v1518 = vadd.f32 %v1498, %v1510
  %v1519 = vadd.f32 %v1499, %v1511
  %v1520 = vadd.f32 %v1500, %v1512
  %v1521 = vadd.f32 %v1501, %v1513
  %v1522 = vadd.f32 %v1502, %v1514
  %v1523 = vadd.f32 %v1503, %v1515
  %1524 = vset.pattern.permute.xlu0 14
  %1525 = vperm.xlu0 %1524, %v808
  %v1526 = vpop.permute.xlu0 %1525
  %v1528 = vmul.f32 %v1526, %v922
  %v1529 = vmul.f32 %v1526, %v926
  %v1530 = vmul.f32 %v1526, %v930
  %v1531 = vmul.f32 %v1526, %v934
  %v1532 = vmul.f32 %v1526, %v938
  %v1533 = vmul.f32 %v1526, %v942
  %v1534 = vmul.f32 %v1526, %v946
  %v1535 = vmul.f32 %v1526, %v950
  %v1536 = vadd.f32 %v1516, %v1528
  %v1537 = vadd.f32 %v1517, %v1529
  %v1538 = vadd.f32 %v1518, %v1530
  %v1539 = vadd.f32 %v1519, %v1531
  %v1540 = vadd.f32 %v1520, %v1532
  %v1541 = vadd.f32 %v1521, %v1533
  %v1542 = vadd.f32 %v1522, %v1534
  %v1543 = vadd.f32 %v1523, %v1535
  %1544 = vset.pattern.permute.xlu0 15
  %1545 = vperm.xlu0 %1544, %v808
  %v1546 = vpop.permute.xlu0 %1545
  %v1548 = vmul.f32 %v1546, %v974
  %v1549 = vmul.f32 %v1546, %v978
  %v1550 = vmul.f32 %v1546, %v982
  %v1551 = vmul.f32 %v1546, %v986
  %v1552 = vmul.f32 %v1546, %v990
  %v1553 = vmul.f32 %v1546, %v994
  %v1554 = vmul.f32 %v1546, %v998
  %v1555 = vmul.f32 %v1546, %v1002
  %v1556 = vadd.f32 %v1536, %v1548
  %v1557 = vadd.f32 %v1537, %v1549
  %v1558 = vadd.f32 %v1538, %v1550
  %v1559 = vadd.f32 %v1539, %v1551
  %v1560 = vadd.f32 %v1540, %v1552
  %v1561 = vadd.f32 %v1541, %v1553
  %v1562 = vadd.f32 %v1542, %v1554
  %v1563 = vadd.f32 %v1543, %v1555
  %1564 = vset.pattern.permute.xlu0 16
  %1565 = vperm.xlu0 %1564, %v808
  %v1566 = vpop.permute.xlu0 %1565
  %v1568 = vmul.f32 %v1566, %v1026
  %v1569 = vmul.f32 %v1566, %v1030
  %v1570 = vmul.f32 %v1566, %v1034
  %v1571 = vmul.f32 %v1566, %v1038
  %v1572 = vmul.f32 %v1566, %v1042
  %v1573 = vmul.f32 %v1566, %v1046
  %v1574 = vmul.f32 %v1566, %v1050
  %v1575 = vmul.f32 %v1566, %v1054
  %v1576 = vadd.f32 %v1556, %v1568
  %v1577 = vadd.f32 %v1557, %v1569
  %v1578 = vadd.f32 %v1558, %v1570
  %v1579 = vadd.f32 %v1559, %v1571
  %v1580 = vadd.f32 %v1560, %v1572
  %v1581 = vadd.f32 %v1561, %v1573
  %v1582 = vadd.f32 %v1562, %v1574
  %v1583 = vadd.f32 %v1563, %v1575
  %1584 = vset.pattern.permute.xlu0 17
  %1585 = vperm.xlu0 %1584, %v808
  %v1586 = vpop.permute.xlu0 %1585
  %v1588 = vmul.f32 %v1586, %v1078
  %v1589 = vmul.f32 %v1586, %v1082
  %v1590 = vmul.f32 %v1586, %v1086
  %v1591 = vmul.f32 %v1586, %v1090
  %v1592 = vmul.f32 %v1586, %v1094
  %v1593 = vmul.f32 %v1586, %v1098
  %v1594 = vmul.f32 %v1586, %v1102
  %v1595 = vmul.f32 %v1586, %v1106
  %v1596 = vadd.f32 %v1576, %v1588
  %v1597 = vadd.f32 %v1577, %v1589
  %v1598 = vadd.f32 %v1578, %v1590
  %v1599 = vadd.f32 %v1579, %v1591
  %v1600 = vadd.f32 %v1580, %v1592
  %v1601 = vadd.f32 %v1581, %v1593
  %v1602 = vadd.f32 %v1582, %v1594
  %v1603 = vadd.f32 %v1583, %v1595
  %1604 = vset.pattern.permute.xlu0 18
  %1605 = vperm.xlu0 %1604, %v808
  %v1606 = vpop.permute.xlu0 %1605
  %v1608 = vmul.f32 %v1606, %v1130
  %v1609 = vmul.f32 %v1606, %v1134
  %v1610 = vmul.f32 %v1606, %v1138
  %v1611 = vmul.f32 %v1606, %v1142
  %v1612 = vmul.f32 %v1606, %v1146
  %v1613 = vmul.f32 %v1606, %v1150
  %v1614 = vmul.f32 %v1606, %v1154
  %v1615 = vmul.f32 %v1606, %v1158
  %v1616 = vadd.f32 %v1596, %v1608
  %v1617 = vadd.f32 %v1597, %v1609
  %v1618 = vadd.f32 %v1598, %v1610
  %v1619 = vadd.f32 %v1599, %v1611
  %v1620 = vadd.f32 %v1600, %v1612
  %v1621 = vadd.f32 %v1601, %v1613
  %v1622 = vadd.f32 %v1602, %v1614
  %v1623 = vadd.f32 %v1603, %v1615
  %1624 = vset.pattern.permute.xlu0 19
  %1625 = vperm.xlu0 %1624, %v808
  %v1626 = vpop.permute.xlu0 %1625
  %v1628 = vmul.f32 %v1626, %v1182
  %v1629 = vmul.f32 %v1626, %v1186
  %v1630 = vmul.f32 %v1626, %v1190
  %v1631 = vmul.f32 %v1626, %v1194
  %v1632 = vmul.f32 %v1626, %v1198
  %v1633 = vmul.f32 %v1626, %v1202
  %v1634 = vmul.f32 %v1626, %v1206
  %v1635 = vmul.f32 %v1626, %v1210
  %v1636 = vadd.f32 %v1616, %v1628
  %v1637 = vadd.f32 %v1617, %v1629
  %v1638 = vadd.f32 %v1618, %v1630
  %v1639 = vadd.f32 %v1619, %v1631
  %v1640 = vadd.f32 %v1620, %v1632
  %v1641 = vadd.f32 %v1621, %v1633
  %v1642 = vadd.f32 %v1622, %v1634
  %v1643 = vadd.f32 %v1623, %v1635
  %1644 = vset.pattern.permute.xlu0 20
  %1645 = vperm.xlu0 %1644, %v808
  %v1646 = vpop.permute.xlu0 %1645
  %v1648 = vmul.f32 %v1646, %v1234
  %v1649 = vmul.f32 %v1646, %v1238
  %v1650 = vmul.f32 %v1646, %v1242
  %v1651 = vmul.f32 %v1646, %v1246
  %v1652 = vmul.f32 %v1646, %v1250
  %v1653 = vmul.f32 %v1646, %v1254
  %v1654 = vmul.f32 %v1646, %v1258
  %v1655 = vmul.f32 %v1646, %v1262
  %v1656 = vadd.f32 %v1636, %v1648
  %v1657 = vadd.f32 %v1637, %v1649
  %v1658 = vadd.f32 %v1638, %v1650
  %v1659 = vadd.f32 %v1639, %v1651
  %v1660 = vadd.f32 %v1640, %v1652
  %v1661 = vadd.f32 %v1641, %v1653
  %v1662 = vadd.f32 %v1642, %v1654
  %v1663 = vadd.f32 %v1643, %v1655
  %1664 = vset.pattern.permute.xlu0 21
  %1665 = vperm.xlu0 %1664, %v808
  %v1666 = vpop.permute.xlu0 %1665
  %v1668 = vmul.f32 %v1666, %v1286
  %v1669 = vmul.f32 %v1666, %v1290
  %v1670 = vmul.f32 %v1666, %v1294
  %v1671 = vmul.f32 %v1666, %v1298
  %v1672 = vmul.f32 %v1666, %v1302
  %v1673 = vmul.f32 %v1666, %v1306
  %v1674 = vmul.f32 %v1666, %v1310
  %v1675 = vmul.f32 %v1666, %v1314
  %v1676 = vadd.f32 %v1656, %v1668
  %v1677 = vadd.f32 %v1657, %v1669
  %v1678 = vadd.f32 %v1658, %v1670
  %v1679 = vadd.f32 %v1659, %v1671
  %v1680 = vadd.f32 %v1660, %v1672
  %v1681 = vadd.f32 %v1661, %v1673
  %v1682 = vadd.f32 %v1662, %v1674
  %v1683 = vadd.f32 %v1663, %v1675
  %1684 = vset.pattern.permute.xlu0 22
  %1685 = vperm.xlu0 %1684, %v808
  %v1686 = vpop.permute.xlu0 %1685
  %v1688 = vmul.f32 %v1686, %v1338
  %v1689 = vmul.f32 %v1686, %v1342
  %v1690 = vmul.f32 %v1686, %v1346
  %v1691 = vmul.f32 %v1686, %v1350
  %v1692 = vmul.f32 %v1686, %v1354
  %v1693 = vmul.f32 %v1686, %v1358
  %v1694 = vmul.f32 %v1686, %v1362
  %v1695 = vmul.f32 %v1686, %v1366
  %v1696 = vadd.f32 %v1676, %v1688
  %v1697 = vadd.f32 %v1677, %v1689
  %v1698 = vadd.f32 %v1678, %v1690
  %v1699 = vadd.f32 %v1679, %v1691
  %v1700 = vadd.f32 %v1680, %v1692
  %v1701 = vadd.f32 %v1681, %v1693
  %v1702 = vadd.f32 %v1682, %v1694
  %v1703 = vadd.f32 %v1683, %v1695
  %1704 = vset.pattern.permute.xlu0 23
  %1705 = vperm.xlu0 %1704, %v808
  %v1706 = vpop.permute.xlu0 %1705
  %v1708 = vmul.f32 %v1706, %v1390
  %v1709 = vmul.f32 %v1706, %v1394
  %v1710 = vmul.f32 %v1706, %v1398
  %v1711 = vmul.f32 %v1706, %v1402
  %v1712 = vmul.f32 %v1706, %v1406
  %v1713 = vmul.f32 %v1706, %v1410
  %v1714 = vmul.f32 %v1706, %v1414
  %v1715 = vmul.f32 %v1706, %v1418
  %v1716 = vadd.f32 %v1696, %v1708
  %v1717 = vadd.f32 %v1697, %v1709
  %v1718 = vadd.f32 %v1698, %v1710
  %v1719 = vadd.f32 %v1699, %v1711
  %v1720 = vadd.f32 %v1700, %v1712
  %v1721 = vadd.f32 %v1701, %v1713
  %v1722 = vadd.f32 %v1702, %v1714
  %v1723 = vadd.f32 %v1703, %v1715
  %v1724 = vadd.f32 %v1476, %v1716
  %v1725 = vadd.f32 %v1477, %v1717
  %v1726 = vadd.f32 %v1478, %v1718
  %v1727 = vadd.f32 %v1479, %v1719
  %v1728 = vadd.f32 %v1480, %v1720
  %v1729 = vadd.f32 %v1481, %v1721
  %v1730 = vadd.f32 %v1482, %v1722
  %v1731 = vadd.f32 %v1483, %v1723
  %1732 = vset.pattern.permute.xlu0 24
  %1733 = vperm.xlu0 %1732, %v808
  %v1734 = vpop.permute.xlu0 %1733
  %v1736 = vmul.f32 %v1734, %v818
  %v1737 = vmul.f32 %v1734, %v822
  %v1738 = vmul.f32 %v1734, %v826
  %v1739 = vmul.f32 %v1734, %v830
  %v1740 = vmul.f32 %v1734, %v834
  %v1741 = vmul.f32 %v1734, %v838
  %v1742 = vmul.f32 %v1734, %v842
  %v1743 = vmul.f32 %v1734, %v846
  %v1744 = vadd.f32 %v1736, 0.0
  %v1745 = vadd.f32 %v1737, 0.0
  %v1746 = vadd.f32 %v1738, 0.0
  %v1747 = vadd.f32 %v1739, 0.0
  %v1748 = vadd.f32 %v1740, 0.0
  %v1749 = vadd.f32 %v1741, 0.0
  %v1750 = vadd.f32 %v1742, 0.0
  %v1751 = vadd.f32 %v1743, 0.0
  %1752 = vset.pattern.permute.xlu0 25
  %1753 = vperm.xlu0 %1752, %v808
  %v1754 = vpop.permute.xlu0 %1753
  %v1756 = vmul.f32 %v1754, %v870
  %v1757 = vmul.f32 %v1754, %v874
  %v1758 = vmul.f32 %v1754, %v878
  %v1759 = vmul.f32 %v1754, %v882
  %v1760 = vmul.f32 %v1754, %v886
  %v1761 = vmul.f32 %v1754, %v890
  %v1762 = vmul.f32 %v1754, %v894
  %v1763 = vmul.f32 %v1754, %v898
  %v1764 = vadd.f32 %v1744, %v1756
  %v1765 = vadd.f32 %v1745, %v1757
  %v1766 = vadd.f32 %v1746, %v1758
  %v1767 = vadd.f32 %v1747, %v1759
  %v1768 = vadd.f32 %v1748, %v1760
  %v1769 = vadd.f32 %v1749, %v1761
  %v1770 = vadd.f32 %v1750, %v1762
  %v1771 = vadd.f32 %v1751, %v1763
  %1772 = vset.pattern.permute.xlu0 26
  %1773 = vperm.xlu0 %1772, %v808
  %v1774 = vpop.permute.xlu0 %1773
  %v1776 = vmul.f32 %v1774, %v922
  %v1777 = vmul.f32 %v1774, %v926
  %v1778 = vmul.f32 %v1774, %v930
  %v1779 = vmul.f32 %v1774, %v934
  %v1780 = vmul.f32 %v1774, %v938
  %v1781 = vmul.f32 %v1774, %v942
  %v1782 = vmul.f32 %v1774, %v946
  %v1783 = vmul.f32 %v1774, %v950
  %v1784 = vadd.f32 %v1764, %v1776
  %v1785 = vadd.f32 %v1765, %v1777
  %v1786 = vadd.f32 %v1766, %v1778
  %v1787 = vadd.f32 %v1767, %v1779
  %v1788 = vadd.f32 %v1768, %v1780
  %v1789 = vadd.f32 %v1769, %v1781
  %v1790 = vadd.f32 %v1770, %v1782
  %v1791 = vadd.f32 %v1771, %v1783
  %1792 = vset.pattern.permute.xlu0 27
  %1793 = vperm.xlu0 %1792, %v808
  %v1794 = vpop.permute.xlu0 %1793
  %v1796 = vmul.f32 %v1794, %v974
  %v1797 = vmul.f32 %v1794, %v978
  %v1798 = vmul.f32 %v1794, %v982
  %v1799 = vmul.f32 %v1794, %v986
  %v1800 = vmul.f32 %v1794, %v990
  %v1801 = vmul.f32 %v1794, %v994
  %v1802 = vmul.f32 %v1794, %v998
  %v1803 = vmul.f32 %v1794, %v1002
  %v1804 = vadd.f32 %v1784, %v1796
  %v1805 = vadd.f32 %v1785, %v1797
  %v1806 = vadd.f32 %v1786, %v1798
  %v1807 = vadd.f32 %v1787, %v1799
  %v1808 = vadd.f32 %v1788, %v1800
  %v1809 = vadd.f32 %v1789, %v1801
  %v1810 = vadd.f32 %v1790, %v1802
  %v1811 = vadd.f32 %v1791, %v1803
  %1812 = vset.pattern.permute.xlu0 28
  %1813 = vperm.xlu0 %1812, %v808
  %v1814 = vpop.permute.xlu0 %1813
  %v1816 = vmul.f32 %v1814, %v1026
  %v1817 = vmul.f32 %v1814, %v1030
  %v1818 = vmul.f32 %v1814, %v1034
  %v1819 = vmul.f32 %v1814, %v1038
  %v1820 = vmul.f32 %v1814, %v1042
  %v1821 = vmul.f32 %v1814, %v1046
  %v1822 = vmul.f32 %v1814, %v1050
  %v1823 = vmul.f32 %v1814, %v1054
  %v1824 = vadd.f32 %v1804, %v1816
  %v1825 = vadd.f32 %v1805, %v1817
  %v1826 = vadd.f32 %v1806, %v1818
  %v1827 = vadd.f32 %v1807, %v1819
  %v1828 = vadd.f32 %v1808, %v1820
  %v1829 = vadd.f32 %v1809, %v1821
  %v1830 = vadd.f32 %v1810, %v1822
  %v1831 = vadd.f32 %v1811, %v1823
  %1832 = vset.pattern.permute.xlu0 29
  %1833 = vperm.xlu0 %1832, %v808
  %v1834 = vpop.permute.xlu0 %1833
  %v1836 = vmul.f32 %v1834, %v1078
  %v1837 = vmul.f32 %v1834, %v1082
  %v1838 = vmul.f32 %v1834, %v1086
  %v1839 = vmul.f32 %v1834, %v1090
  %v1840 = vmul.f32 %v1834, %v1094
  %v1841 = vmul.f32 %v1834, %v1098
  %v1842 = vmul.f32 %v1834, %v1102
  %v1843 = vmul.f32 %v1834, %v1106
  %v1844 = vadd.f32 %v1824, %v1836
  %v1845 = vadd.f32 %v1825, %v1837
  %v1846 = vadd.f32 %v1826, %v1838
  %v1847 = vadd.f32 %v1827, %v1839
  %v1848 = vadd.f32 %v1828, %v1840
  %v1849 = vadd.f32 %v1829, %v1841
  %v1850 = vadd.f32 %v1830, %v1842
  %v1851 = vadd.f32 %v1831, %v1843
  %1852 = vset.pattern.permute.xlu0 30
  %1853 = vperm.xlu0 %1852, %v808
  %v1854 = vpop.permute.xlu0 %1853
  %v1856 = vmul.f32 %v1854, %v1130
  %v1857 = vmul.f32 %v1854, %v1134
  %v1858 = vmul.f32 %v1854, %v1138
  %v1859 = vmul.f32 %v1854, %v1142
  %v1860 = vmul.f32 %v1854, %v1146
  %v1861 = vmul.f32 %v1854, %v1150
  %v1862 = vmul.f32 %v1854, %v1154
  %v1863 = vmul.f32 %v1854, %v1158
  %v1864 = vadd.f32 %v1844, %v1856
  %v1865 = vadd.f32 %v1845, %v1857
  %v1866 = vadd.f32 %v1846, %v1858
  %v1867 = vadd.f32 %v1847, %v1859
  %v1868 = vadd.f32 %v1848, %v1860
  %v1869 = vadd.f32 %v1849, %v1861
  %v1870 = vadd.f32 %v1850, %v1862
  %v1871 = vadd.f32 %v1851, %v1863
  %1872 = vset.pattern.permute.xlu0 31
  %1873 = vperm.xlu0 %1872, %v808
  %v1874 = vpop.permute.xlu0 %1873
  %v1876 = vmul.f32 %v1874, %v1182
  %v1877 = vmul.f32 %v1874, %v1186
  %v1878 = vmul.f32 %v1874, %v1190
  %v1879 = vmul.f32 %v1874, %v1194
  %v1880 = vmul.f32 %v1874, %v1198
  %v1881 = vmul.f32 %v1874, %v1202
  %v1882 = vmul.f32 %v1874, %v1206
  %v1883 = vmul.f32 %v1874, %v1210
  %v1884 = vadd.f32 %v1864, %v1876
  %v1885 = vadd.f32 %v1865, %v1877
  %v1886 = vadd.f32 %v1866, %v1878
  %v1887 = vadd.f32 %v1867, %v1879
  %v1888 = vadd.f32 %v1868, %v1880
  %v1889 = vadd.f32 %v1869, %v1881
  %v1890 = vadd.f32 %v1870, %v1882
  %v1891 = vadd.f32 %v1871, %v1883
  %1892 = vset.pattern.permute.xlu0 32
  %1893 = vperm.xlu0 %1892, %v808
  %v1894 = vpop.permute.xlu0 %1893
  %v1896 = vmul.f32 %v1894, %v1234
  %v1897 = vmul.f32 %v1894, %v1238
  %v1898 = vmul.f32 %v1894, %v1242
  %v1899 = vmul.f32 %v1894, %v1246
  %v1900 = vmul.f32 %v1894, %v1250
  %v1901 = vmul.f32 %v1894, %v1254
  %v1902 = vmul.f32 %v1894, %v1258
  %v1903 = vmul.f32 %v1894, %v1262
  %v1904 = vadd.f32 %v1884, %v1896
  %v1905 = vadd.f32 %v1885, %v1897
  %v1906 = vadd.f32 %v1886, %v1898
  %v1907 = vadd.f32 %v1887, %v1899
  %v1908 = vadd.f32 %v1888, %v1900
  %v1909 = vadd.f32 %v1889, %v1901
  %v1910 = vadd.f32 %v1890, %v1902
  %v1911 = vadd.f32 %v1891, %v1903
  %1912 = vset.pattern.permute.xlu0 33
  %1913 = vperm.xlu0 %1912, %v808
  %v1914 = vpop.permute.xlu0 %1913
  %v1916 = vmul.f32 %v1914, %v1286
  %v1917 = vmul.f32 %v1914, %v1290
  %v1918 = vmul.f32 %v1914, %v1294
  %v1919 = vmul.f32 %v1914, %v1298
  %v1920 = vmul.f32 %v1914, %v1302
  %v1921 = vmul.f32 %v1914, %v1306
  %v1922 = vmul.f32 %v1914, %v1310
  %v1923 = vmul.f32 %v1914, %v1314
  %v1924 = vadd.f32 %v1904, %v1916
  %v1925 = vadd.f32 %v1905, %v1917
  %v1926 = vadd.f32 %v1906, %v1918
  %v1927 = vadd.f32 %v1907, %v1919
  %v1928 = vadd.f32 %v1908, %v1920
  %v1929 = vadd.f32 %v1909, %v1921
  %v1930 = vadd.f32 %v1910, %v1922
  %v1931 = vadd.f32 %v1911, %v1923
  %1932 = vset.pattern.permute.xlu0 34
  %1933 = vperm.xlu0 %1932, %v808
  %v1934 = vpop.permute.xlu0 %1933
  %v1936 = vmul.f32 %v1934, %v1338
  %v1937 = vmul.f32 %v1934, %v1342
  %v1938 = vmul.f32 %v1934, %v1346
  %v1939 = vmul.f32 %v1934, %v1350
  %v1940 = vmul.f32 %v1934, %v1354
  %v1941 = vmul.f32 %v1934, %v1358
  %v1942 = vmul.f32 %v1934, %v1362
  %v1943 = vmul.f32 %v1934, %v1366
  %v1944 = vadd.f32 %v1924, %v1936
  %v1945 = vadd.f32 %v1925, %v1937
  %v1946 = vadd.f32 %v1926, %v1938
  %v1947 = vadd.f32 %v1927, %v1939
  %v1948 = vadd.f32 %v1928, %v1940
  %v1949 = vadd.f32 %v1929, %v1941
  %v1950 = vadd.f32 %v1930, %v1942
  %v1951 = vadd.f32 %v1931, %v1943
  %1952 = vset.pattern.permute.xlu0 35
  %1953 = vperm.xlu0 %1952, %v808
  %v1954 = vpop.permute.xlu0 %1953
  %v1956 = vmul.f32 %v1954, %v1390
  %v1957 = vmul.f32 %v1954, %v1394
  %v1958 = vmul.f32 %v1954, %v1398
  %v1959 = vmul.f32 %v1954, %v1402
  %v1960 = vmul.f32 %v1954, %v1406
  %v1961 = vmul.f32 %v1954, %v1410
  %v1962 = vmul.f32 %v1954, %v1414
  %v1963 = vmul.f32 %v1954, %v1418
  %v1964 = vadd.f32 %v1944, %v1956
  %v1965 = vadd.f32 %v1945, %v1957
  %v1966 = vadd.f32 %v1946, %v1958
  %v1967 = vadd.f32 %v1947, %v1959
  %v1968 = vadd.f32 %v1948, %v1960
  %v1969 = vadd.f32 %v1949, %v1961
  %v1970 = vadd.f32 %v1950, %v1962
  %v1971 = vadd.f32 %v1951, %v1963
  %1980 = vrot.lane.b32.xlu0 %v1964, 96
  %v1981 = vpop.permute.xlu0 %1980
  %1982 = vrot.lane.b32.xlu0 %v1965, 96
  %v1983 = vpop.permute.xlu0 %1982
  %1984 = vrot.lane.b32.xlu0 %v1966, 96
  %v1985 = vpop.permute.xlu0 %1984
  %1986 = vrot.lane.b32.xlu0 %v1967, 96
  %v1987 = vpop.permute.xlu0 %1986
  %1988 = vrot.lane.b32.xlu0 %v1968, 96
  %v1989 = vpop.permute.xlu0 %1988
  %1990 = vrot.lane.b32.xlu0 %v1969, 96
  %v1991 = vpop.permute.xlu0 %1990
  %1992 = vrot.lane.b32.xlu0 %v1970, 96
  %v1993 = vpop.permute.xlu0 %1992
  %1994 = vrot.lane.b32.xlu0 %v1971, 96
  %v1995 = vpop.permute.xlu0 %1994
  %vm1996 = vcmask 785408
  %v1997 = vsel %vm1996, %v1981, %v1983
  %v1998 = vsel %vm1996, %v1983, %v1985
  %v1999 = vsel %vm1996, %v1985, %v1987
  %v2000 = vsel %vm1996, %v1987, %v1989
  %v2001 = vsel %vm1996, %v1989, %v1991
  %v2002 = vsel %vm1996, %v1991, %v1993
  %v2003 = vsel %vm1996, %v1993, %v1995
  %v2012 = vsel %vm1996, %v1995, 0.0
  %v2013 = vadd.f32 %v1724, %v1997
  %v2014 = vadd.f32 %v1725, %v1998
  %v2015 = vadd.f32 %v1726, %v1999
  %v2016 = vadd.f32 %v1727, %v2000
  %v2017 = vadd.f32 %v1728, %v2001
  %v2018 = vadd.f32 %v1729, %v2002
  %v2019 = vadd.f32 %v1730, %v2003
  %v2020 = vadd.f32 %v1731, %v2012
  %2022 = vset.pattern.permute.xlu0 0
  %2023 = vperm.xlu0 %2022, %v809
  %v2024 = vpop.permute.xlu0 %2023
  %v2026 = vadd.f32 %v2013, %v2024
  %v2027 = vadd.f32 %v2014, %v2024
  %v2028 = vadd.f32 %v2015, %v2024
  %v2029 = vadd.f32 %v2016, %v2024
  %v2030 = vadd.f32 %v2017, %v2024
  %v2031 = vadd.f32 %v2018, %v2024
  %v2032 = vadd.f32 %v2019, %v2024
  %v2033 = vadd.f32 %v2020, %v2024
  %v2042 = vcombine.low %v2026, %v2027
  %v2043 = vcombine.low %v2028, %v2029
  %v2044 = vcombine.low %v2030, %v2031
  %v2045 = vcombine.low %v2032, %v2033
  %2050 = vst [vmem:[%s4] sm:$0xff] %v2042
  %2051 = vst [vmem:[%s4 + $0x8] sm:$0xff] %v2043
  %2052 = vst [vmem:[%s4 + $0x10] sm:$0xff] %v2044
  %2053 = vst [vmem:[%s4 + $0x18] sm:$0xff] %v2045
  %v2054 = vlaneseq
  %v2055 = vshrl.u32 %v2054, 7
  %v2056 = vsub.s32 4, %v2055
  %v2057 = vrot.slane %v735, %v2056
  %v2058 = vlaneseq
  %v2059 = vshrl.u32 %v2058, 7
  %v2060 = vsub.s32 4, %v2059
  %v2061 = vrot.slane %v736, %v2060
  %v2062 = vlaneseq
  %v2063 = vshrl.u32 %v2062, 7
  %v2064 = vsub.s32 4, %v2063
  %v2065 = vrot.slane %v737, %v2064
  %v2066 = vlaneseq
  %v2067 = vshrl.u32 %v2066, 7
  %v2068 = vsub.s32 4, %v2067
  %v2069 = vrot.slane %v738, %v2068
  %v2070 = vlaneseq
  %v2071 = vshrl.u32 %v2070, 7
  %v2072 = vsub.s32 4, %v2071
  %v2073 = vrot.slane %v739, %v2072
  %v2074 = vlaneseq
  %v2075 = vshrl.u32 %v2074, 7
  %v2076 = vsub.s32 4, %v2075
  %v2077 = vrot.slane %v740, %v2076
  %v2078 = vlaneseq
  %v2079 = vshrl.u32 %v2078, 7
  %v2080 = vsub.s32 4, %v2079
  %v2081 = vrot.slane %v741, %v2080
  %v2082 = vlaneseq
  %v2083 = vshrl.u32 %v2082, 7
  %v2084 = vsub.s32 4, %v2083
  %v2085 = vrot.slane %v742, %v2084
  %v2086 = vmul.f32 %v813, %v2057
  %v2087 = vmul.f32 %v813, %v2061
  %v2088 = vmul.f32 %v813, %v2065
  %v2089 = vmul.f32 %v813, %v2069
  %v2090 = vmul.f32 %v813, %v2073
  %v2091 = vmul.f32 %v813, %v2077
  %v2092 = vmul.f32 %v813, %v2081
  %v2093 = vmul.f32 %v813, %v2085
  %v2094 = vadd.f32 %v2086, 0.0
  %v2095 = vadd.f32 %v2087, 0.0
  %v2096 = vadd.f32 %v2088, 0.0
  %v2097 = vadd.f32 %v2089, 0.0
  %v2098 = vadd.f32 %v2090, 0.0
  %v2099 = vadd.f32 %v2091, 0.0
  %v2100 = vadd.f32 %v2092, 0.0
  %v2101 = vadd.f32 %v2093, 0.0
  %v2102 = vlaneseq
  %v2103 = vshrl.u32 %v2102, 7
  %v2104 = vsub.s32 5, %v2103
  %v2105 = vrot.slane %v735, %v2104
  %v2106 = vlaneseq
  %v2107 = vshrl.u32 %v2106, 7
  %v2108 = vsub.s32 5, %v2107
  %v2109 = vrot.slane %v736, %v2108
  %v2110 = vlaneseq
  %v2111 = vshrl.u32 %v2110, 7
  %v2112 = vsub.s32 5, %v2111
  %v2113 = vrot.slane %v737, %v2112
  %v2114 = vlaneseq
  %v2115 = vshrl.u32 %v2114, 7
  %v2116 = vsub.s32 5, %v2115
  %v2117 = vrot.slane %v738, %v2116
  %v2118 = vlaneseq
  %v2119 = vshrl.u32 %v2118, 7
  %v2120 = vsub.s32 5, %v2119
  %v2121 = vrot.slane %v739, %v2120
  %v2122 = vlaneseq
  %v2123 = vshrl.u32 %v2122, 7
  %v2124 = vsub.s32 5, %v2123
  %v2125 = vrot.slane %v740, %v2124
  %v2126 = vlaneseq
  %v2127 = vshrl.u32 %v2126, 7
  %v2128 = vsub.s32 5, %v2127
  %v2129 = vrot.slane %v741, %v2128
  %v2130 = vlaneseq
  %v2131 = vshrl.u32 %v2130, 7
  %v2132 = vsub.s32 5, %v2131
  %v2133 = vrot.slane %v742, %v2132
  %v2134 = vmul.f32 %v865, %v2105
  %v2135 = vmul.f32 %v865, %v2109
  %v2136 = vmul.f32 %v865, %v2113
  %v2137 = vmul.f32 %v865, %v2117
  %v2138 = vmul.f32 %v865, %v2121
  %v2139 = vmul.f32 %v865, %v2125
  %v2140 = vmul.f32 %v865, %v2129
  %v2141 = vmul.f32 %v865, %v2133
  %v2142 = vadd.f32 %v2094, %v2134
  %v2143 = vadd.f32 %v2095, %v2135
  %v2144 = vadd.f32 %v2096, %v2136
  %v2145 = vadd.f32 %v2097, %v2137
  %v2146 = vadd.f32 %v2098, %v2138
  %v2147 = vadd.f32 %v2099, %v2139
  %v2148 = vadd.f32 %v2100, %v2140
  %v2149 = vadd.f32 %v2101, %v2141
  %v2150 = vlaneseq
  %v2151 = vshrl.u32 %v2150, 7
  %v2152 = vsub.s32 6, %v2151
  %v2153 = vrot.slane %v735, %v2152
  %v2154 = vlaneseq
  %v2155 = vshrl.u32 %v2154, 7
  %v2156 = vsub.s32 6, %v2155
  %v2157 = vrot.slane %v736, %v2156
  %v2158 = vlaneseq
  %v2159 = vshrl.u32 %v2158, 7
  %v2160 = vsub.s32 6, %v2159
  %v2161 = vrot.slane %v737, %v2160
  %v2162 = vlaneseq
  %v2163 = vshrl.u32 %v2162, 7
  %v2164 = vsub.s32 6, %v2163
  %v2165 = vrot.slane %v738, %v2164
  %v2166 = vlaneseq
  %v2167 = vshrl.u32 %v2166, 7
  %v2168 = vsub.s32 6, %v2167
  %v2169 = vrot.slane %v739, %v2168
  %v2170 = vlaneseq
  %v2171 = vshrl.u32 %v2170, 7
  %v2172 = vsub.s32 6, %v2171
  %v2173 = vrot.slane %v740, %v2172
  %v2174 = vlaneseq
  %v2175 = vshrl.u32 %v2174, 7
  %v2176 = vsub.s32 6, %v2175
  %v2177 = vrot.slane %v741, %v2176
  %v2178 = vlaneseq
  %v2179 = vshrl.u32 %v2178, 7
  %v2180 = vsub.s32 6, %v2179
  %v2181 = vrot.slane %v742, %v2180
  %v2182 = vmul.f32 %v917, %v2153
  %v2183 = vmul.f32 %v917, %v2157
  %v2184 = vmul.f32 %v917, %v2161
  %v2185 = vmul.f32 %v917, %v2165
  %v2186 = vmul.f32 %v917, %v2169
  %v2187 = vmul.f32 %v917, %v2173
  %v2188 = vmul.f32 %v917, %v2177
  %v2189 = vmul.f32 %v917, %v2181
  %v2190 = vadd.f32 %v2142, %v2182
  %v2191 = vadd.f32 %v2143, %v2183
  %v2192 = vadd.f32 %v2144, %v2184
  %v2193 = vadd.f32 %v2145, %v2185
  %v2194 = vadd.f32 %v2146, %v2186
  %v2195 = vadd.f32 %v2147, %v2187
  %v2196 = vadd.f32 %v2148, %v2188
  %v2197 = vadd.f32 %v2149, %v2189
  %v2198 = vlaneseq
  %v2199 = vshrl.u32 %v2198, 7
  %v2200 = vsub.s32 7, %v2199
  %v2201 = vrot.slane %v735, %v2200
  %v2202 = vlaneseq
  %v2203 = vshrl.u32 %v2202, 7
  %v2204 = vsub.s32 7, %v2203
  %v2205 = vrot.slane %v736, %v2204
  %v2206 = vlaneseq
  %v2207 = vshrl.u32 %v2206, 7
  %v2208 = vsub.s32 7, %v2207
  %v2209 = vrot.slane %v737, %v2208
  %v2210 = vlaneseq
  %v2211 = vshrl.u32 %v2210, 7
  %v2212 = vsub.s32 7, %v2211
  %v2213 = vrot.slane %v738, %v2212
  %v2214 = vlaneseq
  %v2215 = vshrl.u32 %v2214, 7
  %v2216 = vsub.s32 7, %v2215
  %v2217 = vrot.slane %v739, %v2216
  %v2218 = vlaneseq
  %v2219 = vshrl.u32 %v2218, 7
  %v2220 = vsub.s32 7, %v2219
  %v2221 = vrot.slane %v740, %v2220
  %v2222 = vlaneseq
  %v2223 = vshrl.u32 %v2222, 7
  %v2224 = vsub.s32 7, %v2223
  %v2225 = vrot.slane %v741, %v2224
  %v2226 = vlaneseq
  %v2227 = vshrl.u32 %v2226, 7
  %v2228 = vsub.s32 7, %v2227
  %v2229 = vrot.slane %v742, %v2228
  %v2230 = vmul.f32 %v969, %v2201
  %v2231 = vmul.f32 %v969, %v2205
  %v2232 = vmul.f32 %v969, %v2209
  %v2233 = vmul.f32 %v969, %v2213
  %v2234 = vmul.f32 %v969, %v2217
  %v2235 = vmul.f32 %v969, %v2221
  %v2236 = vmul.f32 %v969, %v2225
  %v2237 = vmul.f32 %v969, %v2229
  %v2238 = vadd.f32 %v2190, %v2230
  %v2239 = vadd.f32 %v2191, %v2231
  %v2240 = vadd.f32 %v2192, %v2232
  %v2241 = vadd.f32 %v2193, %v2233
  %v2242 = vadd.f32 %v2194, %v2234
  %v2243 = vadd.f32 %v2195, %v2235
  %v2244 = vadd.f32 %v2196, %v2236
  %v2245 = vadd.f32 %v2197, %v2237
  %v2246 = vlaneseq
  %v2247 = vshrl.u32 %v2246, 7
  %v2248 = vsub.s32 4, %v2247
  %v2249 = vrot.slane %v348, %v2248
  %v2250 = vlaneseq
  %v2251 = vshrl.u32 %v2250, 7
  %v2252 = vsub.s32 4, %v2251
  %v2253 = vrot.slane %v350, %v2252
  %v2254 = vlaneseq
  %v2255 = vshrl.u32 %v2254, 7
  %v2256 = vsub.s32 4, %v2255
  %v2257 = vrot.slane %v419, %v2256
  %v2258 = vlaneseq
  %v2259 = vshrl.u32 %v2258, 7
  %v2260 = vsub.s32 4, %v2259
  %v2261 = vrot.slane %v421, %v2260
  %v2262 = vlaneseq
  %v2263 = vshrl.u32 %v2262, 7
  %v2264 = vsub.s32 4, %v2263
  %v2265 = vrot.slane %v490, %v2264
  %v2266 = vlaneseq
  %v2267 = vshrl.u32 %v2266, 7
  %v2268 = vsub.s32 4, %v2267
  %v2269 = vrot.slane %v492, %v2268
  %v2270 = vlaneseq
  %v2271 = vshrl.u32 %v2270, 7
  %v2272 = vsub.s32 4, %v2271
  %v2273 = vrot.slane %v561, %v2272
  %v2274 = vlaneseq
  %v2275 = vshrl.u32 %v2274, 7
  %v2276 = vsub.s32 4, %v2275
  %v2277 = vrot.slane %v563, %v2276
  %v2278 = vmul.f32 %v1021, %v2249
  %v2279 = vmul.f32 %v1021, %v2253
  %v2280 = vmul.f32 %v1021, %v2257
  %v2281 = vmul.f32 %v1021, %v2261
  %v2282 = vmul.f32 %v1021, %v2265
  %v2283 = vmul.f32 %v1021, %v2269
  %v2284 = vmul.f32 %v1021, %v2273
  %v2285 = vmul.f32 %v1021, %v2277
  %v2286 = vadd.f32 %v2238, %v2278
  %v2287 = vadd.f32 %v2239, %v2279
  %v2288 = vadd.f32 %v2240, %v2280
  %v2289 = vadd.f32 %v2241, %v2281
  %v2290 = vadd.f32 %v2242, %v2282
  %v2291 = vadd.f32 %v2243, %v2283
  %v2292 = vadd.f32 %v2244, %v2284
  %v2293 = vadd.f32 %v2245, %v2285
  %v2294 = vlaneseq
  %v2295 = vshrl.u32 %v2294, 7
  %v2296 = vsub.s32 5, %v2295
  %v2297 = vrot.slane %v348, %v2296
  %v2298 = vlaneseq
  %v2299 = vshrl.u32 %v2298, 7
  %v2300 = vsub.s32 5, %v2299
  %v2301 = vrot.slane %v350, %v2300
  %v2302 = vlaneseq
  %v2303 = vshrl.u32 %v2302, 7
  %v2304 = vsub.s32 5, %v2303
  %v2305 = vrot.slane %v419, %v2304
  %v2306 = vlaneseq
  %v2307 = vshrl.u32 %v2306, 7
  %v2308 = vsub.s32 5, %v2307
  %v2309 = vrot.slane %v421, %v2308
  %v2310 = vlaneseq
  %v2311 = vshrl.u32 %v2310, 7
  %v2312 = vsub.s32 5, %v2311
  %v2313 = vrot.slane %v490, %v2312
  %v2314 = vlaneseq
  %v2315 = vshrl.u32 %v2314, 7
  %v2316 = vsub.s32 5, %v2315
  %v2317 = vrot.slane %v492, %v2316
  %v2318 = vlaneseq
  %v2319 = vshrl.u32 %v2318, 7
  %v2320 = vsub.s32 5, %v2319
  %v2321 = vrot.slane %v561, %v2320
  %v2322 = vlaneseq
  %v2323 = vshrl.u32 %v2322, 7
  %v2324 = vsub.s32 5, %v2323
  %v2325 = vrot.slane %v563, %v2324
  %v2326 = vmul.f32 %v1073, %v2297
  %v2327 = vmul.f32 %v1073, %v2301
  %v2328 = vmul.f32 %v1073, %v2305
  %v2329 = vmul.f32 %v1073, %v2309
  %v2330 = vmul.f32 %v1073, %v2313
  %v2331 = vmul.f32 %v1073, %v2317
  %v2332 = vmul.f32 %v1073, %v2321
  %v2333 = vmul.f32 %v1073, %v2325
  %v2334 = vadd.f32 %v2286, %v2326
  %v2335 = vadd.f32 %v2287, %v2327
  %v2336 = vadd.f32 %v2288, %v2328
  %v2337 = vadd.f32 %v2289, %v2329
  %v2338 = vadd.f32 %v2290, %v2330
  %v2339 = vadd.f32 %v2291, %v2331
  %v2340 = vadd.f32 %v2292, %v2332
  %v2341 = vadd.f32 %v2293, %v2333
  %v2342 = vlaneseq
  %v2343 = vshrl.u32 %v2342, 7
  %v2344 = vsub.s32 6, %v2343
  %v2345 = vrot.slane %v348, %v2344
  %v2346 = vlaneseq
  %v2347 = vshrl.u32 %v2346, 7
  %v2348 = vsub.s32 6, %v2347
  %v2349 = vrot.slane %v350, %v2348
  %v2350 = vlaneseq
  %v2351 = vshrl.u32 %v2350, 7
  %v2352 = vsub.s32 6, %v2351
  %v2353 = vrot.slane %v419, %v2352
  %v2354 = vlaneseq
  %v2355 = vshrl.u32 %v2354, 7
  %v2356 = vsub.s32 6, %v2355
  %v2357 = vrot.slane %v421, %v2356
  %v2358 = vlaneseq
  %v2359 = vshrl.u32 %v2358, 7
  %v2360 = vsub.s32 6, %v2359
  %v2361 = vrot.slane %v490, %v2360
  %v2362 = vlaneseq
  %v2363 = vshrl.u32 %v2362, 7
  %v2364 = vsub.s32 6, %v2363
  %v2365 = vrot.slane %v492, %v2364
  %v2366 = vlaneseq
  %v2367 = vshrl.u32 %v2366, 7
  %v2368 = vsub.s32 6, %v2367
  %v2369 = vrot.slane %v561, %v2368
  %v2370 = vlaneseq
  %v2371 = vshrl.u32 %v2370, 7
  %v2372 = vsub.s32 6, %v2371
  %v2373 = vrot.slane %v563, %v2372
  %v2374 = vmul.f32 %v1125, %v2345
  %v2375 = vmul.f32 %v1125, %v2349
  %v2376 = vmul.f32 %v1125, %v2353
  %v2377 = vmul.f32 %v1125, %v2357
  %v2378 = vmul.f32 %v1125, %v2361
  %v2379 = vmul.f32 %v1125, %v2365
  %v2380 = vmul.f32 %v1125, %v2369
  %v2381 = vmul.f32 %v1125, %v2373
  %v2382 = vadd.f32 %v2334, %v2374
  %v2383 = vadd.f32 %v2335, %v2375
  %v2384 = vadd.f32 %v2336, %v2376
  %v2385 = vadd.f32 %v2337, %v2377
  %v2386 = vadd.f32 %v2338, %v2378
  %v2387 = vadd.f32 %v2339, %v2379
  %v2388 = vadd.f32 %v2340, %v2380
  %v2389 = vadd.f32 %v2341, %v2381
  %v2390 = vlaneseq
  %v2391 = vshrl.u32 %v2390, 7
  %v2392 = vsub.s32 7, %v2391
  %v2393 = vrot.slane %v348, %v2392
  %v2394 = vlaneseq
  %v2395 = vshrl.u32 %v2394, 7
  %v2396 = vsub.s32 7, %v2395
  %v2397 = vrot.slane %v350, %v2396
  %v2398 = vlaneseq
  %v2399 = vshrl.u32 %v2398, 7
  %v2400 = vsub.s32 7, %v2399
  %v2401 = vrot.slane %v419, %v2400
  %v2402 = vlaneseq
  %v2403 = vshrl.u32 %v2402, 7
  %v2404 = vsub.s32 7, %v2403
  %v2405 = vrot.slane %v421, %v2404
  %v2406 = vlaneseq
  %v2407 = vshrl.u32 %v2406, 7
  %v2408 = vsub.s32 7, %v2407
  %v2409 = vrot.slane %v490, %v2408
  %v2410 = vlaneseq
  %v2411 = vshrl.u32 %v2410, 7
  %v2412 = vsub.s32 7, %v2411
  %v2413 = vrot.slane %v492, %v2412
  %v2414 = vlaneseq
  %v2415 = vshrl.u32 %v2414, 7
  %v2416 = vsub.s32 7, %v2415
  %v2417 = vrot.slane %v561, %v2416
  %v2418 = vlaneseq
  %v2419 = vshrl.u32 %v2418, 7
  %v2420 = vsub.s32 7, %v2419
  %v2421 = vrot.slane %v563, %v2420
  %v2422 = vmul.f32 %v1177, %v2393
  %v2423 = vmul.f32 %v1177, %v2397
  %v2424 = vmul.f32 %v1177, %v2401
  %v2425 = vmul.f32 %v1177, %v2405
  %v2426 = vmul.f32 %v1177, %v2409
  %v2427 = vmul.f32 %v1177, %v2413
  %v2428 = vmul.f32 %v1177, %v2417
  %v2429 = vmul.f32 %v1177, %v2421
  %v2430 = vadd.f32 %v2382, %v2422
  %v2431 = vadd.f32 %v2383, %v2423
  %v2432 = vadd.f32 %v2384, %v2424
  %v2433 = vadd.f32 %v2385, %v2425
  %v2434 = vadd.f32 %v2386, %v2426
  %v2435 = vadd.f32 %v2387, %v2427
  %v2436 = vadd.f32 %v2388, %v2428
  %v2437 = vadd.f32 %v2389, %v2429
  %v2438 = vlaneseq
  %v2439 = vshrl.u32 %v2438, 7
  %v2440 = vsub.s32 4, %v2439
  %v2441 = vrot.slane %v800, %v2440
  %v2442 = vlaneseq
  %v2443 = vshrl.u32 %v2442, 7
  %v2444 = vsub.s32 4, %v2443
  %v2445 = vrot.slane %v801, %v2444
  %v2446 = vlaneseq
  %v2447 = vshrl.u32 %v2446, 7
  %v2448 = vsub.s32 4, %v2447
  %v2449 = vrot.slane %v802, %v2448
  %v2450 = vlaneseq
  %v2451 = vshrl.u32 %v2450, 7
  %v2452 = vsub.s32 4, %v2451
  %v2453 = vrot.slane %v803, %v2452
  %v2454 = vlaneseq
  %v2455 = vshrl.u32 %v2454, 7
  %v2456 = vsub.s32 4, %v2455
  %v2457 = vrot.slane %v804, %v2456
  %v2458 = vlaneseq
  %v2459 = vshrl.u32 %v2458, 7
  %v2460 = vsub.s32 4, %v2459
  %v2461 = vrot.slane %v805, %v2460
  %v2462 = vlaneseq
  %v2463 = vshrl.u32 %v2462, 7
  %v2464 = vsub.s32 4, %v2463
  %v2465 = vrot.slane %v806, %v2464
  %v2466 = vlaneseq
  %v2467 = vshrl.u32 %v2466, 7
  %v2468 = vsub.s32 4, %v2467
  %v2469 = vrot.slane %v807, %v2468
  %v2470 = vmul.f32 %v1229, %v2441
  %v2471 = vmul.f32 %v1229, %v2445
  %v2472 = vmul.f32 %v1229, %v2449
  %v2473 = vmul.f32 %v1229, %v2453
  %v2474 = vmul.f32 %v1229, %v2457
  %v2475 = vmul.f32 %v1229, %v2461
  %v2476 = vmul.f32 %v1229, %v2465
  %v2477 = vmul.f32 %v1229, %v2469
  %v2478 = vadd.f32 %v2430, %v2470
  %v2479 = vadd.f32 %v2431, %v2471
  %v2480 = vadd.f32 %v2432, %v2472
  %v2481 = vadd.f32 %v2433, %v2473
  %v2482 = vadd.f32 %v2434, %v2474
  %v2483 = vadd.f32 %v2435, %v2475
  %v2484 = vadd.f32 %v2436, %v2476
  %v2485 = vadd.f32 %v2437, %v2477
  %v2486 = vlaneseq
  %v2487 = vshrl.u32 %v2486, 7
  %v2488 = vsub.s32 5, %v2487
  %v2489 = vrot.slane %v800, %v2488
  %v2490 = vlaneseq
  %v2491 = vshrl.u32 %v2490, 7
  %v2492 = vsub.s32 5, %v2491
  %v2493 = vrot.slane %v801, %v2492
  %v2494 = vlaneseq
  %v2495 = vshrl.u32 %v2494, 7
  %v2496 = vsub.s32 5, %v2495
  %v2497 = vrot.slane %v802, %v2496
  %v2498 = vlaneseq
  %v2499 = vshrl.u32 %v2498, 7
  %v2500 = vsub.s32 5, %v2499
  %v2501 = vrot.slane %v803, %v2500
  %v2502 = vlaneseq
  %v2503 = vshrl.u32 %v2502, 7
  %v2504 = vsub.s32 5, %v2503
  %v2505 = vrot.slane %v804, %v2504
  %v2506 = vlaneseq
  %v2507 = vshrl.u32 %v2506, 7
  %v2508 = vsub.s32 5, %v2507
  %v2509 = vrot.slane %v805, %v2508
  %v2510 = vlaneseq
  %v2511 = vshrl.u32 %v2510, 7
  %v2512 = vsub.s32 5, %v2511
  %v2513 = vrot.slane %v806, %v2512
  %v2514 = vlaneseq
  %v2515 = vshrl.u32 %v2514, 7
  %v2516 = vsub.s32 5, %v2515
  %v2517 = vrot.slane %v807, %v2516
  %v2518 = vmul.f32 %v1281, %v2489
  %v2519 = vmul.f32 %v1281, %v2493
  %v2520 = vmul.f32 %v1281, %v2497
  %v2521 = vmul.f32 %v1281, %v2501
  %v2522 = vmul.f32 %v1281, %v2505
  %v2523 = vmul.f32 %v1281, %v2509
  %v2524 = vmul.f32 %v1281, %v2513
  %v2525 = vmul.f32 %v1281, %v2517
  %v2526 = vadd.f32 %v2478, %v2518
  %v2527 = vadd.f32 %v2479, %v2519
  %v2528 = vadd.f32 %v2480, %v2520
  %v2529 = vadd.f32 %v2481, %v2521
  %v2530 = vadd.f32 %v2482, %v2522
  %v2531 = vadd.f32 %v2483, %v2523
  %v2532 = vadd.f32 %v2484, %v2524
  %v2533 = vadd.f32 %v2485, %v2525
  %v2534 = vlaneseq
  %v2535 = vshrl.u32 %v2534, 7
  %v2536 = vsub.s32 6, %v2535
  %v2537 = vrot.slane %v800, %v2536
  %v2538 = vlaneseq
  %v2539 = vshrl.u32 %v2538, 7
  %v2540 = vsub.s32 6, %v2539
  %v2541 = vrot.slane %v801, %v2540
  %v2542 = vlaneseq
  %v2543 = vshrl.u32 %v2542, 7
  %v2544 = vsub.s32 6, %v2543
  %v2545 = vrot.slane %v802, %v2544
  %v2546 = vlaneseq
  %v2547 = vshrl.u32 %v2546, 7
  %v2548 = vsub.s32 6, %v2547
  %v2549 = vrot.slane %v803, %v2548
  %v2550 = vlaneseq
  %v2551 = vshrl.u32 %v2550, 7
  %v2552 = vsub.s32 6, %v2551
  %v2553 = vrot.slane %v804, %v2552
  %v2554 = vlaneseq
  %v2555 = vshrl.u32 %v2554, 7
  %v2556 = vsub.s32 6, %v2555
  %v2557 = vrot.slane %v805, %v2556
  %v2558 = vlaneseq
  %v2559 = vshrl.u32 %v2558, 7
  %v2560 = vsub.s32 6, %v2559
  %v2561 = vrot.slane %v806, %v2560
  %v2562 = vlaneseq
  %v2563 = vshrl.u32 %v2562, 7
  %v2564 = vsub.s32 6, %v2563
  %v2565 = vrot.slane %v807, %v2564
  %v2566 = vmul.f32 %v1333, %v2537
  %v2567 = vmul.f32 %v1333, %v2541
  %v2568 = vmul.f32 %v1333, %v2545
  %v2569 = vmul.f32 %v1333, %v2549
  %v2570 = vmul.f32 %v1333, %v2553
  %v2571 = vmul.f32 %v1333, %v2557
  %v2572 = vmul.f32 %v1333, %v2561
  %v2573 = vmul.f32 %v1333, %v2565
  %v2574 = vadd.f32 %v2526, %v2566
  %v2575 = vadd.f32 %v2527, %v2567
  %v2576 = vadd.f32 %v2528, %v2568
  %v2577 = vadd.f32 %v2529, %v2569
  %v2578 = vadd.f32 %v2530, %v2570
  %v2579 = vadd.f32 %v2531, %v2571
  %v2580 = vadd.f32 %v2532, %v2572
  %v2581 = vadd.f32 %v2533, %v2573
  %v2582 = vlaneseq
  %v2583 = vshrl.u32 %v2582, 7
  %v2584 = vsub.s32 7, %v2583
  %v2585 = vrot.slane %v800, %v2584
  %v2586 = vlaneseq
  %v2587 = vshrl.u32 %v2586, 7
  %v2588 = vsub.s32 7, %v2587
  %v2589 = vrot.slane %v801, %v2588
  %v2590 = vlaneseq
  %v2591 = vshrl.u32 %v2590, 7
  %v2592 = vsub.s32 7, %v2591
  %v2593 = vrot.slane %v802, %v2592
  %v2594 = vlaneseq
  %v2595 = vshrl.u32 %v2594, 7
  %v2596 = vsub.s32 7, %v2595
  %v2597 = vrot.slane %v803, %v2596
  %v2598 = vlaneseq
  %v2599 = vshrl.u32 %v2598, 7
  %v2600 = vsub.s32 7, %v2599
  %v2601 = vrot.slane %v804, %v2600
  %v2602 = vlaneseq
  %v2603 = vshrl.u32 %v2602, 7
  %v2604 = vsub.s32 7, %v2603
  %v2605 = vrot.slane %v805, %v2604
  %v2606 = vlaneseq
  %v2607 = vshrl.u32 %v2606, 7
  %v2608 = vsub.s32 7, %v2607
  %v2609 = vrot.slane %v806, %v2608
  %v2610 = vlaneseq
  %v2611 = vshrl.u32 %v2610, 7
  %v2612 = vsub.s32 7, %v2611
  %v2613 = vrot.slane %v807, %v2612
  %v2614 = vmul.f32 %v1385, %v2585
  %v2615 = vmul.f32 %v1385, %v2589
  %v2616 = vmul.f32 %v1385, %v2593
  %v2617 = vmul.f32 %v1385, %v2597
  %v2618 = vmul.f32 %v1385, %v2601
  %v2619 = vmul.f32 %v1385, %v2605
  %v2620 = vmul.f32 %v1385, %v2609
  %v2621 = vmul.f32 %v1385, %v2613
  %v2622 = vadd.f32 %v2574, %v2614
  %v2623 = vadd.f32 %v2575, %v2615
  %v2624 = vadd.f32 %v2576, %v2616
  %v2625 = vadd.f32 %v2577, %v2617
  %v2626 = vadd.f32 %v2578, %v2618
  %v2627 = vadd.f32 %v2579, %v2619
  %v2628 = vadd.f32 %v2580, %v2620
  %v2629 = vadd.f32 %v2581, %v2621
  %2638 = vrot.lane.b32.xlu0 %v2622, 32
  %v2639 = vpop.permute.xlu0 %2638
  %2640 = vrot.lane.b32.xlu0 %v2623, 32
  %v2641 = vpop.permute.xlu0 %2640
  %2642 = vrot.lane.b32.xlu0 %v2624, 32
  %v2643 = vpop.permute.xlu0 %2642
  %2644 = vrot.lane.b32.xlu0 %v2625, 32
  %v2645 = vpop.permute.xlu0 %2644
  %2646 = vrot.lane.b32.xlu0 %v2626, 32
  %v2647 = vpop.permute.xlu0 %2646
  %2648 = vrot.lane.b32.xlu0 %v2627, 32
  %v2649 = vpop.permute.xlu0 %2648
  %2650 = vrot.lane.b32.xlu0 %v2628, 32
  %v2651 = vpop.permute.xlu0 %2650
  %2652 = vrot.lane.b32.xlu0 %v2629, 32
  %v2653 = vpop.permute.xlu0 %2652
  %v2654 = vsel %vm1459, %v2639, %v2641
  %v2655 = vsel %vm1459, %v2641, %v2643
  %v2656 = vsel %vm1459, %v2643, %v2645
  %v2657 = vsel %vm1459, %v2645, %v2647
  %v2658 = vsel %vm1459, %v2647, %v2649
  %v2659 = vsel %vm1459, %v2649, %v2651
  %v2660 = vsel %vm1459, %v2651, %v2653
  %v2669 = vsel %vm1459, 0.0, %v2639
  %v2670 = vadd.f32 %v2669, 0.0
  %v2671 = vadd.f32 %v2654, 0.0
  %v2672 = vadd.f32 %v2655, 0.0
  %v2673 = vadd.f32 %v2656, 0.0
  %v2674 = vadd.f32 %v2657, 0.0
  %v2675 = vadd.f32 %v2658, 0.0
  %v2676 = vadd.f32 %v2659, 0.0
  %v2677 = vadd.f32 %v2660, 0.0
  %v2678 = vmul.f32 %v1486, %v2057
  %v2679 = vmul.f32 %v1486, %v2061
  %v2680 = vmul.f32 %v1486, %v2065
  %v2681 = vmul.f32 %v1486, %v2069
  %v2682 = vmul.f32 %v1486, %v2073
  %v2683 = vmul.f32 %v1486, %v2077
  %v2684 = vmul.f32 %v1486, %v2081
  %v2685 = vmul.f32 %v1486, %v2085
  %v2686 = vadd.f32 %v2678, 0.0
  %v2687 = vadd.f32 %v2679, 0.0
  %v2688 = vadd.f32 %v2680, 0.0
  %v2689 = vadd.f32 %v2681, 0.0
  %v2690 = vadd.f32 %v2682, 0.0
  %v2691 = vadd.f32 %v2683, 0.0
  %v2692 = vadd.f32 %v2684, 0.0
  %v2693 = vadd.f32 %v2685, 0.0
  %v2694 = vmul.f32 %v1506, %v2105
  %v2695 = vmul.f32 %v1506, %v2109
  %v2696 = vmul.f32 %v1506, %v2113
  %v2697 = vmul.f32 %v1506, %v2117
  %v2698 = vmul.f32 %v1506, %v2121
  %v2699 = vmul.f32 %v1506, %v2125
  %v2700 = vmul.f32 %v1506, %v2129
  %v2701 = vmul.f32 %v1506, %v2133
  %v2702 = vadd.f32 %v2686, %v2694
  %v2703 = vadd.f32 %v2687, %v2695
  %v2704 = vadd.f32 %v2688, %v2696
  %v2705 = vadd.f32 %v2689, %v2697
  %v2706 = vadd.f32 %v2690, %v2698
  %v2707 = vadd.f32 %v2691, %v2699
  %v2708 = vadd.f32 %v2692, %v2700
  %v2709 = vadd.f32 %v2693, %v2701
  %v2710 = vmul.f32 %v1526, %v2153
  %v2711 = vmul.f32 %v1526, %v2157
  %v2712 = vmul.f32 %v1526, %v2161
  %v2713 = vmul.f32 %v1526, %v2165
  %v2714 = vmul.f32 %v1526, %v2169
  %v2715 = vmul.f32 %v1526, %v2173
  %v2716 = vmul.f32 %v1526, %v2177
  %v2717 = vmul.f32 %v1526, %v2181
  %v2718 = vadd.f32 %v2702, %v2710
  %v2719 = vadd.f32 %v2703, %v2711
  %v2720 = vadd.f32 %v2704, %v2712
  %v2721 = vadd.f32 %v2705, %v2713
  %v2722 = vadd.f32 %v2706, %v2714
  %v2723 = vadd.f32 %v2707, %v2715
  %v2724 = vadd.f32 %v2708, %v2716
  %v2725 = vadd.f32 %v2709, %v2717
  %v2726 = vmul.f32 %v1546, %v2201
  %v2727 = vmul.f32 %v1546, %v2205
  %v2728 = vmul.f32 %v1546, %v2209
  %v2729 = vmul.f32 %v1546, %v2213
  %v2730 = vmul.f32 %v1546, %v2217
  %v2731 = vmul.f32 %v1546, %v2221
  %v2732 = vmul.f32 %v1546, %v2225
  %v2733 = vmul.f32 %v1546, %v2229
  %v2734 = vadd.f32 %v2718, %v2726
  %v2735 = vadd.f32 %v2719, %v2727
  %v2736 = vadd.f32 %v2720, %v2728
  %v2737 = vadd.f32 %v2721, %v2729
  %v2738 = vadd.f32 %v2722, %v2730
  %v2739 = vadd.f32 %v2723, %v2731
  %v2740 = vadd.f32 %v2724, %v2732
  %v2741 = vadd.f32 %v2725, %v2733
  %v2742 = vmul.f32 %v1566, %v2249
  %v2743 = vmul.f32 %v1566, %v2253
  %v2744 = vmul.f32 %v1566, %v2257
  %v2745 = vmul.f32 %v1566, %v2261
  %v2746 = vmul.f32 %v1566, %v2265
  %v2747 = vmul.f32 %v1566, %v2269
  %v2748 = vmul.f32 %v1566, %v2273
  %v2749 = vmul.f32 %v1566, %v2277
  %v2750 = vadd.f32 %v2734, %v2742
  %v2751 = vadd.f32 %v2735, %v2743
  %v2752 = vadd.f32 %v2736, %v2744
  %v2753 = vadd.f32 %v2737, %v2745
  %v2754 = vadd.f32 %v2738, %v2746
  %v2755 = vadd.f32 %v2739, %v2747
  %v2756 = vadd.f32 %v2740, %v2748
  %v2757 = vadd.f32 %v2741, %v2749
  %v2758 = vmul.f32 %v1586, %v2297
  %v2759 = vmul.f32 %v1586, %v2301
  %v2760 = vmul.f32 %v1586, %v2305
  %v2761 = vmul.f32 %v1586, %v2309
  %v2762 = vmul.f32 %v1586, %v2313
  %v2763 = vmul.f32 %v1586, %v2317
  %v2764 = vmul.f32 %v1586, %v2321
  %v2765 = vmul.f32 %v1586, %v2325
  %v2766 = vadd.f32 %v2750, %v2758
  %v2767 = vadd.f32 %v2751, %v2759
  %v2768 = vadd.f32 %v2752, %v2760
  %v2769 = vadd.f32 %v2753, %v2761
  %v2770 = vadd.f32 %v2754, %v2762
  %v2771 = vadd.f32 %v2755, %v2763
  %v2772 = vadd.f32 %v2756, %v2764
  %v2773 = vadd.f32 %v2757, %v2765
  %v2774 = vmul.f32 %v1606, %v2345
  %v2775 = vmul.f32 %v1606, %v2349
  %v2776 = vmul.f32 %v1606, %v2353
  %v2777 = vmul.f32 %v1606, %v2357
  %v2778 = vmul.f32 %v1606, %v2361
  %v2779 = vmul.f32 %v1606, %v2365
  %v2780 = vmul.f32 %v1606, %v2369
  %v2781 = vmul.f32 %v1606, %v2373
  %v2782 = vadd.f32 %v2766, %v2774
  %v2783 = vadd.f32 %v2767, %v2775
  %v2784 = vadd.f32 %v2768, %v2776
  %v2785 = vadd.f32 %v2769, %v2777
  %v2786 = vadd.f32 %v2770, %v2778
  %v2787 = vadd.f32 %v2771, %v2779
  %v2788 = vadd.f32 %v2772, %v2780
  %v2789 = vadd.f32 %v2773, %v2781
  %v2790 = vmul.f32 %v1626, %v2393
  %v2791 = vmul.f32 %v1626, %v2397
  %v2792 = vmul.f32 %v1626, %v2401
  %v2793 = vmul.f32 %v1626, %v2405
  %v2794 = vmul.f32 %v1626, %v2409
  %v2795 = vmul.f32 %v1626, %v2413
  %v2796 = vmul.f32 %v1626, %v2417
  %v2797 = vmul.f32 %v1626, %v2421
  %v2798 = vadd.f32 %v2782, %v2790
  %v2799 = vadd.f32 %v2783, %v2791
  %v2800 = vadd.f32 %v2784, %v2792
  %v2801 = vadd.f32 %v2785, %v2793
  %v2802 = vadd.f32 %v2786, %v2794
  %v2803 = vadd.f32 %v2787, %v2795
  %v2804 = vadd.f32 %v2788, %v2796
  %v2805 = vadd.f32 %v2789, %v2797
  %v2806 = vmul.f32 %v1646, %v2441
  %v2807 = vmul.f32 %v1646, %v2445
  %v2808 = vmul.f32 %v1646, %v2449
  %v2809 = vmul.f32 %v1646, %v2453
  %v2810 = vmul.f32 %v1646, %v2457
  %v2811 = vmul.f32 %v1646, %v2461
  %v2812 = vmul.f32 %v1646, %v2465
  %v2813 = vmul.f32 %v1646, %v2469
  %v2814 = vadd.f32 %v2798, %v2806
  %v2815 = vadd.f32 %v2799, %v2807
  %v2816 = vadd.f32 %v2800, %v2808
  %v2817 = vadd.f32 %v2801, %v2809
  %v2818 = vadd.f32 %v2802, %v2810
  %v2819 = vadd.f32 %v2803, %v2811
  %v2820 = vadd.f32 %v2804, %v2812
  %v2821 = vadd.f32 %v2805, %v2813
  %v2822 = vmul.f32 %v1666, %v2489
  %v2823 = vmul.f32 %v1666, %v2493
  %v2824 = vmul.f32 %v1666, %v2497
  %v2825 = vmul.f32 %v1666, %v2501
  %v2826 = vmul.f32 %v1666, %v2505
  %v2827 = vmul.f32 %v1666, %v2509
  %v2828 = vmul.f32 %v1666, %v2513
  %v2829 = vmul.f32 %v1666, %v2517
  %v2830 = vadd.f32 %v2814, %v2822
  %v2831 = vadd.f32 %v2815, %v2823
  %v2832 = vadd.f32 %v2816, %v2824
  %v2833 = vadd.f32 %v2817, %v2825
  %v2834 = vadd.f32 %v2818, %v2826
  %v2835 = vadd.f32 %v2819, %v2827
  %v2836 = vadd.f32 %v2820, %v2828
  %v2837 = vadd.f32 %v2821, %v2829
  %v2838 = vmul.f32 %v1686, %v2537
  %v2839 = vmul.f32 %v1686, %v2541
  %v2840 = vmul.f32 %v1686, %v2545
  %v2841 = vmul.f32 %v1686, %v2549
  %v2842 = vmul.f32 %v1686, %v2553
  %v2843 = vmul.f32 %v1686, %v2557
  %v2844 = vmul.f32 %v1686, %v2561
  %v2845 = vmul.f32 %v1686, %v2565
  %v2846 = vadd.f32 %v2830, %v2838
  %v2847 = vadd.f32 %v2831, %v2839
  %v2848 = vadd.f32 %v2832, %v2840
  %v2849 = vadd.f32 %v2833, %v2841
  %v2850 = vadd.f32 %v2834, %v2842
  %v2851 = vadd.f32 %v2835, %v2843
  %v2852 = vadd.f32 %v2836, %v2844
  %v2853 = vadd.f32 %v2837, %v2845
  %v2854 = vmul.f32 %v1706, %v2585
  %v2855 = vmul.f32 %v1706, %v2589
  %v2856 = vmul.f32 %v1706, %v2593
  %v2857 = vmul.f32 %v1706, %v2597
  %v2858 = vmul.f32 %v1706, %v2601
  %v2859 = vmul.f32 %v1706, %v2605
  %v2860 = vmul.f32 %v1706, %v2609
  %v2861 = vmul.f32 %v1706, %v2613
  %v2862 = vadd.f32 %v2846, %v2854
  %v2863 = vadd.f32 %v2847, %v2855
  %v2864 = vadd.f32 %v2848, %v2856
  %v2865 = vadd.f32 %v2849, %v2857
  %v2866 = vadd.f32 %v2850, %v2858
  %v2867 = vadd.f32 %v2851, %v2859
  %v2868 = vadd.f32 %v2852, %v2860
  %v2869 = vadd.f32 %v2853, %v2861
  %v2870 = vadd.f32 %v2670, %v2862
  %v2871 = vadd.f32 %v2671, %v2863
  %v2872 = vadd.f32 %v2672, %v2864
  %v2873 = vadd.f32 %v2673, %v2865
  %v2874 = vadd.f32 %v2674, %v2866
  %v2875 = vadd.f32 %v2675, %v2867
  %v2876 = vadd.f32 %v2676, %v2868
  %v2877 = vadd.f32 %v2677, %v2869
  %v2878 = vmul.f32 %v1734, %v2057
  %v2879 = vmul.f32 %v1734, %v2061
  %v2880 = vmul.f32 %v1734, %v2065
  %v2881 = vmul.f32 %v1734, %v2069
  %v2882 = vmul.f32 %v1734, %v2073
  %v2883 = vmul.f32 %v1734, %v2077
  %v2884 = vmul.f32 %v1734, %v2081
  %v2885 = vmul.f32 %v1734, %v2085
  %v2886 = vadd.f32 %v2878, 0.0
  %v2887 = vadd.f32 %v2879, 0.0
  %v2888 = vadd.f32 %v2880, 0.0
  %v2889 = vadd.f32 %v2881, 0.0
  %v2890 = vadd.f32 %v2882, 0.0
  %v2891 = vadd.f32 %v2883, 0.0
  %v2892 = vadd.f32 %v2884, 0.0
  %v2893 = vadd.f32 %v2885, 0.0
  %v2894 = vmul.f32 %v1754, %v2105
  %v2895 = vmul.f32 %v1754, %v2109
  %v2896 = vmul.f32 %v1754, %v2113
  %v2897 = vmul.f32 %v1754, %v2117
  %v2898 = vmul.f32 %v1754, %v2121
  %v2899 = vmul.f32 %v1754, %v2125
  %v2900 = vmul.f32 %v1754, %v2129
  %v2901 = vmul.f32 %v1754, %v2133
  %v2902 = vadd.f32 %v2886, %v2894
  %v2903 = vadd.f32 %v2887, %v2895
  %v2904 = vadd.f32 %v2888, %v2896
  %v2905 = vadd.f32 %v2889, %v2897
  %v2906 = vadd.f32 %v2890, %v2898
  %v2907 = vadd.f32 %v2891, %v2899
  %v2908 = vadd.f32 %v2892, %v2900
  %v2909 = vadd.f32 %v2893, %v2901
  %v2910 = vmul.f32 %v1774, %v2153
  %v2911 = vmul.f32 %v1774, %v2157
  %v2912 = vmul.f32 %v1774, %v2161
  %v2913 = vmul.f32 %v1774, %v2165
  %v2914 = vmul.f32 %v1774, %v2169
  %v2915 = vmul.f32 %v1774, %v2173
  %v2916 = vmul.f32 %v1774, %v2177
  %v2917 = vmul.f32 %v1774, %v2181
  %v2918 = vadd.f32 %v2902, %v2910
  %v2919 = vadd.f32 %v2903, %v2911
  %v2920 = vadd.f32 %v2904, %v2912
  %v2921 = vadd.f32 %v2905, %v2913
  %v2922 = vadd.f32 %v2906, %v2914
  %v2923 = vadd.f32 %v2907, %v2915
  %v2924 = vadd.f32 %v2908, %v2916
  %v2925 = vadd.f32 %v2909, %v2917
  %v2926 = vmul.f32 %v1794, %v2201
  %v2927 = vmul.f32 %v1794, %v2205
  %v2928 = vmul.f32 %v1794, %v2209
  %v2929 = vmul.f32 %v1794, %v2213
  %v2930 = vmul.f32 %v1794, %v2217
  %v2931 = vmul.f32 %v1794, %v2221
  %v2932 = vmul.f32 %v1794, %v2225
  %v2933 = vmul.f32 %v1794, %v2229
  %v2934 = vadd.f32 %v2918, %v2926
  %v2935 = vadd.f32 %v2919, %v2927
  %v2936 = vadd.f32 %v2920, %v2928
  %v2937 = vadd.f32 %v2921, %v2929
  %v2938 = vadd.f32 %v2922, %v2930
  %v2939 = vadd.f32 %v2923, %v2931
  %v2940 = vadd.f32 %v2924, %v2932
  %v2941 = vadd.f32 %v2925, %v2933
  %v2942 = vmul.f32 %v1814, %v2249
  %v2943 = vmul.f32 %v1814, %v2253
  %v2944 = vmul.f32 %v1814, %v2257
  %v2945 = vmul.f32 %v1814, %v2261
  %v2946 = vmul.f32 %v1814, %v2265
  %v2947 = vmul.f32 %v1814, %v2269
  %v2948 = vmul.f32 %v1814, %v2273
  %v2949 = vmul.f32 %v1814, %v2277
  %v2950 = vadd.f32 %v2934, %v2942
  %v2951 = vadd.f32 %v2935, %v2943
  %v2952 = vadd.f32 %v2936, %v2944
  %v2953 = vadd.f32 %v2937, %v2945
  %v2954 = vadd.f32 %v2938, %v2946
  %v2955 = vadd.f32 %v2939, %v2947
  %v2956 = vadd.f32 %v2940, %v2948
  %v2957 = vadd.f32 %v2941, %v2949
  %v2958 = vmul.f32 %v1834, %v2297
  %v2959 = vmul.f32 %v1834, %v2301
  %v2960 = vmul.f32 %v1834, %v2305
  %v2961 = vmul.f32 %v1834, %v2309
  %v2962 = vmul.f32 %v1834, %v2313
  %v2963 = vmul.f32 %v1834, %v2317
  %v2964 = vmul.f32 %v1834, %v2321
  %v2965 = vmul.f32 %v1834, %v2325
  %v2966 = vadd.f32 %v2950, %v2958
  %v2967 = vadd.f32 %v2951, %v2959
  %v2968 = vadd.f32 %v2952, %v2960
  %v2969 = vadd.f32 %v2953, %v2961
  %v2970 = vadd.f32 %v2954, %v2962
  %v2971 = vadd.f32 %v2955, %v2963
  %v2972 = vadd.f32 %v2956, %v2964
  %v2973 = vadd.f32 %v2957, %v2965
  %v2974 = vmul.f32 %v1854, %v2345
  %v2975 = vmul.f32 %v1854, %v2349
  %v2976 = vmul.f32 %v1854, %v2353
  %v2977 = vmul.f32 %v1854, %v2357
  %v2978 = vmul.f32 %v1854, %v2361
  %v2979 = vmul.f32 %v1854, %v2365
  %v2980 = vmul.f32 %v1854, %v2369
  %v2981 = vmul.f32 %v1854, %v2373
  %v2982 = vadd.f32 %v2966, %v2974
  %v2983 = vadd.f32 %v2967, %v2975
  %v2984 = vadd.f32 %v2968, %v2976
  %v2985 = vadd.f32 %v2969, %v2977
  %v2986 = vadd.f32 %v2970, %v2978
  %v2987 = vadd.f32 %v2971, %v2979
  %v2988 = vadd.f32 %v2972, %v2980
  %v2989 = vadd.f32 %v2973, %v2981
  %v2990 = vmul.f32 %v1874, %v2393
  %v2991 = vmul.f32 %v1874, %v2397
  %v2992 = vmul.f32 %v1874, %v2401
  %v2993 = vmul.f32 %v1874, %v2405
  %v2994 = vmul.f32 %v1874, %v2409
  %v2995 = vmul.f32 %v1874, %v2413
  %v2996 = vmul.f32 %v1874, %v2417
  %v2997 = vmul.f32 %v1874, %v2421
  %v2998 = vadd.f32 %v2982, %v2990
  %v2999 = vadd.f32 %v2983, %v2991
  %v3000 = vadd.f32 %v2984, %v2992
  %v3001 = vadd.f32 %v2985, %v2993
  %v3002 = vadd.f32 %v2986, %v2994
  %v3003 = vadd.f32 %v2987, %v2995
  %v3004 = vadd.f32 %v2988, %v2996
  %v3005 = vadd.f32 %v2989, %v2997
  %v3006 = vmul.f32 %v1894, %v2441
  %v3007 = vmul.f32 %v1894, %v2445
  %v3008 = vmul.f32 %v1894, %v2449
  %v3009 = vmul.f32 %v1894, %v2453
  %v3010 = vmul.f32 %v1894, %v2457
  %v3011 = vmul.f32 %v1894, %v2461
  %v3012 = vmul.f32 %v1894, %v2465
  %v3013 = vmul.f32 %v1894, %v2469
  %v3014 = vadd.f32 %v2998, %v3006
  %v3015 = vadd.f32 %v2999, %v3007
  %v3016 = vadd.f32 %v3000, %v3008
  %v3017 = vadd.f32 %v3001, %v3009
  %v3018 = vadd.f32 %v3002, %v3010
  %v3019 = vadd.f32 %v3003, %v3011
  %v3020 = vadd.f32 %v3004, %v3012
  %v3021 = vadd.f32 %v3005, %v3013
  %v3022 = vmul.f32 %v1914, %v2489
  %v3023 = vmul.f32 %v1914, %v2493
  %v3024 = vmul.f32 %v1914, %v2497
  %v3025 = vmul.f32 %v1914, %v2501
  %v3026 = vmul.f32 %v1914, %v2505
  %v3027 = vmul.f32 %v1914, %v2509
  %v3028 = vmul.f32 %v1914, %v2513
  %v3029 = vmul.f32 %v1914, %v2517
  %v3030 = vadd.f32 %v3014, %v3022
  %v3031 = vadd.f32 %v3015, %v3023
  %v3032 = vadd.f32 %v3016, %v3024
  %v3033 = vadd.f32 %v3017, %v3025
  %v3034 = vadd.f32 %v3018, %v3026
  %v3035 = vadd.f32 %v3019, %v3027
  %v3036 = vadd.f32 %v3020, %v3028
  %v3037 = vadd.f32 %v3021, %v3029
  %v3038 = vmul.f32 %v1934, %v2537
  %v3039 = vmul.f32 %v1934, %v2541
  %v3040 = vmul.f32 %v1934, %v2545
  %v3041 = vmul.f32 %v1934, %v2549
  %v3042 = vmul.f32 %v1934, %v2553
  %v3043 = vmul.f32 %v1934, %v2557
  %v3044 = vmul.f32 %v1934, %v2561
  %v3045 = vmul.f32 %v1934, %v2565
  %v3046 = vadd.f32 %v3030, %v3038
  %v3047 = vadd.f32 %v3031, %v3039
  %v3048 = vadd.f32 %v3032, %v3040
  %v3049 = vadd.f32 %v3033, %v3041
  %v3050 = vadd.f32 %v3034, %v3042
  %v3051 = vadd.f32 %v3035, %v3043
  %v3052 = vadd.f32 %v3036, %v3044
  %v3053 = vadd.f32 %v3037, %v3045
  %v3054 = vmul.f32 %v1954, %v2585
  %v3055 = vmul.f32 %v1954, %v2589
  %v3056 = vmul.f32 %v1954, %v2593
  %v3057 = vmul.f32 %v1954, %v2597
  %v3058 = vmul.f32 %v1954, %v2601
  %v3059 = vmul.f32 %v1954, %v2605
  %v3060 = vmul.f32 %v1954, %v2609
  %v3061 = vmul.f32 %v1954, %v2613
  %v3062 = vadd.f32 %v3046, %v3054
  %v3063 = vadd.f32 %v3047, %v3055
  %v3064 = vadd.f32 %v3048, %v3056
  %v3065 = vadd.f32 %v3049, %v3057
  %v3066 = vadd.f32 %v3050, %v3058
  %v3067 = vadd.f32 %v3051, %v3059
  %v3068 = vadd.f32 %v3052, %v3060
  %v3069 = vadd.f32 %v3053, %v3061
  %3078 = vrot.lane.b32.xlu0 %v3062, 96
  %v3079 = vpop.permute.xlu0 %3078
  %3080 = vrot.lane.b32.xlu0 %v3063, 96
  %v3081 = vpop.permute.xlu0 %3080
  %3082 = vrot.lane.b32.xlu0 %v3064, 96
  %v3083 = vpop.permute.xlu0 %3082
  %3084 = vrot.lane.b32.xlu0 %v3065, 96
  %v3085 = vpop.permute.xlu0 %3084
  %3086 = vrot.lane.b32.xlu0 %v3066, 96
  %v3087 = vpop.permute.xlu0 %3086
  %3088 = vrot.lane.b32.xlu0 %v3067, 96
  %v3089 = vpop.permute.xlu0 %3088
  %3090 = vrot.lane.b32.xlu0 %v3068, 96
  %v3091 = vpop.permute.xlu0 %3090
  %3092 = vrot.lane.b32.xlu0 %v3069, 96
  %v3093 = vpop.permute.xlu0 %3092
  %v3094 = vsel %vm1996, %v3079, %v3081
  %v3095 = vsel %vm1996, %v3081, %v3083
  %v3096 = vsel %vm1996, %v3083, %v3085
  %v3097 = vsel %vm1996, %v3085, %v3087
  %v3098 = vsel %vm1996, %v3087, %v3089
  %v3099 = vsel %vm1996, %v3089, %v3091
  %v3100 = vsel %vm1996, %v3091, %v3093
  %v3109 = vsel %vm1996, %v3093, 0.0
  %v3110 = vadd.f32 %v2870, %v3094
  %v3111 = vadd.f32 %v2871, %v3095
  %v3112 = vadd.f32 %v2872, %v3096
  %v3113 = vadd.f32 %v2873, %v3097
  %v3114 = vadd.f32 %v2874, %v3098
  %v3115 = vadd.f32 %v2875, %v3099
  %v3116 = vadd.f32 %v2876, %v3100
  %v3117 = vadd.f32 %v2877, %v3109
  %v3118 = vadd.f32 %v3110, %v2024
  %v3119 = vadd.f32 %v3111, %v2024
  %v3120 = vadd.f32 %v3112, %v2024
  %v3121 = vadd.f32 %v3113, %v2024
  %v3122 = vadd.f32 %v3114, %v2024
  %v3123 = vadd.f32 %v3115, %v2024
  %v3124 = vadd.f32 %v3116, %v2024
  %v3125 = vadd.f32 %v3117, %v2024
  %v3134 = vcombine.low %v3118, %v3119
  %v3135 = vcombine.low %v3120, %v3121
  %v3136 = vcombine.low %v3122, %v3123
  %v3137 = vcombine.low %v3124, %v3125
  %s3142 = scalar_lea.vmem %s4, 32
  %3143 = vst [vmem:[%s3142] sm:$0xff] %v3134
  %3144 = vst [vmem:[%s3142 + $0x8] sm:$0xff] %v3135
  %3145 = vst [vmem:[%s3142 + $0x10] sm:$0xff] %v3136
  %3146 = vst [vmem:[%s3142 + $0x18] sm:$0xff] %v3137
  // Predicated region
  $region18: #{upsample_forward.1} parent=0 // pred_check
    _
  $region19: #{upsample_forward.1} parent=0 // pred_check_branch
    %3148 = sbr.rel (0) target = $region21
  $region20: #{upsample_forward.1} parent=0 // pred_region
    _
  $region21: #{upsample_forward.1} parent=0 // pred_fallthru
    _
  // Predicated region
  $region22: #{upsample_forward.1} parent=0 // pred_check
    _
  $region23: #{upsample_forward.1} parent=0 // pred_check_branch
    %3150 = sbr.rel (0) target = $region25
  $region24: #{upsample_forward.1} parent=0 // pred_region
    _
  $region25: #{upsample_forward.1} parent=0 // pred_fallthru
    _

</llo_original>
